<compile_context>
chip_gen: v6e
topology: v6e:2x2x1
jax: 0.10.0
libtpu: 0.0.40
codegen_flags: <defaults>
</compile_context>

<pallas_src>
import functools

import jax
import jax.numpy as jnp
from jax.experimental import pallas as pl
from jax.experimental.pallas import tpu as pltpu

BN_EPS = 1e-5
LEAKY_SLOPE = 0.01   # PyTorch nn.LeakyReLU default negative_slope
C = 128              # trunk channel width
PAD = 8              # aligned zero-pad rows at the top of each activation buffer
                     # (conv left-pad of 3 lives in rows PAD-3 .. PAD-1)


# ----------------------------------------------------------------------------
# Fused whole-forward kernel (one batch element per grid step)
# ----------------------------------------------------------------------------
def _feature_encoder_kernel(x_ref, wq_ref, wr_ref, wb_ref,
                            msw_ref, msb_ref, sw1_ref, sb1_ref, sw2_ref, sb2_ref,
                            o_ref, buf_a, buf_b, *, lq):
    f32 = jnp.float32
    bf16 = jnp.bfloat16

    # Zero the left-pad rows of both ping-pong buffers (aligned 8-row store).
    buf_a[0:PAD, :] = jnp.zeros((PAD, C), f32)
    buf_b[0:PAD, :] = jnp.zeros((PAD, C), f32)

    # ---- stage 0: fused query/ref/res ConvWide (k=8, s=8), BN folded, LeakyReLU
    # res = q - r is folded algebraically into the weights (Wq += Ws, Wr -= Ws).
    q = x_ref[0, 0]                                         # (lq, 8)
    r = x_ref[0, 1]                                         # (lq, 8)
    y = (jnp.dot(q, wq_ref[...], preferred_element_type=f32) +
         jnp.dot(r, wr_ref[...], preferred_element_type=f32) + wb_ref[...])
    y = jnp.where(y >= 0.0, y, LEAKY_SLOPE * y)             # (lq, 128)
    buf_a[PAD:PAD + lq, :] = y

    # Mask of the conv3/5/7 slice (channels >= C//4); conv1 slice stays raw.
    col = jax.lax.broadcasted_iota(jnp.int32, (1, C), 1)
    bn_cols = col >= (C // 4)

    # ---- stages 1..3: ConvMultiScale blocks with in-kernel 7-tap im2col ------
    def ms_stage(i, src, dst, l_in):
        l_out = l_in // 4
        acc = jnp.zeros((l_out, C), f32)
        for t in range(7):                                  # unrolled, static
            # stride-4 sublane slice of the zero-left-padded activation buffer
            xt = src[pl.ds(t + PAD - 3, l_out, stride=4), :].astype(bf16)
            base = (i * 7 + t) * C
            acc += jnp.dot(xt, msw_ref[base:base + C, :],
                           preferred_element_type=f32)
        y = acc + msb_ref[i]                                # (l_out, C)
        # ReLU only on the conv3/5/7 (BN'd) slice; conv1 slice bypasses it.
        y = jnp.where(bn_cols, jnp.maximum(y, 0.0), y)

        # Channel attention over the conv3/5/7 slice.  SE weights are zero-
        # padded over the conv1 channels, so full-width pooling is exact.
        avg = jnp.sum(y, axis=0, keepdims=True) * (1.0 / l_out)   # (1, C)
        mx = jnp.max(y, axis=0, keepdims=True)                    # (1, C)

        def se(v):
            h = jnp.dot(v, sw1_ref[i], preferred_element_type=f32) + sb1_ref[i]
            h = jnp.maximum(h, 0.0)
            return jnp.dot(h, sw2_ref[i], preferred_element_type=f32) + sb2_ref[i]

        att = jax.nn.sigmoid(se(avg) + se(mx))              # (1, C)
        y = y * jnp.where(bn_cols, att, 1.0)                # conv1 slice untouched
        if dst is None:
            return y
        dst[PAD:PAD + l_out, :] = y
        return None

    ms_stage(0, buf_a, buf_b, lq)            # (lq, C)      -> (lq//4,  C)
    ms_stage(1, buf_b, buf_a, lq // 4)       # (lq//4, C)   -> (lq//16, C)
    y3 = ms_stage(2, buf_a, None, lq // 16)  # (lq//16, C)  -> (lq//64, C)

    # In-kernel transpose to the PyTorch (C, L_final) layout (rides the XLU).
    o_ref[...] = jnp.transpose(y3, (1, 0))[None].astype(o_ref.dtype)


# ----------------------------------------------------------------------------
# Wrapper: one pallas_call for the whole forward
# ----------------------------------------------------------------------------
def feature_encoder_fwd(x, params):
    """x: (B, 2, L) float32 -> (B, 128, L//512), matching the PyTorch layout."""
    B, _, L = x.shape
    lq = L // 8
    assert lq % 64 == 0, "L must be divisible by 512"
    l_final = lq // 64
    x4 = x.reshape(B, 2, lq, 8)   # free reshape; im2col of the k=8 s=8 wide conv

    kernel = functools.partial(_feature_encoder_kernel, lq=lq)
    return pl.pallas_call(
        kernel,
        out_shape=jax.ShapeDtypeStruct((B, C, l_final), jnp.float32),
        grid=(B,),
        in_specs=[
            pl.BlockSpec((1, 2, lq, 8), lambda b: (b, 0, 0, 0)),   # input taps
            pl.BlockSpec((8, C), lambda b: (0, 0)),                # wide Wq (+Ws)
            pl.BlockSpec((8, C), lambda b: (0, 0)),                # wide Wr (-Ws)
            pl.BlockSpec((1, C), lambda b: (0, 0)),                # wide bias
            pl.BlockSpec((21 * C, C), lambda b: (0, 0)),           # 3x(7C,C) bf16
            pl.BlockSpec((3, 1, C), lambda b: (0, 0, 0)),          # MS biases
            pl.BlockSpec((3, C, 8), lambda b: (0, 0, 0)),          # SE w1
            pl.BlockSpec((3, 1, 8), lambda b: (0, 0, 0)),          # SE b1
            pl.BlockSpec((3, 8, C), lambda b: (0, 0, 0)),          # SE w2
            pl.BlockSpec((3, 1, C), lambda b: (0, 0, 0)),          # SE b2
        ],
        out_specs=pl.BlockSpec((1, C, l_final), lambda b: (b, 0, 0)),
        scratch_shapes=[
            pltpu.VMEM((PAD + lq, C), jnp.float32),        # ping buffer
            pltpu.VMEM((PAD + lq // 4, C), jnp.float32),   # pong buffer
        ],
        compiler_params=pltpu.CompilerParams(dimension_semantics=("parallel",)),
    )(x4, params["wide_wq"], params["wide_wr"], params["wide_b"],
      params["ms_w"], params["ms_b"],
      params["se_w1"], params["se_b1"], params["se_w2"], params["se_b2"])


# ----------------------------------------------------------------------------
# Parameter init (deterministic, synthetic) with eval-mode BN folded in
# ----------------------------------------------------------------------------
def _fold_bn(conv_b, gamma, beta, mean, var):
    scale = gamma / jnp.sqrt(var + BN_EPS)
    bias = (conv_b - mean) * scale + beta
    return scale, bias


def _bn_stats(keys, c):
    gamma = 1.0 + 0.1 * jax.random.normal(keys[0], (c,), jnp.float32)
    beta = 0.1 * jax.random.normal(keys[1], (c,), jnp.float32)
    mean = 0.1 * jax.random.normal(keys[2], (c,), jnp.float32)
    var = 1.0 + 0.1 * jnp.abs(jax.random.normal(keys[3], (c,), jnp.float32))
    return gamma, beta, mean, var


def init_conv_wide_fused(key):
    """query(60) / ref(8) / res(60) ConvWide(1,*,8,8) branches fused into two
    (8, 128) weights acting on q and r, with res = q - r and BN folded in."""
    couts = (60, 8, 60)
    wq = jnp.zeros((8, C), jnp.float32)
    wr = jnp.zeros((8, C), jnp.float32)
    bias = jnp.zeros((C,), jnp.float32)
    col = 0
    for i, (cout, bk) in enumerate(zip(couts, jax.random.split(key, 3))):
        ks = jax.random.split(bk, 6)
        w = 0.1 * jax.random.normal(ks[0], (cout, 1, 8), jnp.float32)  # Conv1d
        b = 0.1 * jax.random.normal(ks[1], (cout,), jnp.float32)
        gamma, beta, mean, var = _bn_stats(ks[2:6], cout)
        scale, fb = _fold_bn(b, gamma, beta, mean, var)
        wt = w[:, 0, :].T * scale[None, :]                  # (8, cout)
        sl = slice(col, col + cout)
        if i == 0:                       # query branch consumes q
            wq = wq.at[:, sl].set(wt)
        elif i == 1:                     # ref branch consumes r
            wr = wr.at[:, sl].set(wt)
        else:                            # res branch consumes s = q - r
            wq = wq.at[:, sl].set(wt)
            wr = wr.at[:, sl].set(-wt)
        bias = bias.at[sl].set(fb)
        col += cout
    return wq, wr, bias.reshape(1, C)


def init_conv_ms(key, cin=128, cout=128):
    """ConvMultiScale(cin, cout) as one (7*cin, cout) weight + padded SE MLP."""
    oc = cout // 4
    ks = jax.random.split(key, 7)
    W = jnp.zeros((7 * cin, cout), jnp.float32)
    bias = jnp.zeros((cout,), jnp.float32)

    # conv1 branch: raw conv (bias only, no BN/ReLU) -> center tap (t = 3).
    w1 = 0.1 * jax.random.normal(ks[0], (oc, cin, 1), jnp.float32)
    b1 = 0.1 * jax.random.normal(ks[1], (oc,), jnp.float32)
    W = W.at[3 * cin:4 * cin, 0:oc].set(w1[:, :, 0].T)
    bias = bias.at[0:oc].set(b1)

    # conv3/5/7 branches, each fused with its slice of BatchNorm1d(3*oc) + ReLU.
    gamma, beta, mean, var = _bn_stats(jax.random.split(ks[5], 4), 3 * oc)
    for i, ksz in enumerate((3, 5, 7)):
        sub = jax.random.split(ks[2 + i], 2)
        w = 0.1 * jax.random.normal(sub[0], (oc, cin, ksz), jnp.float32)
        b = 0.1 * jax.random.normal(sub[1], (oc,), jnp.float32)
        sl = slice(i * oc, (i + 1) * oc)
        scale, fb = _fold_bn(b, gamma[sl], beta[sl], mean[sl], var[sl])
        col0, tap0 = oc + i * oc, 3 - ksz // 2
        for t in range(ksz):
            W = W.at[(tap0 + t) * cin:(tap0 + t + 1) * cin, col0:col0 + oc].set(
                w[:, :, t].T * scale[None, :])
        bias = bias.at[col0:col0 + oc].set(fb)

    # ChannelAttention(3*oc, reduction=16); SE weights zero-padded over the
    # conv1 channels (hidden dim padded 6 -> 8 for a clean lane layout).
    C96, Cr = 3 * oc, (3 * oc) // 16
    ck = jax.random.split(ks[6], 4)
    se_w1 = 0.1 * jax.random.normal(ck[0], (Cr, C96, 1), jnp.float32)   # Conv1d(96,6,1)
    se_b1 = 0.1 * jax.random.normal(ck[1], (Cr,), jnp.float32)
    se_w2 = 0.1 * jax.random.normal(ck[2], (C96, Cr, 1), jnp.float32)   # Conv1d(6,96,1)
    se_b2 = 0.1 * jax.random.normal(ck[3], (C96,), jnp.float32)
    return {
        "w": W, "bias": bias.reshape(1, cout),
        "se_w1": jnp.zeros((cout, 8), jnp.float32).at[oc:, :Cr].set(se_w1[:, :, 0].T),
        "se_b1": jnp.zeros((1, 8), jnp.float32).at[0, :Cr].set(se_b1),
        "se_w2": jnp.zeros((8, cout), jnp.float32).at[:Cr, oc:].set(se_w2[:, :, 0].T),
        "se_b2": jnp.zeros((1, cout), jnp.float32).at[0, oc:].set(se_b2),
    }


def init_params(key):
    kw, k1, k2, k3 = jax.random.split(key, 4)
    wq, wr, wb = init_conv_wide_fused(kw)
    blocks = [init_conv_ms(k) for k in (k1, k2, k3)]
    return {
        "wide_wq": wq, "wide_wr": wr, "wide_b": wb,
        # Big conv weights stored in bf16 (f32 accumulation inside the kernel).
        "ms_w": jnp.concatenate([p["w"] for p in blocks], axis=0).astype(jnp.bfloat16),
        "ms_b": jnp.stack([p["bias"] for p in blocks], axis=0),     # (3, 1, 128)
        "se_w1": jnp.stack([p["se_w1"] for p in blocks], axis=0),   # (3, 128, 8)
        "se_b1": jnp.stack([p["se_b1"] for p in blocks], axis=0),   # (3, 1, 8)
        "se_w2": jnp.stack([p["se_w2"] for p in blocks], axis=0),   # (3, 8, 128)
        "se_b2": jnp.stack([p["se_b2"] for p in blocks], axis=0),   # (3, 1, 128)
    }


# ----------------------------------------------------------------------------
if __name__ == "__main__":
    key = jax.random.PRNGKey(0)
    kx, kp = jax.random.split(key)
    B, L = 2, 1024
    x = jax.random.normal(kx, (B, 2, L), jnp.float32)
    params = init_params(kp)

    fwd = jax.jit(feature_encoder_fwd)
    out = jax.block_until_ready(fwd(x, params))

    # L=1024 -> ConvWide stride 8 -> 128 -> MS stride 4 -> 32 -> 8 -> 2
    assert out.shape == (B, 128, 2), out.shape
    assert bool(jnp.all(jnp.isfinite(out)))
    print("KERNEL_OK")
</pallas_src>

<mosaic_0001>
module attributes {stable_mosaic.version = 11 : i64} {
  func.func @_feature_encoder_kernel(%arg0: i32, %arg1: memref<1x2x128x8xf32, #tpu.memory_space<vmem>>, %arg2: memref<8x128xf32, #tpu.memory_space<vmem>>, %arg3: memref<8x128xf32, #tpu.memory_space<vmem>>, %arg4: memref<1x128xf32, #tpu.memory_space<vmem>>, %arg5: memref<2688x128xbf16, #tpu.memory_space<vmem>>, %arg6: memref<3x1x128xf32, #tpu.memory_space<vmem>>, %arg7: memref<3x128x8xf32, #tpu.memory_space<vmem>>, %arg8: memref<3x1x8xf32, #tpu.memory_space<vmem>>, %arg9: memref<3x8x128xf32, #tpu.memory_space<vmem>>, %arg10: memref<3x1x128xf32, #tpu.memory_space<vmem>>, %arg11: memref<1x128x2xf32, #tpu.memory_space<vmem>>, %arg12: memref<136x128xf32, #tpu.memory_space<vmem>>, %arg13: memref<40x128xf32, #tpu.memory_space<vmem>>) attributes {dimension_semantics = [#tpu.dimension_semantics<parallel>], iteration_bounds = array<i64: 2>, scalar_prefetch = 0 : i64, scratch_operands = 2 : i64, tpu.core_type = #tpu.core_type<tc>, window_params = [{transform_indices = @transform_0, window_bounds = array<i64: 1, 2, 128, 8>}, {pipeline_mode = #tpu.pipeline_mode<synchronous>, transform_indices = @transform_1, window_bounds = array<i64: 8, 128>}, {pipeline_mode = #tpu.pipeline_mode<synchronous>, transform_indices = @transform_2, window_bounds = array<i64: 8, 128>}, {pipeline_mode = #tpu.pipeline_mode<synchronous>, transform_indices = @transform_3, window_bounds = array<i64: 1, 128>}, {pipeline_mode = #tpu.pipeline_mode<synchronous>, transform_indices = @transform_4, window_bounds = array<i64: 2688, 128>}, {pipeline_mode = #tpu.pipeline_mode<synchronous>, transform_indices = @transform_5, window_bounds = array<i64: 3, 1, 128>}, {pipeline_mode = #tpu.pipeline_mode<synchronous>, transform_indices = @transform_6, window_bounds = array<i64: 3, 128, 8>}, {pipeline_mode = #tpu.pipeline_mode<synchronous>, transform_indices = @transform_7, window_bounds = array<i64: 3, 1, 8>}, {pipeline_mode = #tpu.pipeline_mode<synchronous>, transform_indices = @transform_8, window_bounds = array<i64: 3, 8, 128>}, {pipeline_mode = #tpu.pipeline_mode<synchronous>, transform_indices = @transform_9, window_bounds = array<i64: 3, 1, 128>}, {transform_indices = @transform_10, window_bounds = array<i64: 1, 128, 2>}]} {
    %cst = arith.constant 0.000000e+00 : f32
    %0 = vector.broadcast %cst : f32 to vector<8x128xf32>
    %c0 = arith.constant 0 : index
    %c0_0 = arith.constant 0 : index
    %1 = vector.load %arg12[%c0, %c0_0] : memref<136x128xf32, #tpu.memory_space<vmem>>, vector<8x128xf32>
    tpu.vector_store %arg12[%c0, %c0_0], %0 {strides = array<i32>} : memref<136x128xf32, #tpu.memory_space<vmem>>, vector<8x128xf32>,
    %cst_1 = arith.constant 0.000000e+00 : f32
    %2 = vector.broadcast %cst_1 : f32 to vector<8x128xf32>
    %c0_2 = arith.constant 0 : index
    %c0_3 = arith.constant 0 : index
    %3 = vector.load %arg13[%c0_2, %c0_3] : memref<40x128xf32, #tpu.memory_space<vmem>>, vector<8x128xf32>
    tpu.vector_store %arg13[%c0_2, %c0_3], %2 {strides = array<i32>} : memref<40x128xf32, #tpu.memory_space<vmem>>, vector<8x128xf32>,
    %c0_4 = arith.constant 0 : index
    %c0_5 = arith.constant 0 : index
    %c0_6 = arith.constant 0 : index
    %c0_7 = arith.constant 0 : index
    %4 = vector.load %arg1[%c0_4, %c0_5, %c0_6, %c0_7] : memref<1x2x128x8xf32, #tpu.memory_space<vmem>>, vector<1x1x128x8xf32>
    %5 = vector.shape_cast %4 : vector<1x1x128x8xf32> to vector<128x8xf32>
    %c0_8 = arith.constant 0 : index
    %c1 = arith.constant 1 : index
    %c0_9 = arith.constant 0 : index
    %c0_10 = arith.constant 0 : index
    %6 = vector.load %arg1[%c0_8, %c1, %c0_9, %c0_10] : memref<1x2x128x8xf32, #tpu.memory_space<vmem>>, vector<1x1x128x8xf32>
    %7 = vector.shape_cast %6 : vector<1x1x128x8xf32> to vector<128x8xf32>
    %c0_11 = arith.constant 0 : index
    %c0_12 = arith.constant 0 : index
    %8 = vector.load %arg2[%c0_11, %c0_12] : memref<8x128xf32, #tpu.memory_space<vmem>>, vector<8x128xf32>
    %cst_13 = arith.constant dense<0.000000e+00> : vector<128x128xf32>
    %9 = tpu.matmul %5, %8, %cst_13 {dimension_numbers = #tpu.dot_dimension_numbers<[1], [0], [0], [1], [0, 0, 1, 1], [], []>} : vector<128x8xf32>, vector<8x128xf32>, vector<128x128xf32> -> vector<128x128xf32>
    %c0_14 = arith.constant 0 : index
    %c0_15 = arith.constant 0 : index
    %10 = vector.load %arg3[%c0_14, %c0_15] : memref<8x128xf32, #tpu.memory_space<vmem>>, vector<8x128xf32>
    %cst_16 = arith.constant dense<0.000000e+00> : vector<128x128xf32>
    %11 = tpu.matmul %7, %10, %cst_16 {dimension_numbers = #tpu.dot_dimension_numbers<[1], [0], [0], [1], [0, 0, 1, 1], [], []>} : vector<128x8xf32>, vector<8x128xf32>, vector<128x128xf32> -> vector<128x128xf32>
    %12 = arith.addf %9, %11 : vector<128x128xf32>
    %c0_17 = arith.constant 0 : index
    %c0_18 = arith.constant 0 : index
    %13 = vector.load %arg4[%c0_17, %c0_18] : memref<1x128xf32, #tpu.memory_space<vmem>>, vector<1x128xf32>
    %14 = vector.broadcast %13 : vector<1x128xf32> to vector<128x128xf32>
    %15 = arith.addf %12, %14 : vector<128x128xf32>
    %cst_19 = arith.constant 0.000000e+00 : f32
    %16 = vector.broadcast %cst_19 : f32 to vector<128x128xf32>
    %17 = arith.cmpf oge, %15, %16 : vector<128x128xf32>
    %cst_20 = arith.constant 0.00999999977 : f32
    %18 = vector.broadcast %cst_20 : f32 to vector<128x128xf32>
    %19 = arith.mulf %18, %15 : vector<128x128xf32>
    %20 = arith.select %17, %15, %19 : vector<128x128xi1>, vector<128x128xf32>
    %c8 = arith.constant 8 : index
    %c0_21 = arith.constant 0 : index
    %21 = vector.load %arg12[%c8, %c0_21] : memref<136x128xf32, #tpu.memory_space<vmem>>, vector<128x128xf32>
    tpu.vector_store %arg12[%c8, %c0_21], %20 {strides = array<i32>} : memref<136x128xf32, #tpu.memory_space<vmem>>, vector<128x128xf32>,
    %22 = tpu.iota {dimensions = array<i32: 1>} : vector<1x128xi32>
    %c32_i32 = arith.constant 32 : i32
    %23 = vector.broadcast %c32_i32 : i32 to vector<1x128xi32>
    %24 = arith.cmpi sge, %22, %23 : vector<1x128xi32>
    %cst_22 = arith.constant 0.000000e+00 : f32
    %25 = vector.broadcast %cst_22 : f32 to vector<32x128xf32>
    %c5 = arith.constant 5 : index
    %c0_23 = arith.constant 0 : index
    %26 = tpu.strided_load %arg12[%c5, %c0_23] {strides = array<i32: 4, 1>} : memref<136x128xf32, #tpu.memory_space<vmem>>, vector<32x128xf32>
    %27 = arith.truncf %26 : vector<32x128xf32> to vector<32x128xbf16>
    %c0_24 = arith.constant 0 : index
    %c0_25 = arith.constant 0 : index
    %28 = vector.load %arg5[%c0_24, %c0_25] : memref<2688x128xbf16, #tpu.memory_space<vmem>>, vector<128x128xbf16>
    %cst_26 = arith.constant dense<0.000000e+00> : vector<32x128xf32>
    %29 = tpu.matmul %27, %28, %cst_26 {dimension_numbers = #tpu.dot_dimension_numbers<[1], [0], [0], [1], [0, 0, 1, 1], [], []>} : vector<32x128xbf16>, vector<128x128xbf16>, vector<32x128xf32> -> vector<32x128xf32>
    %30 = arith.addf %25, %29 : vector<32x128xf32>
    %c6 = arith.constant 6 : index
    %c0_27 = arith.constant 0 : index
    %31 = tpu.strided_load %arg12[%c6, %c0_27] {strides = array<i32: 4, 1>} : memref<136x128xf32, #tpu.memory_space<vmem>>, vector<32x128xf32>
    %32 = arith.truncf %31 : vector<32x128xf32> to vector<32x128xbf16>
    %c128 = arith.constant 128 : index
    %c0_28 = arith.constant 0 : index
    %33 = vector.load %arg5[%c128, %c0_28] : memref<2688x128xbf16, #tpu.memory_space<vmem>>, vector<128x128xbf16>
    %cst_29 = arith.constant dense<0.000000e+00> : vector<32x128xf32>
    %34 = tpu.matmul %32, %33, %cst_29 {dimension_numbers = #tpu.dot_dimension_numbers<[1], [0], [0], [1], [0, 0, 1, 1], [], []>} : vector<32x128xbf16>, vector<128x128xbf16>, vector<32x128xf32> -> vector<32x128xf32>
    %35 = arith.addf %30, %34 : vector<32x128xf32>
    %c7 = arith.constant 7 : index
    %c0_30 = arith.constant 0 : index
    %36 = tpu.strided_load %arg12[%c7, %c0_30] {strides = array<i32: 4, 1>} : memref<136x128xf32, #tpu.memory_space<vmem>>, vector<32x128xf32>
    %37 = arith.truncf %36 : vector<32x128xf32> to vector<32x128xbf16>
    %c256 = arith.constant 256 : index
    %c0_31 = arith.constant 0 : index
    %38 = vector.load %arg5[%c256, %c0_31] : memref<2688x128xbf16, #tpu.memory_space<vmem>>, vector<128x128xbf16>
    %cst_32 = arith.constant dense<0.000000e+00> : vector<32x128xf32>
    %39 = tpu.matmul %37, %38, %cst_32 {dimension_numbers = #tpu.dot_dimension_numbers<[1], [0], [0], [1], [0, 0, 1, 1], [], []>} : vector<32x128xbf16>, vector<128x128xbf16>, vector<32x128xf32> -> vector<32x128xf32>
    %40 = arith.addf %35, %39 : vector<32x128xf32>
    %c8_33 = arith.constant 8 : index
    %c0_34 = arith.constant 0 : index
    %41 = tpu.strided_load %arg12[%c8_33, %c0_34] {strides = array<i32: 4, 1>} : memref<136x128xf32, #tpu.memory_space<vmem>>, vector<32x128xf32>
    %42 = arith.truncf %41 : vector<32x128xf32> to vector<32x128xbf16>
    %c384 = arith.constant 384 : index
    %c0_35 = arith.constant 0 : index
    %43 = vector.load %arg5[%c384, %c0_35] : memref<2688x128xbf16, #tpu.memory_space<vmem>>, vector<128x128xbf16>
    %cst_36 = arith.constant dense<0.000000e+00> : vector<32x128xf32>
    %44 = tpu.matmul %42, %43, %cst_36 {dimension_numbers = #tpu.dot_dimension_numbers<[1], [0], [0], [1], [0, 0, 1, 1], [], []>} : vector<32x128xbf16>, vector<128x128xbf16>, vector<32x128xf32> -> vector<32x128xf32>
    %45 = arith.addf %40, %44 : vector<32x128xf32>
    %c9 = arith.constant 9 : index
    %c0_37 = arith.constant 0 : index
    %46 = tpu.strided_load %arg12[%c9, %c0_37] {strides = array<i32: 4, 1>} : memref<136x128xf32, #tpu.memory_space<vmem>>, vector<32x128xf32>
    %47 = arith.truncf %46 : vector<32x128xf32> to vector<32x128xbf16>
    %c512 = arith.constant 512 : index
    %c0_38 = arith.constant 0 : index
    %48 = vector.load %arg5[%c512, %c0_38] : memref<2688x128xbf16, #tpu.memory_space<vmem>>, vector<128x128xbf16>
    %cst_39 = arith.constant dense<0.000000e+00> : vector<32x128xf32>
    %49 = tpu.matmul %47, %48, %cst_39 {dimension_numbers = #tpu.dot_dimension_numbers<[1], [0], [0], [1], [0, 0, 1, 1], [], []>} : vector<32x128xbf16>, vector<128x128xbf16>, vector<32x128xf32> -> vector<32x128xf32>
    %50 = arith.addf %45, %49 : vector<32x128xf32>
    %c10 = arith.constant 10 : index
    %c0_40 = arith.constant 0 : index
    %51 = tpu.strided_load %arg12[%c10, %c0_40] {strides = array<i32: 4, 1>} : memref<136x128xf32, #tpu.memory_space<vmem>>, vector<32x128xf32>
    %52 = arith.truncf %51 : vector<32x128xf32> to vector<32x128xbf16>
    %c640 = arith.constant 640 : index
    %c0_41 = arith.constant 0 : index
    %53 = vector.load %arg5[%c640, %c0_41] : memref<2688x128xbf16, #tpu.memory_space<vmem>>, vector<128x128xbf16>
    %cst_42 = arith.constant dense<0.000000e+00> : vector<32x128xf32>
    %54 = tpu.matmul %52, %53, %cst_42 {dimension_numbers = #tpu.dot_dimension_numbers<[1], [0], [0], [1], [0, 0, 1, 1], [], []>} : vector<32x128xbf16>, vector<128x128xbf16>, vector<32x128xf32> -> vector<32x128xf32>
    %55 = arith.addf %50, %54 : vector<32x128xf32>
    %c11 = arith.constant 11 : index
    %c0_43 = arith.constant 0 : index
    %56 = tpu.strided_load %arg12[%c11, %c0_43] {strides = array<i32: 4, 1>} : memref<136x128xf32, #tpu.memory_space<vmem>>, vector<32x128xf32>
    %57 = arith.truncf %56 : vector<32x128xf32> to vector<32x128xbf16>
    %c768 = arith.constant 768 : index
    %c0_44 = arith.constant 0 : index
    %58 = vector.load %arg5[%c768, %c0_44] : memref<2688x128xbf16, #tpu.memory_space<vmem>>, vector<128x128xbf16>
    %cst_45 = arith.constant dense<0.000000e+00> : vector<32x128xf32>
    %59 = tpu.matmul %57, %58, %cst_45 {dimension_numbers = #tpu.dot_dimension_numbers<[1], [0], [0], [1], [0, 0, 1, 1], [], []>} : vector<32x128xbf16>, vector<128x128xbf16>, vector<32x128xf32> -> vector<32x128xf32>
    %60 = arith.addf %55, %59 : vector<32x128xf32>
    %c0_46 = arith.constant 0 : index
    %c0_47 = arith.constant 0 : index
    %c0_48 = arith.constant 0 : index
    %61 = vector.load %arg6[%c0_46, %c0_47, %c0_48] : memref<3x1x128xf32, #tpu.memory_space<vmem>>, vector<1x1x128xf32>
    %62 = vector.shape_cast %61 : vector<1x1x128xf32> to vector<1x128xf32>
    %63 = vector.broadcast %62 : vector<1x128xf32> to vector<32x128xf32>
    %64 = arith.addf %60, %63 : vector<32x128xf32>
    %cst_49 = arith.constant 0.000000e+00 : f32
    %65 = vector.broadcast %cst_49 : f32 to vector<32x128xf32>
    %66 = arith.maximumf %64, %65 : vector<32x128xf32>
    %67 = vector.shape_cast %24 : vector<1x128xi1> to vector<1x128xi1>
    %68 = vector.broadcast %67 : vector<1x128xi1> to vector<32x128xi1>
    %69 = arith.select %68, %66, %64 : vector<32x128xi1>, vector<32x128xf32>
    %cst_50 = arith.constant dense<0.000000e+00> : vector<128xf32>
    %70 = vector.multi_reduction <add>, %69, %cst_50 [0] : vector<32x128xf32> to vector<128xf32>
    %71 = vector.shape_cast %70 : vector<128xf32> to vector<1x128xf32>
    %cst_51 = arith.constant 3.125000e-02 : f32
    %72 = vector.broadcast %cst_51 : f32 to vector<1x128xf32>
    %73 = arith.mulf %71, %72 : vector<1x128xf32>
    %cst_52 = arith.constant dense<0xFF800000> : vector<128xf32>
    %74 = vector.multi_reduction <maximumf>, %69, %cst_52 [0] : vector<32x128xf32> to vector<128xf32>
    %75 = vector.shape_cast %74 : vector<128xf32> to vector<1x128xf32>
    %c0_53 = arith.constant 0 : index
    %c0_54 = arith.constant 0 : index
    %c0_55 = arith.constant 0 : index
    %76 = vector.load %arg7[%c0_53, %c0_54, %c0_55] : memref<3x128x8xf32, #tpu.memory_space<vmem>>, vector<1x128x8xf32>
    %77 = vector.shape_cast %76 : vector<1x128x8xf32> to vector<128x8xf32>
    %cst_56 = arith.constant dense<0.000000e+00> : vector<1x8xf32>
    %78 = tpu.matmul %73, %77, %cst_56 {dimension_numbers = #tpu.dot_dimension_numbers<[1], [0], [0], [1], [0, 0, 1, 1], [], []>} : vector<1x128xf32>, vector<128x8xf32>, vector<1x8xf32> -> vector<1x8xf32>
    %c0_57 = arith.constant 0 : index
    %c0_58 = arith.constant 0 : index
    %c0_59 = arith.constant 0 : index
    %79 = vector.load %arg8[%c0_57, %c0_58, %c0_59] : memref<3x1x8xf32, #tpu.memory_space<vmem>>, vector<1x1x8xf32>
    %80 = vector.shape_cast %79 : vector<1x1x8xf32> to vector<1x8xf32>
    %81 = arith.addf %78, %80 : vector<1x8xf32>
    %cst_60 = arith.constant 0.000000e+00 : f32
    %82 = vector.broadcast %cst_60 : f32 to vector<1x8xf32>
    %83 = arith.maximumf %81, %82 : vector<1x8xf32>
    %c0_61 = arith.constant 0 : index
    %c0_62 = arith.constant 0 : index
    %c0_63 = arith.constant 0 : index
    %84 = vector.load %arg9[%c0_61, %c0_62, %c0_63] : memref<3x8x128xf32, #tpu.memory_space<vmem>>, vector<1x8x128xf32>
    %85 = vector.shape_cast %84 : vector<1x8x128xf32> to vector<8x128xf32>
    %cst_64 = arith.constant dense<0.000000e+00> : vector<1x128xf32>
    %86 = tpu.matmul %83, %85, %cst_64 {dimension_numbers = #tpu.dot_dimension_numbers<[1], [0], [0], [1], [0, 0, 1, 1], [], []>} : vector<1x8xf32>, vector<8x128xf32>, vector<1x128xf32> -> vector<1x128xf32>
    %c0_65 = arith.constant 0 : index
    %c0_66 = arith.constant 0 : index
    %c0_67 = arith.constant 0 : index
    %87 = vector.load %arg10[%c0_65, %c0_66, %c0_67] : memref<3x1x128xf32, #tpu.memory_space<vmem>>, vector<1x1x128xf32>
    %88 = vector.shape_cast %87 : vector<1x1x128xf32> to vector<1x128xf32>
    %89 = arith.addf %86, %88 : vector<1x128xf32>
    %c0_68 = arith.constant 0 : index
    %c0_69 = arith.constant 0 : index
    %c0_70 = arith.constant 0 : index
    %90 = vector.load %arg7[%c0_68, %c0_69, %c0_70] : memref<3x128x8xf32, #tpu.memory_space<vmem>>, vector<1x128x8xf32>
    %91 = vector.shape_cast %90 : vector<1x128x8xf32> to vector<128x8xf32>
    %cst_71 = arith.constant dense<0.000000e+00> : vector<1x8xf32>
    %92 = tpu.matmul %75, %91, %cst_71 {dimension_numbers = #tpu.dot_dimension_numbers<[1], [0], [0], [1], [0, 0, 1, 1], [], []>} : vector<1x128xf32>, vector<128x8xf32>, vector<1x8xf32> -> vector<1x8xf32>
    %c0_72 = arith.constant 0 : index
    %c0_73 = arith.constant 0 : index
    %c0_74 = arith.constant 0 : index
    %93 = vector.load %arg8[%c0_72, %c0_73, %c0_74] : memref<3x1x8xf32, #tpu.memory_space<vmem>>, vector<1x1x8xf32>
    %94 = vector.shape_cast %93 : vector<1x1x8xf32> to vector<1x8xf32>
    %95 = arith.addf %92, %94 : vector<1x8xf32>
    %cst_75 = arith.constant 0.000000e+00 : f32
    %96 = vector.broadcast %cst_75 : f32 to vector<1x8xf32>
    %97 = arith.maximumf %95, %96 : vector<1x8xf32>
    %c0_76 = arith.constant 0 : index
    %c0_77 = arith.constant 0 : index
    %c0_78 = arith.constant 0 : index
    %98 = vector.load %arg9[%c0_76, %c0_77, %c0_78] : memref<3x8x128xf32, #tpu.memory_space<vmem>>, vector<1x8x128xf32>
    %99 = vector.shape_cast %98 : vector<1x8x128xf32> to vector<8x128xf32>
    %cst_79 = arith.constant dense<0.000000e+00> : vector<1x128xf32>
    %100 = tpu.matmul %97, %99, %cst_79 {dimension_numbers = #tpu.dot_dimension_numbers<[1], [0], [0], [1], [0, 0, 1, 1], [], []>} : vector<1x8xf32>, vector<8x128xf32>, vector<1x128xf32> -> vector<1x128xf32>
    %c0_80 = arith.constant 0 : index
    %c0_81 = arith.constant 0 : index
    %c0_82 = arith.constant 0 : index
    %101 = vector.load %arg10[%c0_80, %c0_81, %c0_82] : memref<3x1x128xf32, #tpu.memory_space<vmem>>, vector<1x1x128xf32>
    %102 = vector.shape_cast %101 : vector<1x1x128xf32> to vector<1x128xf32>
    %103 = arith.addf %100, %102 : vector<1x128xf32>
    %104 = arith.addf %89, %103 : vector<1x128xf32>
    %105 = arith.negf %104 : vector<1x128xf32>
    %106 = math.exp %105 : vector<1x128xf32>
    %cst_83 = arith.constant 1.000000e+00 : f32
    %107 = vector.broadcast %cst_83 : f32 to vector<1x128xf32>
    %108 = arith.addf %107, %106 : vector<1x128xf32>
    %109 = arith.divf %107, %108 : vector<1x128xf32>
    %cst_84 = arith.constant 1.000000e+00 : f32
    %110 = vector.broadcast %cst_84 : f32 to vector<1x128xf32>
    %111 = arith.select %24, %109, %110 : vector<1x128xi1>, vector<1x128xf32>
    %112 = vector.broadcast %111 : vector<1x128xf32> to vector<32x128xf32>
    %113 = arith.mulf %69, %112 : vector<32x128xf32>
    %c8_85 = arith.constant 8 : index
    %c0_86 = arith.constant 0 : index
    %114 = vector.load %arg13[%c8_85, %c0_86] : memref<40x128xf32, #tpu.memory_space<vmem>>, vector<32x128xf32>
    tpu.vector_store %arg13[%c8_85, %c0_86], %113 {strides = array<i32>} : memref<40x128xf32, #tpu.memory_space<vmem>>, vector<32x128xf32>,
    %cst_87 = arith.constant 0.000000e+00 : f32
    %115 = vector.broadcast %cst_87 : f32 to vector<8x128xf32>
    %c5_88 = arith.constant 5 : index
    %c0_89 = arith.constant 0 : index
    %116 = tpu.strided_load %arg13[%c5_88, %c0_89] {strides = array<i32: 4, 1>} : memref<40x128xf32, #tpu.memory_space<vmem>>, vector<8x128xf32>
    %117 = arith.truncf %116 : vector<8x128xf32> to vector<8x128xbf16>
    %c896 = arith.constant 896 : index
    %c0_90 = arith.constant 0 : index
    %118 = vector.load %arg5[%c896, %c0_90] : memref<2688x128xbf16, #tpu.memory_space<vmem>>, vector<128x128xbf16>
    %cst_91 = arith.constant dense<0.000000e+00> : vector<8x128xf32>
    %119 = tpu.matmul %117, %118, %cst_91 {dimension_numbers = #tpu.dot_dimension_numbers<[1], [0], [0], [1], [0, 0, 1, 1], [], []>} : vector<8x128xbf16>, vector<128x128xbf16>, vector<8x128xf32> -> vector<8x128xf32>
    %120 = arith.addf %115, %119 : vector<8x128xf32>
    %c6_92 = arith.constant 6 : index
    %c0_93 = arith.constant 0 : index
    %121 = tpu.strided_load %arg13[%c6_92, %c0_93] {strides = array<i32: 4, 1>} : memref<40x128xf32, #tpu.memory_space<vmem>>, vector<8x128xf32>
    %122 = arith.truncf %121 : vector<8x128xf32> to vector<8x128xbf16>
    %c1024 = arith.constant 1024 : index
    %c0_94 = arith.constant 0 : index
    %123 = vector.load %arg5[%c1024, %c0_94] : memref<2688x128xbf16, #tpu.memory_space<vmem>>, vector<128x128xbf16>
    %cst_95 = arith.constant dense<0.000000e+00> : vector<8x128xf32>
    %124 = tpu.matmul %122, %123, %cst_95 {dimension_numbers = #tpu.dot_dimension_numbers<[1], [0], [0], [1], [0, 0, 1, 1], [], []>} : vector<8x128xbf16>, vector<128x128xbf16>, vector<8x128xf32> -> vector<8x128xf32>
    %125 = arith.addf %120, %124 : vector<8x128xf32>
    %c7_96 = arith.constant 7 : index
    %c0_97 = arith.constant 0 : index
    %126 = tpu.strided_load %arg13[%c7_96, %c0_97] {strides = array<i32: 4, 1>} : memref<40x128xf32, #tpu.memory_space<vmem>>, vector<8x128xf32>
    %127 = arith.truncf %126 : vector<8x128xf32> to vector<8x128xbf16>
    %c1152 = arith.constant 1152 : index
    %c0_98 = arith.constant 0 : index
    %128 = vector.load %arg5[%c1152, %c0_98] : memref<2688x128xbf16, #tpu.memory_space<vmem>>, vector<128x128xbf16>
    %cst_99 = arith.constant dense<0.000000e+00> : vector<8x128xf32>
    %129 = tpu.matmul %127, %128, %cst_99 {dimension_numbers = #tpu.dot_dimension_numbers<[1], [0], [0], [1], [0, 0, 1, 1], [], []>} : vector<8x128xbf16>, vector<128x128xbf16>, vector<8x128xf32> -> vector<8x128xf32>
    %130 = arith.addf %125, %129 : vector<8x128xf32>
    %c8_100 = arith.constant 8 : index
    %c0_101 = arith.constant 0 : index
    %131 = tpu.strided_load %arg13[%c8_100, %c0_101] {strides = array<i32: 4, 1>} : memref<40x128xf32, #tpu.memory_space<vmem>>, vector<8x128xf32>
    %132 = arith.truncf %131 : vector<8x128xf32> to vector<8x128xbf16>
    %c1280 = arith.constant 1280 : index
    %c0_102 = arith.constant 0 : index
    %133 = vector.load %arg5[%c1280, %c0_102] : memref<2688x128xbf16, #tpu.memory_space<vmem>>, vector<128x128xbf16>
    %cst_103 = arith.constant dense<0.000000e+00> : vector<8x128xf32>
    %134 = tpu.matmul %132, %133, %cst_103 {dimension_numbers = #tpu.dot_dimension_numbers<[1], [0], [0], [1], [0, 0, 1, 1], [], []>} : vector<8x128xbf16>, vector<128x128xbf16>, vector<8x128xf32> -> vector<8x128xf32>
    %135 = arith.addf %130, %134 : vector<8x128xf32>
    %c9_104 = arith.constant 9 : index
    %c0_105 = arith.constant 0 : index
    %136 = tpu.strided_load %arg13[%c9_104, %c0_105] {strides = array<i32: 4, 1>} : memref<40x128xf32, #tpu.memory_space<vmem>>, vector<8x128xf32>
    %137 = arith.truncf %136 : vector<8x128xf32> to vector<8x128xbf16>
    %c1408 = arith.constant 1408 : index
    %c0_106 = arith.constant 0 : index
    %138 = vector.load %arg5[%c1408, %c0_106] : memref<2688x128xbf16, #tpu.memory_space<vmem>>, vector<128x128xbf16>
    %cst_107 = arith.constant dense<0.000000e+00> : vector<8x128xf32>
    %139 = tpu.matmul %137, %138, %cst_107 {dimension_numbers = #tpu.dot_dimension_numbers<[1], [0], [0], [1], [0, 0, 1, 1], [], []>} : vector<8x128xbf16>, vector<128x128xbf16>, vector<8x128xf32> -> vector<8x128xf32>
    %140 = arith.addf %135, %139 : vector<8x128xf32>
    %c10_108 = arith.constant 10 : index
    %c0_109 = arith.constant 0 : index
    %141 = tpu.strided_load %arg13[%c10_108, %c0_109] {strides = array<i32: 4, 1>} : memref<40x128xf32, #tpu.memory_space<vmem>>, vector<8x128xf32>
    %142 = arith.truncf %141 : vector<8x128xf32> to vector<8x128xbf16>
    %c1536 = arith.constant 1536 : index
    %c0_110 = arith.constant 0 : index
    %143 = vector.load %arg5[%c1536, %c0_110] : memref<2688x128xbf16, #tpu.memory_space<vmem>>, vector<128x128xbf16>
    %cst_111 = arith.constant dense<0.000000e+00> : vector<8x128xf32>
    %144 = tpu.matmul %142, %143, %cst_111 {dimension_numbers = #tpu.dot_dimension_numbers<[1], [0], [0], [1], [0, 0, 1, 1], [], []>} : vector<8x128xbf16>, vector<128x128xbf16>, vector<8x128xf32> -> vector<8x128xf32>
    %145 = arith.addf %140, %144 : vector<8x128xf32>
    %c11_112 = arith.constant 11 : index
    %c0_113 = arith.constant 0 : index
    %146 = tpu.strided_load %arg13[%c11_112, %c0_113] {strides = array<i32: 4, 1>} : memref<40x128xf32, #tpu.memory_space<vmem>>, vector<8x128xf32>
    %147 = arith.truncf %146 : vector<8x128xf32> to vector<8x128xbf16>
    %c1664 = arith.constant 1664 : index
    %c0_114 = arith.constant 0 : index
    %148 = vector.load %arg5[%c1664, %c0_114] : memref<2688x128xbf16, #tpu.memory_space<vmem>>, vector<128x128xbf16>
    %cst_115 = arith.constant dense<0.000000e+00> : vector<8x128xf32>
    %149 = tpu.matmul %147, %148, %cst_115 {dimension_numbers = #tpu.dot_dimension_numbers<[1], [0], [0], [1], [0, 0, 1, 1], [], []>} : vector<8x128xbf16>, vector<128x128xbf16>, vector<8x128xf32> -> vector<8x128xf32>
    %150 = arith.addf %145, %149 : vector<8x128xf32>
    %c1_116 = arith.constant 1 : index
    %c0_117 = arith.constant 0 : index
    %c0_118 = arith.constant 0 : index
    %151 = vector.load %arg6[%c1_116, %c0_117, %c0_118] : memref<3x1x128xf32, #tpu.memory_space<vmem>>, vector<1x1x128xf32>
    %152 = vector.shape_cast %151 : vector<1x1x128xf32> to vector<1x128xf32>
    %153 = vector.broadcast %152 : vector<1x128xf32> to vector<8x128xf32>
    %154 = arith.addf %150, %153 : vector<8x128xf32>
    %cst_119 = arith.constant 0.000000e+00 : f32
    %155 = vector.broadcast %cst_119 : f32 to vector<8x128xf32>
    %156 = arith.maximumf %154, %155 : vector<8x128xf32>
    %157 = vector.shape_cast %24 : vector<1x128xi1> to vector<1x128xi1>
    %158 = vector.broadcast %157 : vector<1x128xi1> to vector<8x128xi1>
    %159 = arith.select %158, %156, %154 : vector<8x128xi1>, vector<8x128xf32>
    %cst_120 = arith.constant dense<0.000000e+00> : vector<128xf32>
    %160 = vector.multi_reduction <add>, %159, %cst_120 [0] : vector<8x128xf32> to vector<128xf32>
    %161 = vector.shape_cast %160 : vector<128xf32> to vector<1x128xf32>
    %cst_121 = arith.constant 1.250000e-01 : f32
    %162 = vector.broadcast %cst_121 : f32 to vector<1x128xf32>
    %163 = arith.mulf %161, %162 : vector<1x128xf32>
    %cst_122 = arith.constant dense<0xFF800000> : vector<128xf32>
    %164 = vector.multi_reduction <maximumf>, %159, %cst_122 [0] : vector<8x128xf32> to vector<128xf32>
    %165 = vector.shape_cast %164 : vector<128xf32> to vector<1x128xf32>
    %c1_123 = arith.constant 1 : index
    %c0_124 = arith.constant 0 : index
    %c0_125 = arith.constant 0 : index
    %166 = vector.load %arg7[%c1_123, %c0_124, %c0_125] : memref<3x128x8xf32, #tpu.memory_space<vmem>>, vector<1x128x8xf32>
    %167 = vector.shape_cast %166 : vector<1x128x8xf32> to vector<128x8xf32>
    %cst_126 = arith.constant dense<0.000000e+00> : vector<1x8xf32>
    %168 = tpu.matmul %163, %167, %cst_126 {dimension_numbers = #tpu.dot_dimension_numbers<[1], [0], [0], [1], [0, 0, 1, 1], [], []>} : vector<1x128xf32>, vector<128x8xf32>, vector<1x8xf32> -> vector<1x8xf32>
    %c1_127 = arith.constant 1 : index
    %c0_128 = arith.constant 0 : index
    %c0_129 = arith.constant 0 : index
    %169 = vector.load %arg8[%c1_127, %c0_128, %c0_129] : memref<3x1x8xf32, #tpu.memory_space<vmem>>, vector<1x1x8xf32>
    %170 = vector.shape_cast %169 : vector<1x1x8xf32> to vector<1x8xf32>
    %171 = arith.addf %168, %170 : vector<1x8xf32>
    %cst_130 = arith.constant 0.000000e+00 : f32
    %172 = vector.broadcast %cst_130 : f32 to vector<1x8xf32>
    %173 = arith.maximumf %171, %172 : vector<1x8xf32>
    %c1_131 = arith.constant 1 : index
    %c0_132 = arith.constant 0 : index
    %c0_133 = arith.constant 0 : index
    %174 = vector.load %arg9[%c1_131, %c0_132, %c0_133] : memref<3x8x128xf32, #tpu.memory_space<vmem>>, vector<1x8x128xf32>
    %175 = vector.shape_cast %174 : vector<1x8x128xf32> to vector<8x128xf32>
    %cst_134 = arith.constant dense<0.000000e+00> : vector<1x128xf32>
    %176 = tpu.matmul %173, %175, %cst_134 {dimension_numbers = #tpu.dot_dimension_numbers<[1], [0], [0], [1], [0, 0, 1, 1], [], []>} : vector<1x8xf32>, vector<8x128xf32>, vector<1x128xf32> -> vector<1x128xf32>
    %c1_135 = arith.constant 1 : index
    %c0_136 = arith.constant 0 : index
    %c0_137 = arith.constant 0 : index
    %177 = vector.load %arg10[%c1_135, %c0_136, %c0_137] : memref<3x1x128xf32, #tpu.memory_space<vmem>>, vector<1x1x128xf32>
    %178 = vector.shape_cast %177 : vector<1x1x128xf32> to vector<1x128xf32>
    %179 = arith.addf %176, %178 : vector<1x128xf32>
    %c1_138 = arith.constant 1 : index
    %c0_139 = arith.constant 0 : index
    %c0_140 = arith.constant 0 : index
    %180 = vector.load %arg7[%c1_138, %c0_139, %c0_140] : memref<3x128x8xf32, #tpu.memory_space<vmem>>, vector<1x128x8xf32>
    %181 = vector.shape_cast %180 : vector<1x128x8xf32> to vector<128x8xf32>
    %cst_141 = arith.constant dense<0.000000e+00> : vector<1x8xf32>
    %182 = tpu.matmul %165, %181, %cst_141 {dimension_numbers = #tpu.dot_dimension_numbers<[1], [0], [0], [1], [0, 0, 1, 1], [], []>} : vector<1x128xf32>, vector<128x8xf32>, vector<1x8xf32> -> vector<1x8xf32>
    %c1_142 = arith.constant 1 : index
    %c0_143 = arith.constant 0 : index
    %c0_144 = arith.constant 0 : index
    %183 = vector.load %arg8[%c1_142, %c0_143, %c0_144] : memref<3x1x8xf32, #tpu.memory_space<vmem>>, vector<1x1x8xf32>
    %184 = vector.shape_cast %183 : vector<1x1x8xf32> to vector<1x8xf32>
    %185 = arith.addf %182, %184 : vector<1x8xf32>
    %cst_145 = arith.constant 0.000000e+00 : f32
    %186 = vector.broadcast %cst_145 : f32 to vector<1x8xf32>
    %187 = arith.maximumf %185, %186 : vector<1x8xf32>
    %c1_146 = arith.constant 1 : index
    %c0_147 = arith.constant 0 : index
    %c0_148 = arith.constant 0 : index
    %188 = vector.load %arg9[%c1_146, %c0_147, %c0_148] : memref<3x8x128xf32, #tpu.memory_space<vmem>>, vector<1x8x128xf32>
    %189 = vector.shape_cast %188 : vector<1x8x128xf32> to vector<8x128xf32>
    %cst_149 = arith.constant dense<0.000000e+00> : vector<1x128xf32>
    %190 = tpu.matmul %187, %189, %cst_149 {dimension_numbers = #tpu.dot_dimension_numbers<[1], [0], [0], [1], [0, 0, 1, 1], [], []>} : vector<1x8xf32>, vector<8x128xf32>, vector<1x128xf32> -> vector<1x128xf32>
    %c1_150 = arith.constant 1 : index
    %c0_151 = arith.constant 0 : index
    %c0_152 = arith.constant 0 : index
    %191 = vector.load %arg10[%c1_150, %c0_151, %c0_152] : memref<3x1x128xf32, #tpu.memory_space<vmem>>, vector<1x1x128xf32>
    %192 = vector.shape_cast %191 : vector<1x1x128xf32> to vector<1x128xf32>
    %193 = arith.addf %190, %192 : vector<1x128xf32>
    %194 = arith.addf %179, %193 : vector<1x128xf32>
    %195 = arith.negf %194 : vector<1x128xf32>
    %196 = math.exp %195 : vector<1x128xf32>
    %cst_153 = arith.constant 1.000000e+00 : f32
    %197 = vector.broadcast %cst_153 : f32 to vector<1x128xf32>
    %198 = arith.addf %197, %196 : vector<1x128xf32>
    %199 = arith.divf %197, %198 : vector<1x128xf32>
    %cst_154 = arith.constant 1.000000e+00 : f32
    %200 = vector.broadcast %cst_154 : f32 to vector<1x128xf32>
    %201 = arith.select %24, %199, %200 : vector<1x128xi1>, vector<1x128xf32>
    %202 = vector.broadcast %201 : vector<1x128xf32> to vector<8x128xf32>
    %203 = arith.mulf %159, %202 : vector<8x128xf32>
    %c8_155 = arith.constant 8 : index
    %c0_156 = arith.constant 0 : index
    %204 = vector.load %arg12[%c8_155, %c0_156] : memref<136x128xf32, #tpu.memory_space<vmem>>, vector<8x128xf32>
    tpu.vector_store %arg12[%c8_155, %c0_156], %203 {strides = array<i32>} : memref<136x128xf32, #tpu.memory_space<vmem>>, vector<8x128xf32>,
    %cst_157 = arith.constant 0.000000e+00 : f32
    %205 = vector.broadcast %cst_157 : f32 to vector<2x128xf32>
    %c5_158 = arith.constant 5 : index
    %c0_159 = arith.constant 0 : index
    %206 = tpu.strided_load %arg12[%c5_158, %c0_159] {strides = array<i32: 4, 1>} : memref<136x128xf32, #tpu.memory_space<vmem>>, vector<2x128xf32>
    %207 = arith.truncf %206 : vector<2x128xf32> to vector<2x128xbf16>
    %c1792 = arith.constant 1792 : index
    %c0_160 = arith.constant 0 : index
    %208 = vector.load %arg5[%c1792, %c0_160] : memref<2688x128xbf16, #tpu.memory_space<vmem>>, vector<128x128xbf16>
    %cst_161 = arith.constant dense<0.000000e+00> : vector<2x128xf32>
    %209 = tpu.matmul %207, %208, %cst_161 {dimension_numbers = #tpu.dot_dimension_numbers<[1], [0], [0], [1], [0, 0, 1, 1], [], []>} : vector<2x128xbf16>, vector<128x128xbf16>, vector<2x128xf32> -> vector<2x128xf32>
    %210 = arith.addf %205, %209 : vector<2x128xf32>
    %c6_162 = arith.constant 6 : index
    %c0_163 = arith.constant 0 : index
    %211 = tpu.strided_load %arg12[%c6_162, %c0_163] {strides = array<i32: 4, 1>} : memref<136x128xf32, #tpu.memory_space<vmem>>, vector<2x128xf32>
    %212 = arith.truncf %211 : vector<2x128xf32> to vector<2x128xbf16>
    %c1920 = arith.constant 1920 : index
    %c0_164 = arith.constant 0 : index
    %213 = vector.load %arg5[%c1920, %c0_164] : memref<2688x128xbf16, #tpu.memory_space<vmem>>, vector<128x128xbf16>
    %cst_165 = arith.constant dense<0.000000e+00> : vector<2x128xf32>
    %214 = tpu.matmul %212, %213, %cst_165 {dimension_numbers = #tpu.dot_dimension_numbers<[1], [0], [0], [1], [0, 0, 1, 1], [], []>} : vector<2x128xbf16>, vector<128x128xbf16>, vector<2x128xf32> -> vector<2x128xf32>
    %215 = arith.addf %210, %214 : vector<2x128xf32>
    %c7_166 = arith.constant 7 : index
    %c0_167 = arith.constant 0 : index
    %216 = tpu.strided_load %arg12[%c7_166, %c0_167] {strides = array<i32: 4, 1>} : memref<136x128xf32, #tpu.memory_space<vmem>>, vector<2x128xf32>
    %217 = arith.truncf %216 : vector<2x128xf32> to vector<2x128xbf16>
    %c2048 = arith.constant 2048 : index
    %c0_168 = arith.constant 0 : index
    %218 = vector.load %arg5[%c2048, %c0_168] : memref<2688x128xbf16, #tpu.memory_space<vmem>>, vector<128x128xbf16>
    %cst_169 = arith.constant dense<0.000000e+00> : vector<2x128xf32>
    %219 = tpu.matmul %217, %218, %cst_169 {dimension_numbers = #tpu.dot_dimension_numbers<[1], [0], [0], [1], [0, 0, 1, 1], [], []>} : vector<2x128xbf16>, vector<128x128xbf16>, vector<2x128xf32> -> vector<2x128xf32>
    %220 = arith.addf %215, %219 : vector<2x128xf32>
    %c8_170 = arith.constant 8 : index
    %c0_171 = arith.constant 0 : index
    %221 = tpu.strided_load %arg12[%c8_170, %c0_171] {strides = array<i32: 4, 1>} : memref<136x128xf32, #tpu.memory_space<vmem>>, vector<2x128xf32>
    %222 = arith.truncf %221 : vector<2x128xf32> to vector<2x128xbf16>
    %c2176 = arith.constant 2176 : index
    %c0_172 = arith.constant 0 : index
    %223 = vector.load %arg5[%c2176, %c0_172] : memref<2688x128xbf16, #tpu.memory_space<vmem>>, vector<128x128xbf16>
    %cst_173 = arith.constant dense<0.000000e+00> : vector<2x128xf32>
    %224 = tpu.matmul %222, %223, %cst_173 {dimension_numbers = #tpu.dot_dimension_numbers<[1], [0], [0], [1], [0, 0, 1, 1], [], []>} : vector<2x128xbf16>, vector<128x128xbf16>, vector<2x128xf32> -> vector<2x128xf32>
    %225 = arith.addf %220, %224 : vector<2x128xf32>
    %c9_174 = arith.constant 9 : index
    %c0_175 = arith.constant 0 : index
    %226 = tpu.strided_load %arg12[%c9_174, %c0_175] {strides = array<i32: 4, 1>} : memref<136x128xf32, #tpu.memory_space<vmem>>, vector<2x128xf32>
    %227 = arith.truncf %226 : vector<2x128xf32> to vector<2x128xbf16>
    %c2304 = arith.constant 2304 : index
    %c0_176 = arith.constant 0 : index
    %228 = vector.load %arg5[%c2304, %c0_176] : memref<2688x128xbf16, #tpu.memory_space<vmem>>, vector<128x128xbf16>
    %cst_177 = arith.constant dense<0.000000e+00> : vector<2x128xf32>
    %229 = tpu.matmul %227, %228, %cst_177 {dimension_numbers = #tpu.dot_dimension_numbers<[1], [0], [0], [1], [0, 0, 1, 1], [], []>} : vector<2x128xbf16>, vector<128x128xbf16>, vector<2x128xf32> -> vector<2x128xf32>
    %230 = arith.addf %225, %229 : vector<2x128xf32>
    %c10_178 = arith.constant 10 : index
    %c0_179 = arith.constant 0 : index
    %231 = tpu.strided_load %arg12[%c10_178, %c0_179] {strides = array<i32: 4, 1>} : memref<136x128xf32, #tpu.memory_space<vmem>>, vector<2x128xf32>
    %232 = arith.truncf %231 : vector<2x128xf32> to vector<2x128xbf16>
    %c2432 = arith.constant 2432 : index
    %c0_180 = arith.constant 0 : index
    %233 = vector.load %arg5[%c2432, %c0_180] : memref<2688x128xbf16, #tpu.memory_space<vmem>>, vector<128x128xbf16>
    %cst_181 = arith.constant dense<0.000000e+00> : vector<2x128xf32>
    %234 = tpu.matmul %232, %233, %cst_181 {dimension_numbers = #tpu.dot_dimension_numbers<[1], [0], [0], [1], [0, 0, 1, 1], [], []>} : vector<2x128xbf16>, vector<128x128xbf16>, vector<2x128xf32> -> vector<2x128xf32>
    %235 = arith.addf %230, %234 : vector<2x128xf32>
    %c11_182 = arith.constant 11 : index
    %c0_183 = arith.constant 0 : index
    %236 = tpu.strided_load %arg12[%c11_182, %c0_183] {strides = array<i32: 4, 1>} : memref<136x128xf32, #tpu.memory_space<vmem>>, vector<2x128xf32>
    %237 = arith.truncf %236 : vector<2x128xf32> to vector<2x128xbf16>
    %c2560 = arith.constant 2560 : index
    %c0_184 = arith.constant 0 : index
    %238 = vector.load %arg5[%c2560, %c0_184] : memref<2688x128xbf16, #tpu.memory_space<vmem>>, vector<128x128xbf16>
    %cst_185 = arith.constant dense<0.000000e+00> : vector<2x128xf32>
    %239 = tpu.matmul %237, %238, %cst_185 {dimension_numbers = #tpu.dot_dimension_numbers<[1], [0], [0], [1], [0, 0, 1, 1], [], []>} : vector<2x128xbf16>, vector<128x128xbf16>, vector<2x128xf32> -> vector<2x128xf32>
    %240 = arith.addf %235, %239 : vector<2x128xf32>
    %c2 = arith.constant 2 : index
    %c0_186 = arith.constant 0 : index
    %c0_187 = arith.constant 0 : index
    %241 = vector.load %arg6[%c2, %c0_186, %c0_187] : memref<3x1x128xf32, #tpu.memory_space<vmem>>, vector<1x1x128xf32>
    %242 = vector.shape_cast %241 : vector<1x1x128xf32> to vector<1x128xf32>
    %243 = vector.broadcast %242 : vector<1x128xf32> to vector<2x128xf32>
    %244 = arith.addf %240, %243 : vector<2x128xf32>
    %cst_188 = arith.constant 0.000000e+00 : f32
    %245 = vector.broadcast %cst_188 : f32 to vector<2x128xf32>
    %246 = arith.maximumf %244, %245 : vector<2x128xf32>
    %247 = vector.shape_cast %24 : vector<1x128xi1> to vector<1x128xi1>
    %248 = vector.broadcast %247 : vector<1x128xi1> to vector<2x128xi1>
    %249 = arith.select %248, %246, %244 : vector<2x128xi1>, vector<2x128xf32>
    %cst_189 = arith.constant dense<0.000000e+00> : vector<128xf32>
    %250 = vector.multi_reduction <add>, %249, %cst_189 [0] : vector<2x128xf32> to vector<128xf32>
    %251 = vector.shape_cast %250 : vector<128xf32> to vector<1x128xf32>
    %cst_190 = arith.constant 5.000000e-01 : f32
    %252 = vector.broadcast %cst_190 : f32 to vector<1x128xf32>
    %253 = arith.mulf %251, %252 : vector<1x128xf32>
    %cst_191 = arith.constant dense<0xFF800000> : vector<128xf32>
    %254 = vector.multi_reduction <maximumf>, %249, %cst_191 [0] : vector<2x128xf32> to vector<128xf32>
    %255 = vector.shape_cast %254 : vector<128xf32> to vector<1x128xf32>
    %c2_192 = arith.constant 2 : index
    %c0_193 = arith.constant 0 : index
    %c0_194 = arith.constant 0 : index
    %256 = vector.load %arg7[%c2_192, %c0_193, %c0_194] : memref<3x128x8xf32, #tpu.memory_space<vmem>>, vector<1x128x8xf32>
    %257 = vector.shape_cast %256 : vector<1x128x8xf32> to vector<128x8xf32>
    %cst_195 = arith.constant dense<0.000000e+00> : vector<1x8xf32>
    %258 = tpu.matmul %253, %257, %cst_195 {dimension_numbers = #tpu.dot_dimension_numbers<[1], [0], [0], [1], [0, 0, 1, 1], [], []>} : vector<1x128xf32>, vector<128x8xf32>, vector<1x8xf32> -> vector<1x8xf32>
    %c2_196 = arith.constant 2 : index
    %c0_197 = arith.constant 0 : index
    %c0_198 = arith.constant 0 : index
    %259 = vector.load %arg8[%c2_196, %c0_197, %c0_198] : memref<3x1x8xf32, #tpu.memory_space<vmem>>, vector<1x1x8xf32>
    %260 = vector.shape_cast %259 : vector<1x1x8xf32> to vector<1x8xf32>
    %261 = arith.addf %258, %260 : vector<1x8xf32>
    %cst_199 = arith.constant 0.000000e+00 : f32
    %262 = vector.broadcast %cst_199 : f32 to vector<1x8xf32>
    %263 = arith.maximumf %261, %262 : vector<1x8xf32>
    %c2_200 = arith.constant 2 : index
    %c0_201 = arith.constant 0 : index
    %c0_202 = arith.constant 0 : index
    %264 = vector.load %arg9[%c2_200, %c0_201, %c0_202] : memref<3x8x128xf32, #tpu.memory_space<vmem>>, vector<1x8x128xf32>
    %265 = vector.shape_cast %264 : vector<1x8x128xf32> to vector<8x128xf32>
    %cst_203 = arith.constant dense<0.000000e+00> : vector<1x128xf32>
    %266 = tpu.matmul %263, %265, %cst_203 {dimension_numbers = #tpu.dot_dimension_numbers<[1], [0], [0], [1], [0, 0, 1, 1], [], []>} : vector<1x8xf32>, vector<8x128xf32>, vector<1x128xf32> -> vector<1x128xf32>
    %c2_204 = arith.constant 2 : index
    %c0_205 = arith.constant 0 : index
    %c0_206 = arith.constant 0 : index
    %267 = vector.load %arg10[%c2_204, %c0_205, %c0_206] : memref<3x1x128xf32, #tpu.memory_space<vmem>>, vector<1x1x128xf32>
    %268 = vector.shape_cast %267 : vector<1x1x128xf32> to vector<1x128xf32>
    %269 = arith.addf %266, %268 : vector<1x128xf32>
    %c2_207 = arith.constant 2 : index
    %c0_208 = arith.constant 0 : index
    %c0_209 = arith.constant 0 : index
    %270 = vector.load %arg7[%c2_207, %c0_208, %c0_209] : memref<3x128x8xf32, #tpu.memory_space<vmem>>, vector<1x128x8xf32>
    %271 = vector.shape_cast %270 : vector<1x128x8xf32> to vector<128x8xf32>
    %cst_210 = arith.constant dense<0.000000e+00> : vector<1x8xf32>
    %272 = tpu.matmul %255, %271, %cst_210 {dimension_numbers = #tpu.dot_dimension_numbers<[1], [0], [0], [1], [0, 0, 1, 1], [], []>} : vector<1x128xf32>, vector<128x8xf32>, vector<1x8xf32> -> vector<1x8xf32>
    %c2_211 = arith.constant 2 : index
    %c0_212 = arith.constant 0 : index
    %c0_213 = arith.constant 0 : index
    %273 = vector.load %arg8[%c2_211, %c0_212, %c0_213] : memref<3x1x8xf32, #tpu.memory_space<vmem>>, vector<1x1x8xf32>
    %274 = vector.shape_cast %273 : vector<1x1x8xf32> to vector<1x8xf32>
    %275 = arith.addf %272, %274 : vector<1x8xf32>
    %cst_214 = arith.constant 0.000000e+00 : f32
    %276 = vector.broadcast %cst_214 : f32 to vector<1x8xf32>
    %277 = arith.maximumf %275, %276 : vector<1x8xf32>
    %c2_215 = arith.constant 2 : index
    %c0_216 = arith.constant 0 : index
    %c0_217 = arith.constant 0 : index
    %278 = vector.load %arg9[%c2_215, %c0_216, %c0_217] : memref<3x8x128xf32, #tpu.memory_space<vmem>>, vector<1x8x128xf32>
    %279 = vector.shape_cast %278 : vector<1x8x128xf32> to vector<8x128xf32>
    %cst_218 = arith.constant dense<0.000000e+00> : vector<1x128xf32>
    %280 = tpu.matmul %277, %279, %cst_218 {dimension_numbers = #tpu.dot_dimension_numbers<[1], [0], [0], [1], [0, 0, 1, 1], [], []>} : vector<1x8xf32>, vector<8x128xf32>, vector<1x128xf32> -> vector<1x128xf32>
    %c2_219 = arith.constant 2 : index
    %c0_220 = arith.constant 0 : index
    %c0_221 = arith.constant 0 : index
    %281 = vector.load %arg10[%c2_219, %c0_220, %c0_221] : memref<3x1x128xf32, #tpu.memory_space<vmem>>, vector<1x1x128xf32>
    %282 = vector.shape_cast %281 : vector<1x1x128xf32> to vector<1x128xf32>
    %283 = arith.addf %280, %282 : vector<1x128xf32>
    %284 = arith.addf %269, %283 : vector<1x128xf32>
    %285 = arith.negf %284 : vector<1x128xf32>
    %286 = math.exp %285 : vector<1x128xf32>
    %cst_222 = arith.constant 1.000000e+00 : f32
    %287 = vector.broadcast %cst_222 : f32 to vector<1x128xf32>
    %288 = arith.addf %287, %286 : vector<1x128xf32>
    %289 = arith.divf %287, %288 : vector<1x128xf32>
    %cst_223 = arith.constant 1.000000e+00 : f32
    %290 = vector.broadcast %cst_223 : f32 to vector<1x128xf32>
    %291 = arith.select %24, %289, %290 : vector<1x128xi1>, vector<1x128xf32>
    %292 = vector.broadcast %291 : vector<1x128xf32> to vector<2x128xf32>
    %293 = arith.mulf %249, %292 : vector<2x128xf32>
    %294 = tpu.transpose %293, [1, 0] : vector<2x128xf32> -> vector<128x2xf32>
    %295 = vector.shape_cast %294 : vector<128x2xf32> to vector<1x128x2xf32>
    %c0_224 = arith.constant 0 : index
    %c0_225 = arith.constant 0 : index
    %c0_226 = arith.constant 0 : index
    %296 = vector.load %arg11[%c0_224, %c0_225, %c0_226] : memref<1x128x2xf32, #tpu.memory_space<vmem>>, vector<1x128x2xf32>
    tpu.vector_store %arg11[%c0_224, %c0_225, %c0_226], %295 {strides = array<i32>} : memref<1x128x2xf32, #tpu.memory_space<vmem>>, vector<1x128x2xf32>,
    return
  }
  func.func @transform_0(%arg0: i32) -> (i32, i32, i32, i32) {
    %c0_i32 = arith.constant 0 : i32
    %c0_i32_0 = arith.constant 0 : i32
    %c0_i32_1 = arith.constant 0 : i32
    %c0_i32_2 = arith.constant 0 : i32
    return %arg0, %c0_i32, %c0_i32_0, %c0_i32_1 : i32, i32, i32, i32
  }
  func.func @transform_1(%arg0: i32) -> (i32, i32) {
    %c0_i32 = arith.constant 0 : i32
    %c0_i32_0 = arith.constant 0 : i32
    %c0_i32_1 = arith.constant 0 : i32
    return %c0_i32, %c0_i32_0 : i32, i32
  }
  func.func @transform_2(%arg0: i32) -> (i32, i32) {
    %c0_i32 = arith.constant 0 : i32
    %c0_i32_0 = arith.constant 0 : i32
    %c0_i32_1 = arith.constant 0 : i32
    return %c0_i32, %c0_i32_0 : i32, i32
  }
  func.func @transform_3(%arg0: i32) -> (i32, i32) {
    %c0_i32 = arith.constant 0 : i32
    %c0_i32_0 = arith.constant 0 : i32
    %c0_i32_1 = arith.constant 0 : i32
    return %c0_i32, %c0_i32_0 : i32, i32
  }
  func.func @transform_4(%arg0: i32) -> (i32, i32) {
    %c0_i32 = arith.constant 0 : i32
    %c0_i32_0 = arith.constant 0 : i32
    %c0_i32_1 = arith.constant 0 : i32
    return %c0_i32, %c0_i32_0 : i32, i32
  }
  func.func @transform_5(%arg0: i32) -> (i32, i32, i32) {
    %c0_i32 = arith.constant 0 : i32
    %c0_i32_0 = arith.constant 0 : i32
    %c0_i32_1 = arith.constant 0 : i32
    %c0_i32_2 = arith.constant 0 : i32
    return %c0_i32, %c0_i32_0, %c0_i32_1 : i32, i32, i32
  }
  func.func @transform_6(%arg0: i32) -> (i32, i32, i32) {
    %c0_i32 = arith.constant 0 : i32
    %c0_i32_0 = arith.constant 0 : i32
    %c0_i32_1 = arith.constant 0 : i32
    %c0_i32_2 = arith.constant 0 : i32
    return %c0_i32, %c0_i32_0, %c0_i32_1 : i32, i32, i32
  }
  func.func @transform_7(%arg0: i32) -> (i32, i32, i32) {
    %c0_i32 = arith.constant 0 : i32
    %c0_i32_0 = arith.constant 0 : i32
    %c0_i32_1 = arith.constant 0 : i32
    %c0_i32_2 = arith.constant 0 : i32
    return %c0_i32, %c0_i32_0, %c0_i32_1 : i32, i32, i32
  }
  func.func @transform_8(%arg0: i32) -> (i32, i32, i32) {
    %c0_i32 = arith.constant 0 : i32
    %c0_i32_0 = arith.constant 0 : i32
    %c0_i32_1 = arith.constant 0 : i32
    %c0_i32_2 = arith.constant 0 : i32
    return %c0_i32, %c0_i32_0, %c0_i32_1 : i32, i32, i32
  }
  func.func @transform_9(%arg0: i32) -> (i32, i32, i32) {
    %c0_i32 = arith.constant 0 : i32
    %c0_i32_0 = arith.constant 0 : i32
    %c0_i32_1 = arith.constant 0 : i32
    %c0_i32_2 = arith.constant 0 : i32
    return %c0_i32, %c0_i32_0, %c0_i32_1 : i32, i32, i32
  }
  func.func @transform_10(%arg0: i32) -> (i32, i32, i32) {
    %c0_i32 = arith.constant 0 : i32
    %c0_i32_0 = arith.constant 0 : i32
    %c0_i32_1 = arith.constant 0 : i32
    return %arg0, %c0_i32, %c0_i32_0 : i32, i32, i32
  }
}

</mosaic_0001>

<llo_original>
// kernel: feature_encoder_fwd.1
$region0: #{feature_encoder_fwd.1}
  #allocation0 [shape = 'u32[]', space=smem, size = 0x4, offset = 0x4, fixed_abs, tag = 'smem constant byte address 0x4 - core index']
  #allocation1 [shape = 'u32[144,128]{1,0:T(1,128)}', space=vmem, size = 0x12000, scoped, tag = 'internal scratch']
  #allocation2 [shape = 'f32[136,128]{1,0:T(8,128)}', space=vmem, size = 0x11000, scoped, tag = 'scratch operand']
  #allocation3 [shape = 'f32[40,128]{1,0:T(8,128)}', space=vmem, size = 0x5000, scoped, tag = 'scratch operand']
  %s0 = inlined_call_operand.vmem [shape: f32[2,2,128,8], index: 0, kind: input, shape index: {}]
  %s1 = inlined_call_operand.vmem [shape: f32[8,128], index: 1, kind: input, shape index: {}]
  %s2 = inlined_call_operand.vmem [shape: f32[8,128], index: 2, kind: input, shape index: {}]
  %s3 = inlined_call_operand.vmem [shape: f32[1,128], index: 3, kind: input, shape index: {}]
  %s4 = inlined_call_operand.hbm [shape: bf16[2688,128], index: 4, kind: input, shape index: {}]
  %s5 = inlined_call_operand.vmem [shape: f32[3,1,128], index: 5, kind: input, shape index: {}]
  %s6 = inlined_call_operand.vmem [shape: f32[3,128,8], index: 6, kind: input, shape index: {}]
  %s7 = inlined_call_operand.vmem [shape: f32[3,1,8], index: 7, kind: input, shape index: {}]
  %s8 = inlined_call_operand.vmem [shape: f32[3,8,128], index: 8, kind: input, shape index: {}]
  %s9 = inlined_call_operand.vmem [shape: f32[3,1,128], index: 9, kind: input, shape index: {}]
  %s10 = inlined_call_operand.vmem [shape: f32[2,128,2], index: 10, kind: output, shape index: {}]
  %s11 = sld [smem:[#allocation0]]
  $region77: #{feature_encoder_fwd.1} parent=0
    _
  %s13 = ssub.s32 1, %s11
  %s14 = scalar_select 0, %s13, %s11
  $region1: #{feature_encoder_fwd.1} parent=0
    #allocation4 [shape = 'u8[688128]{0}', space=vmem, size = 0xa8000, scoped, tag = 'input window, operand 4, single buffered']
    #allocation5 [shape = 's32[2]{0}', space=sflag, size = 0x8, scoped, tag = 'scoped memory for feature_encoder_fwd.1']
    %15 = vsyncpa [#allocation5], 0
    loop: start=0, step=1, limit=4
    $region2: #{feature_encoder_fwd.1} parent=1 // loop_pre_header
      _
    $region3: #{feature_encoder_fwd.1} parent=1 // loop_header
      %s17 = sphi 0, %s21
      %p18 = scmp.ge.s32.totalorder %s17, 4
      %s27 = sphi 0, %s29
      %s30 = sphi 0, %s27
      %s31 = sphi 0, %s30
      %s47 = sphi 0, %s31
      %s51 = sphi 0, %s51
      %s53 = sphi 0, %s51
      %s54 = sphi 0, %s53
      %s68 = sphi 0, %s54
      %s72 = sphi 0, %s72
      %s74 = sphi 0, %s72
      %s75 = sphi 0, %s74
      %s89 = sphi 0, %s75
      %s93 = sphi 0, %s93
      %s95 = sphi 0, %s93
      %s96 = sphi 0, %s95
      %s110 = sphi 0, %s96
      %s114 = sphi 0, %s114
      %s116 = sphi 0, %s114
      %s117 = sphi 0, %s116
      %s131 = sphi 0, %s117
      %s135 = sphi 0, %s135
      %s137 = sphi 0, %s135
      %s138 = sphi 0, %s137
      %s152 = sphi 0, %s138
      %s156 = sphi 0, %s156
      %s158 = sphi 0, %s156
      %s159 = sphi 0, %s158
      %s173 = sphi 0, %s159
      %s177 = sphi 0, %s177
      %s179 = sphi 0, %s177
      %s180 = sphi 0, %s179
      %s194 = sphi 0, %s180
      %s198 = sphi 0, %s198
      %s200 = sphi 0, %s198
      %s201 = sphi 0, %s200
      %s215 = sphi 0, %s201
      %s219 = sphi 0, %s219
      %s221 = sphi 0, %s219
      %s222 = sphi 0, %s221
      %s236 = sphi 0, %s222
      %s242 = sphi 0, %s244
      %s245 = sphi 0, %s242
      %s246 = sphi 0, %s245
      %s262 = sphi 0, %s246
    $region4: #{feature_encoder_fwd.1} parent=1 // loop_header_branch
      %20 = sbr.rel (%p18) target = $region8
    $region5: #{feature_encoder_fwd.1} parent=1 // loop_body
      %s22 = ssub.s32 %s17, 1
      %s23 = ssub.s32 %s17, 2
      %s24 = sadd.s32 %s17, 1
      %s25 = ssub.s32 %s17, %s24
      %p26 = scmp.eq.s32.totalorder %s25, 0
      %s28 = sadd.s32 %s27, 1
      %s29 = scalar_select %p26, %s27, %s28
      %p32 = pneg %p26
      %p33 = scmp.eq.s32.totalorder %s17, 1
      %p34 = por %p32, %p33
      %p35 = scmp.ne.s32.totalorder %s27, %s30
      %p36 = scmp.eq.s32.totalorder %s17, 0
      %p37 = por %p35, %p36
      %p38 = scmp.ne.s32.totalorder %s27, %s30
      %p39 = scmp.eq.s32.totalorder %s22, 1
      %p40 = por %p38, %p39
      %p41 = scmp.ne.s32.totalorder %s30, %s31
      %p42 = scmp.eq.s32.totalorder %s22, 0
      %p43 = por %p41, %p42
      %p44 = scmp.ne.s32.totalorder %s30, %s31
      %p45 = scmp.eq.s32.totalorder %s23, 1
      %p46 = por %p44, %p45
      %p48 = scmp.ne.s32.totalorder %s31, %s47
      %p49 = scmp.eq.s32.totalorder %s23, 0
      %p50 = por %p48, %p49
      %s52 = sadd.s32 %s51, 1
      %p55 = scmp.eq.s32.totalorder %s17, 1
      %p56 = scmp.ne.s32.totalorder %s51, %s53
      %p57 = scmp.eq.s32.totalorder %s17, 0
      %p58 = por %p56, %p57
      %p59 = scmp.ne.s32.totalorder %s51, %s53
      %p60 = scmp.eq.s32.totalorder %s22, 1
      %p61 = por %p59, %p60
      %p62 = scmp.ne.s32.totalorder %s53, %s54
      %p63 = scmp.eq.s32.totalorder %s22, 0
      %p64 = por %p62, %p63
      %p65 = scmp.ne.s32.totalorder %s53, %s54
      %p66 = scmp.eq.s32.totalorder %s23, 1
      %p67 = por %p65, %p66
      %p69 = scmp.ne.s32.totalorder %s54, %s68
      %p70 = scmp.eq.s32.totalorder %s23, 0
      %p71 = por %p69, %p70
      %s73 = sadd.s32 %s72, 1
      %p76 = scmp.eq.s32.totalorder %s17, 1
      %p77 = scmp.ne.s32.totalorder %s72, %s74
      %p78 = scmp.eq.s32.totalorder %s17, 0
      %p79 = por %p77, %p78
      %p80 = scmp.ne.s32.totalorder %s72, %s74
      %p81 = scmp.eq.s32.totalorder %s22, 1
      %p82 = por %p80, %p81
      %p83 = scmp.ne.s32.totalorder %s74, %s75
      %p84 = scmp.eq.s32.totalorder %s22, 0
      %p85 = por %p83, %p84
      %p86 = scmp.ne.s32.totalorder %s74, %s75
      %p87 = scmp.eq.s32.totalorder %s23, 1
      %p88 = por %p86, %p87
      %p90 = scmp.ne.s32.totalorder %s75, %s89
      %p91 = scmp.eq.s32.totalorder %s23, 0
      %p92 = por %p90, %p91
      %s94 = sadd.s32 %s93, 1
      %p97 = scmp.eq.s32.totalorder %s17, 1
      %p98 = scmp.ne.s32.totalorder %s93, %s95
      %p99 = scmp.eq.s32.totalorder %s17, 0
      %p100 = por %p98, %p99
      %p101 = scmp.ne.s32.totalorder %s93, %s95
      %p102 = scmp.eq.s32.totalorder %s22, 1
      %p103 = por %p101, %p102
      %p104 = scmp.ne.s32.totalorder %s95, %s96
      %p105 = scmp.eq.s32.totalorder %s22, 0
      %p106 = por %p104, %p105
      %p107 = scmp.ne.s32.totalorder %s95, %s96
      %p108 = scmp.eq.s32.totalorder %s23, 1
      %p109 = por %p107, %p108
      %p111 = scmp.ne.s32.totalorder %s96, %s110
      %p112 = scmp.eq.s32.totalorder %s23, 0
      %p113 = por %p111, %p112
      %s115 = sadd.s32 %s114, 1
      %p118 = scmp.eq.s32.totalorder %s17, 1
      %p119 = scmp.ne.s32.totalorder %s114, %s116
      %p120 = scmp.eq.s32.totalorder %s17, 0
      %p121 = por %p119, %p120
      %p122 = scmp.ne.s32.totalorder %s114, %s116
      %p123 = scmp.eq.s32.totalorder %s22, 1
      %p124 = por %p122, %p123
      %p125 = scmp.ne.s32.totalorder %s116, %s117
      %p126 = scmp.eq.s32.totalorder %s22, 0
      %p127 = por %p125, %p126
      %p128 = scmp.ne.s32.totalorder %s116, %s117
      %p129 = scmp.eq.s32.totalorder %s23, 1
      %p130 = por %p128, %p129
      %p132 = scmp.ne.s32.totalorder %s117, %s131
      %p133 = scmp.eq.s32.totalorder %s23, 0
      %p134 = por %p132, %p133
      %s136 = sadd.s32 %s135, 1
      %p139 = scmp.eq.s32.totalorder %s17, 1
      %p140 = scmp.ne.s32.totalorder %s135, %s137
      %p141 = scmp.eq.s32.totalorder %s17, 0
      %p142 = por %p140, %p141
      %p143 = scmp.ne.s32.totalorder %s135, %s137
      %p144 = scmp.eq.s32.totalorder %s22, 1
      %p145 = por %p143, %p144
      %p146 = scmp.ne.s32.totalorder %s137, %s138
      %p147 = scmp.eq.s32.totalorder %s22, 0
      %p148 = por %p146, %p147
      %p149 = scmp.ne.s32.totalorder %s137, %s138
      %p150 = scmp.eq.s32.totalorder %s23, 1
      %p151 = por %p149, %p150
      %p153 = scmp.ne.s32.totalorder %s138, %s152
      %p154 = scmp.eq.s32.totalorder %s23, 0
      %p155 = por %p153, %p154
      %s157 = sadd.s32 %s156, 1
      %p160 = scmp.eq.s32.totalorder %s17, 1
      %p161 = scmp.ne.s32.totalorder %s156, %s158
      %p162 = scmp.eq.s32.totalorder %s17, 0
      %p163 = por %p161, %p162
      %p164 = scmp.ne.s32.totalorder %s156, %s158
      %p165 = scmp.eq.s32.totalorder %s22, 1
      %p166 = por %p164, %p165
      %p167 = scmp.ne.s32.totalorder %s158, %s159
      %p168 = scmp.eq.s32.totalorder %s22, 0
      %p169 = por %p167, %p168
      %p170 = scmp.ne.s32.totalorder %s158, %s159
      %p171 = scmp.eq.s32.totalorder %s23, 1
      %p172 = por %p170, %p171
      %p174 = scmp.ne.s32.totalorder %s159, %s173
      %p175 = scmp.eq.s32.totalorder %s23, 0
      %p176 = por %p174, %p175
      %s178 = sadd.s32 %s177, 1
      %p181 = scmp.eq.s32.totalorder %s17, 1
      %p182 = scmp.ne.s32.totalorder %s177, %s179
      %p183 = scmp.eq.s32.totalorder %s17, 0
      %p184 = por %p182, %p183
      %p185 = scmp.ne.s32.totalorder %s177, %s179
      %p186 = scmp.eq.s32.totalorder %s22, 1
      %p187 = por %p185, %p186
      %p188 = scmp.ne.s32.totalorder %s179, %s180
      %p189 = scmp.eq.s32.totalorder %s22, 0
      %p190 = por %p188, %p189
      %p191 = scmp.ne.s32.totalorder %s179, %s180
      %p192 = scmp.eq.s32.totalorder %s23, 1
      %p193 = por %p191, %p192
      %p195 = scmp.ne.s32.totalorder %s180, %s194
      %p196 = scmp.eq.s32.totalorder %s23, 0
      %p197 = por %p195, %p196
      %s199 = sadd.s32 %s198, 1
      %p202 = scmp.eq.s32.totalorder %s17, 1
      %p203 = scmp.ne.s32.totalorder %s198, %s200
      %p204 = scmp.eq.s32.totalorder %s17, 0
      %p205 = por %p203, %p204
      %p206 = scmp.ne.s32.totalorder %s198, %s200
      %p207 = scmp.eq.s32.totalorder %s22, 1
      %p208 = por %p206, %p207
      %p209 = scmp.ne.s32.totalorder %s200, %s201
      %p210 = scmp.eq.s32.totalorder %s22, 0
      %p211 = por %p209, %p210
      %p212 = scmp.ne.s32.totalorder %s200, %s201
      %p213 = scmp.eq.s32.totalorder %s23, 1
      %p214 = por %p212, %p213
      %p216 = scmp.ne.s32.totalorder %s201, %s215
      %p217 = scmp.eq.s32.totalorder %s23, 0
      %p218 = por %p216, %p217
      %s220 = sadd.s32 %s219, 1
      %p223 = scmp.eq.s32.totalorder %s17, 1
      %p224 = scmp.ne.s32.totalorder %s219, %s221
      %p225 = scmp.eq.s32.totalorder %s17, 0
      %p226 = por %p224, %p225
      %p227 = scmp.ne.s32.totalorder %s219, %s221
      %p228 = scmp.eq.s32.totalorder %s22, 1
      %p229 = por %p227, %p228
      %p230 = scmp.ne.s32.totalorder %s221, %s222
      %p231 = scmp.eq.s32.totalorder %s22, 0
      %p232 = por %p230, %p231
      %p233 = scmp.ne.s32.totalorder %s221, %s222
      %p234 = scmp.eq.s32.totalorder %s23, 1
      %p235 = por %p233, %p234
      %p237 = scmp.ne.s32.totalorder %s222, %s236
      %p238 = scmp.eq.s32.totalorder %s23, 0
      %p239 = por %p237, %p238
      %s240 = ssub.s32 %s17, %s24
      %p241 = scmp.eq.s32.totalorder %s240, 0
      %s243 = sadd.s32 %s242, 1
      %s244 = scalar_select %p241, %s242, %s243
      %p247 = pneg %p241
      %p248 = scmp.eq.s32.totalorder %s17, 1
      %p249 = por %p247, %p248
      %p250 = scmp.ne.s32.totalorder %s242, %s245
      %p251 = scmp.eq.s32.totalorder %s17, 0
      %p252 = por %p250, %p251
      %p253 = scmp.ne.s32.totalorder %s242, %s245
      %p254 = scmp.eq.s32.totalorder %s22, 1
      %p255 = por %p253, %p254
      %p256 = scmp.ne.s32.totalorder %s245, %s246
      %p257 = scmp.eq.s32.totalorder %s22, 0
      %p258 = por %p256, %p257
      %p259 = scmp.ne.s32.totalorder %s245, %s246
      %p260 = scmp.eq.s32.totalorder %s23, 1
      %p261 = por %p259, %p260
      %p263 = scmp.ne.s32.totalorder %s246, %s262
      %p264 = scmp.eq.s32.totalorder %s23, 0
      %p265 = por %p263, %p264
      %p266 = scmp.le.s32.totalorder 1, %s17
      %p267 = scmp.lt.s32.totalorder %s17, 3
      %p268 = pnand %p266, %p267
      %p269 = pneg %p268
      // Predicated region
      $region9: #{feature_encoder_fwd.1} parent=5 // pred_check
        _
      $region10: #{feature_encoder_fwd.1} parent=5 // pred_check_branch
        %271 = sbr.rel (%p268) target = $region12
      $region11: #{feature_encoder_fwd.1} parent=5 // pred_region
        %s272 = ssub.s32 %s17, 1
        // Predicated region
        $region13: #{feature_encoder_fwd.1} parent=11 // pred_check
          %p273 = pneg %p64
        $region14: #{feature_encoder_fwd.1} parent=11 // pred_check_branch
          %275 = sbr.rel (%p273) target = $region16
        $region15: #{feature_encoder_fwd.1} parent=11 // pred_region
          _
        $region16: #{feature_encoder_fwd.1} parent=11 // pred_fallthru
          _
        // Predicated region
        $region17: #{feature_encoder_fwd.1} parent=11 // pred_check
          %p276 = pneg %p85
        $region18: #{feature_encoder_fwd.1} parent=11 // pred_check_branch
          %278 = sbr.rel (%p276) target = $region20
        $region19: #{feature_encoder_fwd.1} parent=11 // pred_region
          _
        $region20: #{feature_encoder_fwd.1} parent=11 // pred_fallthru
          _
        // Predicated region
        $region21: #{feature_encoder_fwd.1} parent=11 // pred_check
          %p279 = pneg %p106
        $region22: #{feature_encoder_fwd.1} parent=11 // pred_check_branch
          %281 = sbr.rel (%p279) target = $region24
        $region23: #{feature_encoder_fwd.1} parent=11 // pred_region
          _
        $region24: #{feature_encoder_fwd.1} parent=11 // pred_fallthru
          _
        // Predicated region
        $region25: #{feature_encoder_fwd.1} parent=11 // pred_check
          %p282 = pneg %p127
        $region26: #{feature_encoder_fwd.1} parent=11 // pred_check_branch
          %284 = sbr.rel (%p282) target = $region28
        $region27: #{feature_encoder_fwd.1} parent=11 // pred_region
          %s286 = ssub.s32 21504, 21504
          %287 = vsyncadd [#allocation5], %s286
          %s288 = sshll.u32 [#allocation4], 4
          %s289 = int_to_ptr.vmem [resolvable:$true] %s288
          %294 = dma.hbm_to_vmem [thread:$0]  %s4, 21504, %s289, [#allocation5], 64, 64, 4
        $region28: #{feature_encoder_fwd.1} parent=11 // pred_fallthru
          _
        // Predicated region
        $region29: #{feature_encoder_fwd.1} parent=11 // pred_check
          %p295 = pneg %p148
        $region30: #{feature_encoder_fwd.1} parent=11 // pred_check_branch
          %297 = sbr.rel (%p295) target = $region32
        $region31: #{feature_encoder_fwd.1} parent=11 // pred_region
          _
        $region32: #{feature_encoder_fwd.1} parent=11 // pred_fallthru
          _
        // Predicated region
        $region33: #{feature_encoder_fwd.1} parent=11 // pred_check
          %p298 = pneg %p169
        $region34: #{feature_encoder_fwd.1} parent=11 // pred_check_branch
          %300 = sbr.rel (%p298) target = $region36
        $region35: #{feature_encoder_fwd.1} parent=11 // pred_region
          _
        $region36: #{feature_encoder_fwd.1} parent=11 // pred_fallthru
          _
        // Predicated region
        $region37: #{feature_encoder_fwd.1} parent=11 // pred_check
          %p301 = pneg %p190
        $region38: #{feature_encoder_fwd.1} parent=11 // pred_check_branch
          %303 = sbr.rel (%p301) target = $region40
        $region39: #{feature_encoder_fwd.1} parent=11 // pred_region
          _
        $region40: #{feature_encoder_fwd.1} parent=11 // pred_fallthru
          _
        // Predicated region
        $region41: #{feature_encoder_fwd.1} parent=11 // pred_check
          %p304 = pneg %p211
        $region42: #{feature_encoder_fwd.1} parent=11 // pred_check_branch
          %306 = sbr.rel (%p304) target = $region44
        $region43: #{feature_encoder_fwd.1} parent=11 // pred_region
          _
        $region44: #{feature_encoder_fwd.1} parent=11 // pred_fallthru
          _
        // Predicated region
        $region45: #{feature_encoder_fwd.1} parent=11 // pred_check
          %p307 = pneg %p232
        $region46: #{feature_encoder_fwd.1} parent=11 // pred_check_branch
          %309 = sbr.rel (%p307) target = $region48
        $region47: #{feature_encoder_fwd.1} parent=11 // pred_region
          _
        $region48: #{feature_encoder_fwd.1} parent=11 // pred_fallthru
          _
      $region12: #{feature_encoder_fwd.1} parent=5 // pred_fallthru
        _
      %p310 = scmp.lt.s32.totalorder %s17, 2
      // Predicated region
      $region49: #{feature_encoder_fwd.1} parent=5 // pred_check
        %p311 = pneg %p310
      $region50: #{feature_encoder_fwd.1} parent=5 // pred_check_branch
        %313 = sbr.rel (%p311) target = $region52
      $region51: #{feature_encoder_fwd.1} parent=5 // pred_region
        // Predicated region
        $region53: #{feature_encoder_fwd.1} parent=51 // pred_check
          %p314 = pneg %p37
        $region54: #{feature_encoder_fwd.1} parent=51 // pred_check_branch
          %316 = sbr.rel (%p314) target = $region56
        $region55: #{feature_encoder_fwd.1} parent=51 // pred_region
          %p317 = scmp.lt.s32.totalorder %s17, 1
          %s318 = scalar_select %p317, %s17, 1
          %s319 = smul.addr %s318, 32
          %s320 = smul.addr %s319, 8
          %s321 = scalar_lea.vmem %s0, %s320
        $region56: #{feature_encoder_fwd.1} parent=51 // pred_fallthru
          _
      $region52: #{feature_encoder_fwd.1} parent=5 // pred_fallthru
        _
      %p322 = scmp.le.s32.totalorder 1, %s17
      %p323 = scmp.lt.s32.totalorder %s17, 3
      %p324 = pnand %p322, %p323
      %p325 = pneg %p324
      // Predicated region
      $region57: #{feature_encoder_fwd.1} parent=5 // pred_check
        _
      $region58: #{feature_encoder_fwd.1} parent=5 // pred_check_branch
        %327 = sbr.rel (%p324) target = $region60
      $region59: #{feature_encoder_fwd.1} parent=5 // pred_region
        %s328 = ssub.s32 %s17, 1
        // Predicated region
        $region61: #{feature_encoder_fwd.1} parent=59 // pred_check
          %p329 = pneg %p127
        $region62: #{feature_encoder_fwd.1} parent=59 // pred_check_branch
          %331 = sbr.rel (%p329) target = $region64
        $region63: #{feature_encoder_fwd.1} parent=59 // pred_region
          %332 = dma.done [#allocation5], 21504
        $region64: #{feature_encoder_fwd.1} parent=59 // pred_fallthru
          _
        %p333 = scmp.lt.s32.totalorder %s22, 1
        %s334 = scalar_select %p333, %s22, 1
        %s335 = smul.addr %s334, 32
        %s336 = smul.addr %s335, 8
        %s337 = scalar_lea.vmem %s0, %s336
        %p338 = pneg %p43
        %p339 = pneg %p40
        %p340 = pneg %p64
        %p341 = pneg %p61
        %p342 = pneg %p85
        %p343 = pneg %p82
        %p344 = pneg %p106
        %p345 = pneg %p103
        %p346 = pneg %p127
        %p347 = pneg %p124
        %p348 = pneg %p148
        %p349 = pneg %p145
        %p350 = pneg %p169
        %p351 = pneg %p166
        %p352 = pneg %p190
        %p353 = pneg %p187
        %p354 = pneg %p211
        %p355 = pneg %p208
        %p356 = pneg %p232
        %p357 = pneg %p229
        %p358 = pneg %p258
        %p359 = pneg %p255
        %p360 = scmp.lt.s32.totalorder %s22, 1
        %s361 = scalar_select %p360, %s22, 1
        %s362 = smul.addr %s361, 16
        %s363 = smul.addr %s362, 8
        %s364 = scalar_lea.vmem %s10, %s363
        %p365 = scmp.lt.s32.totalorder %s22, 1
        %s366 = scalar_select %p365, %s22, 1
        %s367 = smul.addr %s366, 32
        %s368 = smul.addr %s367, 8
        %s369 = scalar_lea.vmem %s0, %s368
        %p370 = scmp.lt.s32.totalorder %s22, 1
        %s371 = scalar_select %p370, %s22, 1
        %s372 = smul.addr %s371, 16
        %s373 = smul.addr %s372, 8
        %s374 = scalar_lea.vmem %s10, %s373
        %376 = vst [vmem:[#allocation2] sm:$0xff] 0.0
        %377 = vst [vmem:[#allocation3] sm:$0xff] 0.0
        %v378 = vld [vmem:[%s369] sm:$0xff]
        %v379 = vld [vmem:[%s369 + $0x8] sm:$0xff]
        %v380 = vld [vmem:[%s369 + $0x10] sm:$0xff]
        %v381 = vld [vmem:[%s369 + $0x18] sm:$0xff]
        %v382 = vld [vmem:[%s369 + $0x20] sm:$0xff]
        %v383 = vld [vmem:[%s369 + $0x28] sm:$0xff]
        %v384 = vld [vmem:[%s369 + $0x30] sm:$0xff]
        %v385 = vld [vmem:[%s369 + $0x38] sm:$0xff]
        %v386 = vld [vmem:[%s369 + $0x40] sm:$0xff]
        %v387 = vld [vmem:[%s369 + $0x48] sm:$0xff]
        %v388 = vld [vmem:[%s369 + $0x50] sm:$0xff]
        %v389 = vld [vmem:[%s369 + $0x58] sm:$0xff]
        %v390 = vld [vmem:[%s369 + $0x60] sm:$0xff]
        %v391 = vld [vmem:[%s369 + $0x68] sm:$0xff]
        %v392 = vld [vmem:[%s369 + $0x70] sm:$0xff]
        %v393 = vld [vmem:[%s369 + $0x78] sm:$0xff]
        %s394 = scalar_lea.vmem %s369, 128
        %v395 = vld [vmem:[%s394] sm:$0xff]
        %v396 = vld [vmem:[%s394 + $0x8] sm:$0xff]
        %v397 = vld [vmem:[%s394 + $0x10] sm:$0xff]
        %v398 = vld [vmem:[%s394 + $0x18] sm:$0xff]
        %v399 = vld [vmem:[%s394 + $0x20] sm:$0xff]
        %v400 = vld [vmem:[%s394 + $0x28] sm:$0xff]
        %v401 = vld [vmem:[%s394 + $0x30] sm:$0xff]
        %v402 = vld [vmem:[%s394 + $0x38] sm:$0xff]
        %v403 = vld [vmem:[%s394 + $0x40] sm:$0xff]
        %v404 = vld [vmem:[%s394 + $0x48] sm:$0xff]
        %v405 = vld [vmem:[%s394 + $0x50] sm:$0xff]
        %v406 = vld [vmem:[%s394 + $0x58] sm:$0xff]
        %v407 = vld [vmem:[%s394 + $0x60] sm:$0xff]
        %v408 = vld [vmem:[%s394 + $0x68] sm:$0xff]
        %v409 = vld [vmem:[%s394 + $0x70] sm:$0xff]
        %v410 = vld [vmem:[%s394 + $0x78] sm:$0xff]
        %v411 = vld [vmem:[%s1] sm:$0xff]
        %v412 = vld [vmem:[%s2] sm:$0xff]
        %vm413 = vcmask 64512
        %v415 = vsel %vm413, %v395, 0
        %v418 = vsel %vm413, %v396, 0
        %v421 = vsel %vm413, %v397, 0
        %v424 = vsel %vm413, %v398, 0
        %v427 = vsel %vm413, %v399, 0
        %v430 = vsel %vm413, %v400, 0
        %v433 = vsel %vm413, %v401, 0
        %v436 = vsel %vm413, %v402, 0
        %v439 = vsel %vm413, %v403, 0
        %v442 = vsel %vm413, %v404, 0
        %v445 = vsel %vm413, %v405, 0
        %v448 = vsel %vm413, %v406, 0
        %v451 = vsel %vm413, %v407, 0
        %v454 = vsel %vm413, %v408, 0
        %v457 = vsel %vm413, %v409, 0
        %v460 = vsel %vm413, %v410, 0
        %462 = vmatprep.subr.mxu0 0.0
        %463 = vmatpush1.msra.mxu0 0.0
        %464 = vmatprep.subr.mxu0 0.0
        %465 = vmatpush1.msra.mxu0 0.0
        %466 = vmatprep.subr.mxu0 0.0
        %467 = vmatpush1.msra.mxu0 0.0
        %468 = vmatprep.subr.mxu0 0.0
        %469 = vmatpush1.msra.mxu0 0.0
        %470 = vmatprep.subr.mxu0 0.0
        %471 = vmatpush1.msra.mxu0 0.0
        %472 = vmatprep.subr.mxu0 0.0
        %473 = vmatpush1.msra.mxu0 0.0
        %474 = vmatprep.subr.mxu0 0.0
        %475 = vmatpush1.msra.mxu0 0.0
        %476 = vmatprep.subr.mxu0 0.0
        %477 = vmatpush1.msra.mxu0 0.0
        %478 = vmatprep.subr.mxu0 0.0
        %479 = vmatpush1.msra.mxu0 0.0
        %480 = vmatprep.subr.mxu0 0.0
        %481 = vmatpush1.msra.mxu0 0.0
        %482 = vmatprep.subr.mxu0 0.0
        %483 = vmatpush1.msra.mxu0 0.0
        %484 = vmatprep.subr.mxu0 0.0
        %485 = vmatpush1.msra.mxu0 0.0
        %486 = vmatprep.subr.mxu0 0.0
        %487 = vmatpush1.msra.mxu0 0.0
        %488 = vmatprep.subr.mxu0 0.0
        %489 = vmatpush1.msra.mxu0 0.0
        %490 = vmatprep.subr.mxu0 0.0
        %491 = vmatpush1.msra.mxu0 0.0
        %492 = vmatprep.subr.mxu0 0.0
        %493 = vmatpush1.msra.mxu0 %v412
        %494 = vmatprep.subr.mxu0 0.0
        %495 = vmatpush2.msra.mxu0 0.0
        %496 = vmatprep.subr.mxu0 0.0
        %497 = vmatpush2.msra.mxu0 0.0
        %498 = vmatprep.subr.mxu0 0.0
        %499 = vmatpush2.msra.mxu0 0.0
        %500 = vmatprep.subr.mxu0 0.0
        %501 = vmatpush2.msra.mxu0 0.0
        %502 = vmatprep.subr.mxu0 0.0
        %503 = vmatpush2.msra.mxu0 0.0
        %504 = vmatprep.subr.mxu0 0.0
        %505 = vmatpush2.msra.mxu0 0.0
        %506 = vmatprep.subr.mxu0 0.0
        %507 = vmatpush2.msra.mxu0 0.0
        %508 = vmatprep.subr.mxu0 0.0
        %509 = vmatpush2.msra.mxu0 0.0
        %510 = vmatprep.subr.mxu0 0.0
        %511 = vmatpush2.msra.mxu0 0.0
        %512 = vmatprep.subr.mxu0 0.0
        %513 = vmatpush2.msra.mxu0 0.0
        %514 = vmatprep.subr.mxu0 0.0
        %515 = vmatpush2.msra.mxu0 0.0
        %516 = vmatprep.subr.mxu0 0.0
        %517 = vmatpush2.msra.mxu0 0.0
        %518 = vmatprep.subr.mxu0 0.0
        %519 = vmatpush2.msra.mxu0 0.0
        %520 = vmatprep.subr.mxu0 0.0
        %521 = vmatpush2.msra.mxu0 0.0
        %522 = vmatprep.subr.mxu0 0.0
        %523 = vmatpush2.msra.mxu0 0.0
        %524 = vmatprep.subr.mxu0 0.0
        %525 = vmatpush2.msra.mxu0 0.0
        %526 = vmatprep.mubr.f32.mxu0 0.0
        %527 = vmatmul.mubr.f32.gmra.mxu0 %v415
        %v528 = vpop.f32.mrf.mxu0
        %v529 = vadd.f32 0.0, %v528
        %v530 = vpop.f32.mrf.mxu0
        %531 = vmatprep.mubr.f32.mxu0 0.0
        %532 = vmatmul.mubr.f32.gmra.mxu0 %v418
        %v533 = vpop.f32.mrf.mxu0
        %v534 = vadd.f32 0.0, %v533
        %v535 = vpop.f32.mrf.mxu0
        %536 = vmatprep.mubr.f32.mxu0 0.0
        %537 = vmatmul.mubr.f32.gmra.mxu0 %v421
        %v538 = vpop.f32.mrf.mxu0
        %v539 = vadd.f32 0.0, %v538
        %v540 = vpop.f32.mrf.mxu0
        %541 = vmatprep.mubr.f32.mxu0 0.0
        %542 = vmatmul.mubr.f32.gmra.mxu0 %v424
        %v543 = vpop.f32.mrf.mxu0
        %v544 = vadd.f32 0.0, %v543
        %v545 = vpop.f32.mrf.mxu0
        %546 = vmatprep.mubr.f32.mxu0 0.0
        %547 = vmatmul.mubr.f32.gmra.mxu0 %v427
        %v548 = vpop.f32.mrf.mxu0
        %v549 = vadd.f32 0.0, %v548
        %v550 = vpop.f32.mrf.mxu0
        %551 = vmatprep.mubr.f32.mxu0 0.0
        %552 = vmatmul.mubr.f32.gmra.mxu0 %v430
        %v553 = vpop.f32.mrf.mxu0
        %v554 = vadd.f32 0.0, %v553
        %v555 = vpop.f32.mrf.mxu0
        %556 = vmatprep.mubr.f32.mxu0 0.0
        %557 = vmatmul.mubr.f32.gmra.mxu0 %v433
        %v558 = vpop.f32.mrf.mxu0
        %v559 = vadd.f32 0.0, %v558
        %v560 = vpop.f32.mrf.mxu0
        %561 = vmatprep.mubr.f32.mxu0 0.0
        %562 = vmatmul.mubr.f32.gmra.mxu0 %v436
        %v563 = vpop.f32.mrf.mxu0
        %v564 = vadd.f32 0.0, %v563
        %v565 = vpop.f32.mrf.mxu0
        %566 = vmatprep.mubr.f32.mxu0 0.0
        %567 = vmatmul.mubr.f32.gmra.mxu0 %v439
        %v568 = vpop.f32.mrf.mxu0
        %v569 = vadd.f32 0.0, %v568
        %v570 = vpop.f32.mrf.mxu0
        %571 = vmatprep.mubr.f32.mxu0 0.0
        %572 = vmatmul.mubr.f32.gmra.mxu0 %v442
        %v573 = vpop.f32.mrf.mxu0
        %v574 = vadd.f32 0.0, %v573
        %v575 = vpop.f32.mrf.mxu0
        %576 = vmatprep.mubr.f32.mxu0 0.0
        %577 = vmatmul.mubr.f32.gmra.mxu0 %v445
        %v578 = vpop.f32.mrf.mxu0
        %v579 = vadd.f32 0.0, %v578
        %v580 = vpop.f32.mrf.mxu0
        %581 = vmatprep.mubr.f32.mxu0 0.0
        %582 = vmatmul.mubr.f32.gmra.mxu0 %v448
        %v583 = vpop.f32.mrf.mxu0
        %v584 = vadd.f32 0.0, %v583
        %v585 = vpop.f32.mrf.mxu0
        %586 = vmatprep.mubr.f32.mxu0 0.0
        %587 = vmatmul.mubr.f32.gmra.mxu0 %v451
        %v588 = vpop.f32.mrf.mxu0
        %v589 = vadd.f32 0.0, %v588
        %v590 = vpop.f32.mrf.mxu0
        %591 = vmatprep.mubr.f32.mxu0 0.0
        %592 = vmatmul.mubr.f32.gmra.mxu0 %v454
        %v593 = vpop.f32.mrf.mxu0
        %v594 = vadd.f32 0.0, %v593
        %v595 = vpop.f32.mrf.mxu0
        %596 = vmatprep.mubr.f32.mxu0 0.0
        %597 = vmatmul.mubr.f32.gmra.mxu0 %v457
        %v598 = vpop.f32.mrf.mxu0
        %v599 = vadd.f32 0.0, %v598
        %v600 = vpop.f32.mrf.mxu0
        %601 = vmatprep.mubr.f32.mxu0 0.0
        %602 = vmatmul.mubr.f32.gmra.mxu0 %v460
        %v603 = vpop.f32.mrf.mxu0
        %v604 = vadd.f32 0.0, %v603
        %v605 = vpop.f32.mrf.mxu0
        %606 = vdwg.mxu0
        %v608 = vsel %vm413, %v378, 0
        %v611 = vsel %vm413, %v379, 0
        %v614 = vsel %vm413, %v380, 0
        %v617 = vsel %vm413, %v381, 0
        %v620 = vsel %vm413, %v382, 0
        %v623 = vsel %vm413, %v383, 0
        %v626 = vsel %vm413, %v384, 0
        %v629 = vsel %vm413, %v385, 0
        %v632 = vsel %vm413, %v386, 0
        %v635 = vsel %vm413, %v387, 0
        %v638 = vsel %vm413, %v388, 0
        %v641 = vsel %vm413, %v389, 0
        %v644 = vsel %vm413, %v390, 0
        %v647 = vsel %vm413, %v391, 0
        %v650 = vsel %vm413, %v392, 0
        %v653 = vsel %vm413, %v393, 0
        %655 = vmatprep.subr.mxu0 0.0
        %656 = vmatpush1.msra.mxu0 0.0
        %657 = vmatprep.subr.mxu0 0.0
        %658 = vmatpush1.msra.mxu0 0.0
        %659 = vmatprep.subr.mxu0 0.0
        %660 = vmatpush1.msra.mxu0 0.0
        %661 = vmatprep.subr.mxu0 0.0
        %662 = vmatpush1.msra.mxu0 0.0
        %663 = vmatprep.subr.mxu0 0.0
        %664 = vmatpush1.msra.mxu0 0.0
        %665 = vmatprep.subr.mxu0 0.0
        %666 = vmatpush1.msra.mxu0 0.0
        %667 = vmatprep.subr.mxu0 0.0
        %668 = vmatpush1.msra.mxu0 0.0
        %669 = vmatprep.subr.mxu0 0.0
        %670 = vmatpush1.msra.mxu0 0.0
        %671 = vmatprep.subr.mxu0 0.0
        %672 = vmatpush1.msra.mxu0 0.0
        %673 = vmatprep.subr.mxu0 0.0
        %674 = vmatpush1.msra.mxu0 0.0
        %675 = vmatprep.subr.mxu0 0.0
        %676 = vmatpush1.msra.mxu0 0.0
        %677 = vmatprep.subr.mxu0 0.0
        %678 = vmatpush1.msra.mxu0 0.0
        %679 = vmatprep.subr.mxu0 0.0
        %680 = vmatpush1.msra.mxu0 0.0
        %681 = vmatprep.subr.mxu0 0.0
        %682 = vmatpush1.msra.mxu0 0.0
        %683 = vmatprep.subr.mxu0 0.0
        %684 = vmatpush1.msra.mxu0 0.0
        %685 = vmatprep.subr.mxu0 0.0
        %686 = vmatpush1.msra.mxu0 %v411
        %687 = vmatprep.subr.mxu0 0.0
        %688 = vmatpush2.msra.mxu0 0.0
        %689 = vmatprep.subr.mxu0 0.0
        %690 = vmatpush2.msra.mxu0 0.0
        %691 = vmatprep.subr.mxu0 0.0
        %692 = vmatpush2.msra.mxu0 0.0
        %693 = vmatprep.subr.mxu0 0.0
        %694 = vmatpush2.msra.mxu0 0.0
        %695 = vmatprep.subr.mxu0 0.0
        %696 = vmatpush2.msra.mxu0 0.0
        %697 = vmatprep.subr.mxu0 0.0
        %698 = vmatpush2.msra.mxu0 0.0
        %699 = vmatprep.subr.mxu0 0.0
        %700 = vmatpush2.msra.mxu0 0.0
        %701 = vmatprep.subr.mxu0 0.0
        %702 = vmatpush2.msra.mxu0 0.0
        %703 = vmatprep.subr.mxu0 0.0
        %704 = vmatpush2.msra.mxu0 0.0
        %705 = vmatprep.subr.mxu0 0.0
        %706 = vmatpush2.msra.mxu0 0.0
        %707 = vmatprep.subr.mxu0 0.0
        %708 = vmatpush2.msra.mxu0 0.0
        %709 = vmatprep.subr.mxu0 0.0
        %710 = vmatpush2.msra.mxu0 0.0
        %711 = vmatprep.subr.mxu0 0.0
        %712 = vmatpush2.msra.mxu0 0.0
        %713 = vmatprep.subr.mxu0 0.0
        %714 = vmatpush2.msra.mxu0 0.0
        %715 = vmatprep.subr.mxu0 0.0
        %716 = vmatpush2.msra.mxu0 0.0
        %717 = vmatprep.subr.mxu0 0.0
        %718 = vmatpush2.msra.mxu0 0.0
        %719 = vmatprep.mubr.f32.mxu0 0.0
        %720 = vmatmul.mubr.f32.gmra.mxu0 %v608
        %v721 = vpop.f32.mrf.mxu0
        %v722 = vadd.f32 %v529, %v721
        %v723 = vpop.f32.mrf.mxu0
        %724 = vmatprep.mubr.f32.mxu0 0.0
        %725 = vmatmul.mubr.f32.gmra.mxu0 %v611
        %v726 = vpop.f32.mrf.mxu0
        %v727 = vadd.f32 %v534, %v726
        %v728 = vpop.f32.mrf.mxu0
        %729 = vmatprep.mubr.f32.mxu0 0.0
        %730 = vmatmul.mubr.f32.gmra.mxu0 %v614
        %v731 = vpop.f32.mrf.mxu0
        %v732 = vadd.f32 %v539, %v731
        %v733 = vpop.f32.mrf.mxu0
        %734 = vmatprep.mubr.f32.mxu0 0.0
        %735 = vmatmul.mubr.f32.gmra.mxu0 %v617
        %v736 = vpop.f32.mrf.mxu0
        %v737 = vadd.f32 %v544, %v736
        %v738 = vpop.f32.mrf.mxu0
        %739 = vmatprep.mubr.f32.mxu0 0.0
        %740 = vmatmul.mubr.f32.gmra.mxu0 %v620
        %v741 = vpop.f32.mrf.mxu0
        %v742 = vadd.f32 %v549, %v741
        %v743 = vpop.f32.mrf.mxu0
        %744 = vmatprep.mubr.f32.mxu0 0.0
        %745 = vmatmul.mubr.f32.gmra.mxu0 %v623
        %v746 = vpop.f32.mrf.mxu0
        %v747 = vadd.f32 %v554, %v746
        %v748 = vpop.f32.mrf.mxu0
        %749 = vmatprep.mubr.f32.mxu0 0.0
        %750 = vmatmul.mubr.f32.gmra.mxu0 %v626
        %v751 = vpop.f32.mrf.mxu0
        %v752 = vadd.f32 %v559, %v751
        %v753 = vpop.f32.mrf.mxu0
        %754 = vmatprep.mubr.f32.mxu0 0.0
        %755 = vmatmul.mubr.f32.gmra.mxu0 %v629
        %v756 = vpop.f32.mrf.mxu0
        %v757 = vadd.f32 %v564, %v756
        %v758 = vpop.f32.mrf.mxu0
        %759 = vmatprep.mubr.f32.mxu0 0.0
        %760 = vmatmul.mubr.f32.gmra.mxu0 %v632
        %v761 = vpop.f32.mrf.mxu0
        %v762 = vadd.f32 %v569, %v761
        %v763 = vpop.f32.mrf.mxu0
        %764 = vmatprep.mubr.f32.mxu0 0.0
        %765 = vmatmul.mubr.f32.gmra.mxu0 %v635
        %v766 = vpop.f32.mrf.mxu0
        %v767 = vadd.f32 %v574, %v766
        %v768 = vpop.f32.mrf.mxu0
        %769 = vmatprep.mubr.f32.mxu0 0.0
        %770 = vmatmul.mubr.f32.gmra.mxu0 %v638
        %v771 = vpop.f32.mrf.mxu0
        %v772 = vadd.f32 %v579, %v771
        %v773 = vpop.f32.mrf.mxu0
        %774 = vmatprep.mubr.f32.mxu0 0.0
        %775 = vmatmul.mubr.f32.gmra.mxu0 %v641
        %v776 = vpop.f32.mrf.mxu0
        %v777 = vadd.f32 %v584, %v776
        %v778 = vpop.f32.mrf.mxu0
        %779 = vmatprep.mubr.f32.mxu0 0.0
        %780 = vmatmul.mubr.f32.gmra.mxu0 %v644
        %v781 = vpop.f32.mrf.mxu0
        %v782 = vadd.f32 %v589, %v781
        %v783 = vpop.f32.mrf.mxu0
        %784 = vmatprep.mubr.f32.mxu0 0.0
        %785 = vmatmul.mubr.f32.gmra.mxu0 %v647
        %v786 = vpop.f32.mrf.mxu0
        %v787 = vadd.f32 %v594, %v786
        %v788 = vpop.f32.mrf.mxu0
        %789 = vmatprep.mubr.f32.mxu0 0.0
        %790 = vmatmul.mubr.f32.gmra.mxu0 %v650
        %v791 = vpop.f32.mrf.mxu0
        %v792 = vadd.f32 %v599, %v791
        %v793 = vpop.f32.mrf.mxu0
        %794 = vmatprep.mubr.f32.mxu0 0.0
        %795 = vmatmul.mubr.f32.gmra.mxu0 %v653
        %v796 = vpop.f32.mrf.mxu0
        %v797 = vadd.f32 %v604, %v796
        %v798 = vpop.f32.mrf.mxu0
        %799 = vdwg.mxu0
        %v800 = vld [vmem:[%s3] sm:$0x1]
        %v802 = vlaneseq
        %v803 = vshrl.u32 %v802, 7
        %v804 = vsub.s32 0, %v803
        %v805 = vrot.slane %v800, %v804
        %v807 = vadd.f32 %v722, %v805
        %v808 = vadd.f32 %v727, %v805
        %v809 = vadd.f32 %v732, %v805
        %v810 = vadd.f32 %v737, %v805
        %v811 = vadd.f32 %v742, %v805
        %v812 = vadd.f32 %v747, %v805
        %v813 = vadd.f32 %v752, %v805
        %v814 = vadd.f32 %v757, %v805
        %v815 = vadd.f32 %v762, %v805
        %v816 = vadd.f32 %v767, %v805
        %v817 = vadd.f32 %v772, %v805
        %v818 = vadd.f32 %v777, %v805
        %v819 = vadd.f32 %v782, %v805
        %v820 = vadd.f32 %v787, %v805
        %v821 = vadd.f32 %v792, %v805
        %v822 = vadd.f32 %v797, %v805
        %vm823 = vcmp.ge.f32.partialorder %v807, 0.0
        %vm824 = vcmp.ge.f32.partialorder %v808, 0.0
        %vm825 = vcmp.ge.f32.partialorder %v809, 0.0
        %vm826 = vcmp.ge.f32.partialorder %v810, 0.0
        %vm827 = vcmp.ge.f32.partialorder %v811, 0.0
        %vm828 = vcmp.ge.f32.partialorder %v812, 0.0
        %vm829 = vcmp.ge.f32.partialorder %v813, 0.0
        %vm830 = vcmp.ge.f32.partialorder %v814, 0.0
        %vm831 = vcmp.ge.f32.partialorder %v815, 0.0
        %vm832 = vcmp.ge.f32.partialorder %v816, 0.0
        %vm833 = vcmp.ge.f32.partialorder %v817, 0.0
        %vm834 = vcmp.ge.f32.partialorder %v818, 0.0
        %vm835 = vcmp.ge.f32.partialorder %v819, 0.0
        %vm836 = vcmp.ge.f32.partialorder %v820, 0.0
        %vm837 = vcmp.ge.f32.partialorder %v821, 0.0
        %vm838 = vcmp.ge.f32.partialorder %v822, 0.0
        %v839 = vmul.f32 %v807, 0.01
        %v840 = vmul.f32 %v808, 0.01
        %v841 = vmul.f32 %v809, 0.01
        %v842 = vmul.f32 %v810, 0.01
        %v843 = vmul.f32 %v811, 0.01
        %v844 = vmul.f32 %v812, 0.01
        %v845 = vmul.f32 %v813, 0.01
        %v846 = vmul.f32 %v814, 0.01
        %v847 = vmul.f32 %v815, 0.01
        %v848 = vmul.f32 %v816, 0.01
        %v849 = vmul.f32 %v817, 0.01
        %v850 = vmul.f32 %v818, 0.01
        %v851 = vmul.f32 %v819, 0.01
        %v852 = vmul.f32 %v820, 0.01
        %v853 = vmul.f32 %v821, 0.01
        %v854 = vmul.f32 %v822, 0.01
        %v855 = vsel %vm823, %v807, %v839
        %v856 = vsel %vm824, %v808, %v840
        %v857 = vsel %vm825, %v809, %v841
        %v858 = vsel %vm826, %v810, %v842
        %v859 = vsel %vm827, %v811, %v843
        %v860 = vsel %vm828, %v812, %v844
        %v861 = vsel %vm829, %v813, %v845
        %v862 = vsel %vm830, %v814, %v846
        %v863 = vsel %vm831, %v815, %v847
        %v864 = vsel %vm832, %v816, %v848
        %v865 = vsel %vm833, %v817, %v849
        %v866 = vsel %vm834, %v818, %v850
        %v867 = vsel %vm835, %v819, %v851
        %v868 = vsel %vm836, %v820, %v852
        %v869 = vsel %vm837, %v821, %v853
        %v870 = vsel %vm838, %v822, %v854
        %871 = vst [vmem:[#allocation2 + $0x8] sm:$0xff] %v855
        %872 = vst [vmem:[#allocation2 + $0x10] sm:$0xff] %v856
        %873 = vst [vmem:[#allocation2 + $0x18] sm:$0xff] %v857
        %874 = vst [vmem:[#allocation2 + $0x20] sm:$0xff] %v858
        %875 = vst [vmem:[#allocation2 + $0x28] sm:$0xff] %v859
        %876 = vst [vmem:[#allocation2 + $0x30] sm:$0xff] %v860
        %877 = vst [vmem:[#allocation2 + $0x38] sm:$0xff] %v861
        %878 = vst [vmem:[#allocation2 + $0x40] sm:$0xff] %v862
        %879 = vst [vmem:[#allocation2 + $0x48] sm:$0xff] %v863
        %880 = vst [vmem:[#allocation2 + $0x50] sm:$0xff] %v864
        %881 = vst [vmem:[#allocation2 + $0x58] sm:$0xff] %v865
        %882 = vst [vmem:[#allocation2 + $0x60] sm:$0xff] %v866
        %883 = vst [vmem:[#allocation2 + $0x68] sm:$0xff] %v867
        %884 = vst [vmem:[#allocation2 + $0x70] sm:$0xff] %v868
        %885 = vst [vmem:[#allocation2 + $0x78] sm:$0xff] %v869
        %886 = vst [vmem:[#allocation2 + $0x80] sm:$0xff] %v870
        %v887 = vlaneseq
        %v888 = vand.u32 %v887, 127
        %vm889 = vcmp.ge.s32.totalorder %v888, 32
        %s890 = scalar_lea.vmem [#allocation2], 5
        %v891 = vld [vmem:[%s890] ss:$4 sm:$0xff]
        %s892 = scalar_lea.vmem [#allocation2], 37
        %v893 = vld [vmem:[%s892] ss:$4 sm:$0xff]
        %s894 = scalar_lea.vmem [#allocation2], 69
        %v895 = vld [vmem:[%s894] ss:$4 sm:$0xff]
        %s896 = scalar_lea.vmem [#allocation2], 101
        %v897 = vld [vmem:[%s896] ss:$4 sm:$0xff]
        %v898 = vpack.c.bf16 %v893, %v891
        %v899 = vpack.c.bf16 %v897, %v895
        %v900 = vld [vmem:[#allocation4] sm:$0xf]
        %v901 = vld [vmem:[#allocation4 + $0x4] sm:$0xf]
        %v902 = vld [vmem:[#allocation4 + $0x8] sm:$0xf]
        %v903 = vld [vmem:[#allocation4 + $0xc] sm:$0xf]
        %v904 = vld [vmem:[#allocation4 + $0x10] sm:$0xf]
        %v905 = vld [vmem:[#allocation4 + $0x14] sm:$0xf]
        %v906 = vld [vmem:[#allocation4 + $0x18] sm:$0xf]
        %v907 = vld [vmem:[#allocation4 + $0x1c] sm:$0xf]
        %v908 = vld [vmem:[#allocation4 + $0x20] sm:$0xf]
        %v909 = vld [vmem:[#allocation4 + $0x24] sm:$0xf]
        %v910 = vld [vmem:[#allocation4 + $0x28] sm:$0xf]
        %v911 = vld [vmem:[#allocation4 + $0x2c] sm:$0xf]
        %v912 = vld [vmem:[#allocation4 + $0x30] sm:$0xf]
        %v913 = vld [vmem:[#allocation4 + $0x34] sm:$0xf]
        %v914 = vld [vmem:[#allocation4 + $0x38] sm:$0xf]
        %v915 = vld [vmem:[#allocation4 + $0x3c] sm:$0xf]
        %s916 = scalar_lea.vmem [#allocation2], 6
        %v917 = vld [vmem:[%s916] ss:$4 sm:$0xff]
        %s918 = scalar_lea.vmem [#allocation2], 38
        %v919 = vld [vmem:[%s918] ss:$4 sm:$0xff]
        %s920 = scalar_lea.vmem [#allocation2], 70
        %v921 = vld [vmem:[%s920] ss:$4 sm:$0xff]
        %s922 = scalar_lea.vmem [#allocation2], 102
        %v923 = vld [vmem:[%s922] ss:$4 sm:$0xff]
        %v924 = vpack.c.bf16 %v919, %v917
        %v925 = vpack.c.bf16 %v923, %v921
        %v926 = vld [vmem:[#allocation4 + $0x40] sm:$0xf]
        %v927 = vld [vmem:[#allocation4 + $0x44] sm:$0xf]
        %v928 = vld [vmem:[#allocation4 + $0x48] sm:$0xf]
        %v929 = vld [vmem:[#allocation4 + $0x4c] sm:$0xf]
        %v930 = vld [vmem:[#allocation4 + $0x50] sm:$0xf]
        %v931 = vld [vmem:[#allocation4 + $0x54] sm:$0xf]
        %v932 = vld [vmem:[#allocation4 + $0x58] sm:$0xf]
        %v933 = vld [vmem:[#allocation4 + $0x5c] sm:$0xf]
        %v934 = vld [vmem:[#allocation4 + $0x60] sm:$0xf]
        %v935 = vld [vmem:[#allocation4 + $0x64] sm:$0xf]
        %v936 = vld [vmem:[#allocation4 + $0x68] sm:$0xf]
        %v937 = vld [vmem:[#allocation4 + $0x6c] sm:$0xf]
        %v938 = vld [vmem:[#allocation4 + $0x70] sm:$0xf]
        %v939 = vld [vmem:[#allocation4 + $0x74] sm:$0xf]
        %v940 = vld [vmem:[#allocation4 + $0x78] sm:$0xf]
        %v941 = vld [vmem:[#allocation4 + $0x7c] sm:$0xf]
        %v958 = vunpack.c.l.b16 %v926
        %v959 = vunpack.c.l.b16 %v927
        %v960 = vunpack.c.l.b16 %v928
        %v961 = vunpack.c.l.b16 %v929
        %v962 = vunpack.c.l.b16 %v930
        %v963 = vunpack.c.l.b16 %v931
        %v964 = vunpack.c.l.b16 %v932
        %v965 = vunpack.c.l.b16 %v933
        %v966 = vunpack.c.l.b16 %v934
        %v967 = vunpack.c.l.b16 %v935
        %v968 = vunpack.c.l.b16 %v936
        %v969 = vunpack.c.l.b16 %v937
        %v970 = vunpack.c.l.b16 %v938
        %v971 = vunpack.c.l.b16 %v939
        %v972 = vunpack.c.l.b16 %v940
        %v973 = vunpack.c.l.b16 %v941
        %v974 = vpack.c.b16 %v959, %v958
        %v975 = vpack.c.b16 %v961, %v960
        %v976 = vpack.c.b16 %v963, %v962
        %v977 = vpack.c.b16 %v965, %v964
        %v978 = vpack.c.b16 %v967, %v966
        %v979 = vpack.c.b16 %v969, %v968
        %v980 = vpack.c.b16 %v971, %v970
        %v981 = vpack.c.b16 %v973, %v972
        %990 = vmatprep.subr.bf16.mxu0 0
        %991 = vmatpush1.bf16.msra.mxu0 %v981
        %992 = vmatprep.subr.bf16.mxu0 0
        %993 = vmatpush1.bf16.msra.mxu0 %v980
        %994 = vmatprep.subr.bf16.mxu0 0
        %995 = vmatpush1.bf16.msra.mxu0 %v979
        %996 = vmatprep.subr.bf16.mxu0 0
        %997 = vmatpush1.bf16.msra.mxu0 %v978
        %998 = vmatprep.subr.bf16.mxu0 0
        %999 = vmatpush1.bf16.msra.mxu0 %v977
        %1000 = vmatprep.subr.bf16.mxu0 0
        %1001 = vmatpush1.bf16.msra.mxu0 %v976
        %1002 = vmatprep.subr.bf16.mxu0 0
        %1003 = vmatpush1.bf16.msra.mxu0 %v975
        %1004 = vmatprep.subr.bf16.mxu0 0
        %1005 = vmatpush1.bf16.msra.mxu0 %v974
        %1006 = vmatprep.subr.bf16.mxu0 0
        %1007 = vmatpush2.bf16.msra.mxu0 0
        %1008 = vmatprep.subr.bf16.mxu0 0
        %1009 = vmatpush2.bf16.msra.mxu0 0
        %1010 = vmatprep.subr.bf16.mxu0 0
        %1011 = vmatpush2.bf16.msra.mxu0 0
        %1012 = vmatprep.subr.bf16.mxu0 0
        %1013 = vmatpush2.bf16.msra.mxu0 0
        %1014 = vmatprep.subr.bf16.mxu0 0
        %1015 = vmatpush2.bf16.msra.mxu0 0
        %1016 = vmatprep.subr.bf16.mxu0 0
        %1017 = vmatpush2.bf16.msra.mxu0 0
        %1018 = vmatprep.subr.bf16.mxu0 0
        %1019 = vmatpush2.bf16.msra.mxu0 0
        %1020 = vmatprep.subr.bf16.mxu0 0
        %1021 = vmatpush2.bf16.msra.mxu0 0
        %1022 = vmatprep.mubr.bf16.mxu0 0
        %1023 = vmatmul.mubr.bf16.gmra.mxu0 %v924
        %v1024 = vpop.f32.mrf.mxu0
        %v1025 = vadd.f32 0.0, %v1024
        %v1026 = vpop.f32.mrf.mxu0
        %v1027 = vpop.f32.mrf.mxu0
        %v1028 = vadd.f32 0.0, %v1027
        %v1029 = vpop.f32.mrf.mxu0
        %1030 = vmatprep.mubr.bf16.mxu0 0
        %1031 = vmatmul.mubr.bf16.gmra.mxu0 %v925
        %v1032 = vpop.f32.mrf.mxu0
        %v1033 = vadd.f32 0.0, %v1032
        %v1034 = vpop.f32.mrf.mxu0
        %v1035 = vpop.f32.mrf.mxu0
        %v1036 = vadd.f32 0.0, %v1035
        %v1037 = vpop.f32.mrf.mxu0
        %1038 = vdwg.mxu0
        %v1055 = vunpack.c.l.b16 %v900
        %v1056 = vunpack.c.l.b16 %v901
        %v1057 = vunpack.c.l.b16 %v902
        %v1058 = vunpack.c.l.b16 %v903
        %v1059 = vunpack.c.l.b16 %v904
        %v1060 = vunpack.c.l.b16 %v905
        %v1061 = vunpack.c.l.b16 %v906
        %v1062 = vunpack.c.l.b16 %v907
        %v1063 = vunpack.c.l.b16 %v908
        %v1064 = vunpack.c.l.b16 %v909
        %v1065 = vunpack.c.l.b16 %v910
        %v1066 = vunpack.c.l.b16 %v911
        %v1067 = vunpack.c.l.b16 %v912
        %v1068 = vunpack.c.l.b16 %v913
        %v1069 = vunpack.c.l.b16 %v914
        %v1070 = vunpack.c.l.b16 %v915
        %v1071 = vpack.c.b16 %v1056, %v1055
        %v1072 = vpack.c.b16 %v1058, %v1057
        %v1073 = vpack.c.b16 %v1060, %v1059
        %v1074 = vpack.c.b16 %v1062, %v1061
        %v1075 = vpack.c.b16 %v1064, %v1063
        %v1076 = vpack.c.b16 %v1066, %v1065
        %v1077 = vpack.c.b16 %v1068, %v1067
        %v1078 = vpack.c.b16 %v1070, %v1069
        %1087 = vmatprep.subr.bf16.mxu0 0
        %1088 = vmatpush1.bf16.msra.mxu0 %v1078
        %1089 = vmatprep.subr.bf16.mxu0 0
        %1090 = vmatpush1.bf16.msra.mxu0 %v1077
        %1091 = vmatprep.subr.bf16.mxu0 0
        %1092 = vmatpush1.bf16.msra.mxu0 %v1076
        %1093 = vmatprep.subr.bf16.mxu0 0
        %1094 = vmatpush1.bf16.msra.mxu0 %v1075
        %1095 = vmatprep.subr.bf16.mxu0 0
        %1096 = vmatpush1.bf16.msra.mxu0 %v1074
        %1097 = vmatprep.subr.bf16.mxu0 0
        %1098 = vmatpush1.bf16.msra.mxu0 %v1073
        %1099 = vmatprep.subr.bf16.mxu0 0
        %1100 = vmatpush1.bf16.msra.mxu0 %v1072
        %1101 = vmatprep.subr.bf16.mxu0 0
        %1102 = vmatpush1.bf16.msra.mxu0 %v1071
        %1103 = vmatprep.subr.bf16.mxu0 0
        %1104 = vmatpush2.bf16.msra.mxu0 0
        %1105 = vmatprep.subr.bf16.mxu0 0
        %1106 = vmatpush2.bf16.msra.mxu0 0
        %1107 = vmatprep.subr.bf16.mxu0 0
        %1108 = vmatpush2.bf16.msra.mxu0 0
        %1109 = vmatprep.subr.bf16.mxu0 0
        %1110 = vmatpush2.bf16.msra.mxu0 0
        %1111 = vmatprep.subr.bf16.mxu0 0
        %1112 = vmatpush2.bf16.msra.mxu0 0
        %1113 = vmatprep.subr.bf16.mxu0 0
        %1114 = vmatpush2.bf16.msra.mxu0 0
        %1115 = vmatprep.subr.bf16.mxu0 0
        %1116 = vmatpush2.bf16.msra.mxu0 0
        %1117 = vmatprep.subr.bf16.mxu0 0
        %1118 = vmatpush2.bf16.msra.mxu0 0
        %1119 = vmatprep.mubr.bf16.mxu0 0
        %1120 = vmatmul.mubr.bf16.gmra.mxu0 %v898
        %v1121 = vpop.f32.mrf.mxu0
        %v1122 = vadd.f32 %v1025, %v1121
        %v1123 = vpop.f32.mrf.mxu0
        %v1124 = vpop.f32.mrf.mxu0
        %v1125 = vadd.f32 %v1028, %v1124
        %v1126 = vpop.f32.mrf.mxu0
        %1127 = vmatprep.mubr.bf16.mxu0 0
        %1128 = vmatmul.mubr.bf16.gmra.mxu0 %v899
        %v1129 = vpop.f32.mrf.mxu0
        %v1130 = vadd.f32 %v1033, %v1129
        %v1131 = vpop.f32.mrf.mxu0
        %v1132 = vpop.f32.mrf.mxu0
        %v1133 = vadd.f32 %v1036, %v1132
        %v1134 = vpop.f32.mrf.mxu0
        %1135 = vdwg.mxu0
        %s1136 = scalar_lea.vmem [#allocation2], 7
        %v1137 = vld [vmem:[%s1136] ss:$4 sm:$0xff]
        %s1138 = scalar_lea.vmem [#allocation2], 39
        %v1139 = vld [vmem:[%s1138] ss:$4 sm:$0xff]
        %s1140 = scalar_lea.vmem [#allocation2], 71
        %v1141 = vld [vmem:[%s1140] ss:$4 sm:$0xff]
        %s1142 = scalar_lea.vmem [#allocation2], 103
        %v1143 = vld [vmem:[%s1142] ss:$4 sm:$0xff]
        %v1144 = vpack.c.bf16 %v1139, %v1137
        %v1145 = vpack.c.bf16 %v1143, %v1141
        %v1146 = vld [vmem:[#allocation4 + $0x80] sm:$0xf]
        %v1147 = vld [vmem:[#allocation4 + $0x84] sm:$0xf]
        %v1148 = vld [vmem:[#allocation4 + $0x88] sm:$0xf]
        %v1149 = vld [vmem:[#allocation4 + $0x8c] sm:$0xf]
        %v1150 = vld [vmem:[#allocation4 + $0x90] sm:$0xf]
        %v1151 = vld [vmem:[#allocation4 + $0x94] sm:$0xf]
        %v1152 = vld [vmem:[#allocation4 + $0x98] sm:$0xf]
        %v1153 = vld [vmem:[#allocation4 + $0x9c] sm:$0xf]
        %v1154 = vld [vmem:[#allocation4 + $0xa0] sm:$0xf]
        %v1155 = vld [vmem:[#allocation4 + $0xa4] sm:$0xf]
        %v1156 = vld [vmem:[#allocation4 + $0xa8] sm:$0xf]
        %v1157 = vld [vmem:[#allocation4 + $0xac] sm:$0xf]
        %v1158 = vld [vmem:[#allocation4 + $0xb0] sm:$0xf]
        %v1159 = vld [vmem:[#allocation4 + $0xb4] sm:$0xf]
        %v1160 = vld [vmem:[#allocation4 + $0xb8] sm:$0xf]
        %v1161 = vld [vmem:[#allocation4 + $0xbc] sm:$0xf]
        %v1178 = vunpack.c.l.b16 %v1146
        %v1179 = vunpack.c.l.b16 %v1147
        %v1180 = vunpack.c.l.b16 %v1148
        %v1181 = vunpack.c.l.b16 %v1149
        %v1182 = vunpack.c.l.b16 %v1150
        %v1183 = vunpack.c.l.b16 %v1151
        %v1184 = vunpack.c.l.b16 %v1152
        %v1185 = vunpack.c.l.b16 %v1153
        %v1186 = vunpack.c.l.b16 %v1154
        %v1187 = vunpack.c.l.b16 %v1155
        %v1188 = vunpack.c.l.b16 %v1156
        %v1189 = vunpack.c.l.b16 %v1157
        %v1190 = vunpack.c.l.b16 %v1158
        %v1191 = vunpack.c.l.b16 %v1159
        %v1192 = vunpack.c.l.b16 %v1160
        %v1193 = vunpack.c.l.b16 %v1161
        %v1194 = vpack.c.b16 %v1179, %v1178
        %v1195 = vpack.c.b16 %v1181, %v1180
        %v1196 = vpack.c.b16 %v1183, %v1182
        %v1197 = vpack.c.b16 %v1185, %v1184
        %v1198 = vpack.c.b16 %v1187, %v1186
        %v1199 = vpack.c.b16 %v1189, %v1188
        %v1200 = vpack.c.b16 %v1191, %v1190
        %v1201 = vpack.c.b16 %v1193, %v1192
        %1210 = vmatprep.subr.bf16.mxu0 0
        %1211 = vmatpush1.bf16.msra.mxu0 %v1201
        %1212 = vmatprep.subr.bf16.mxu0 0
        %1213 = vmatpush1.bf16.msra.mxu0 %v1200
        %1214 = vmatprep.subr.bf16.mxu0 0
        %1215 = vmatpush1.bf16.msra.mxu0 %v1199
        %1216 = vmatprep.subr.bf16.mxu0 0
        %1217 = vmatpush1.bf16.msra.mxu0 %v1198
        %1218 = vmatprep.subr.bf16.mxu0 0
        %1219 = vmatpush1.bf16.msra.mxu0 %v1197
        %1220 = vmatprep.subr.bf16.mxu0 0
        %1221 = vmatpush1.bf16.msra.mxu0 %v1196
        %1222 = vmatprep.subr.bf16.mxu0 0
        %1223 = vmatpush1.bf16.msra.mxu0 %v1195
        %1224 = vmatprep.subr.bf16.mxu0 0
        %1225 = vmatpush1.bf16.msra.mxu0 %v1194
        %1226 = vmatprep.subr.bf16.mxu0 0
        %1227 = vmatpush2.bf16.msra.mxu0 0
        %1228 = vmatprep.subr.bf16.mxu0 0
        %1229 = vmatpush2.bf16.msra.mxu0 0
        %1230 = vmatprep.subr.bf16.mxu0 0
        %1231 = vmatpush2.bf16.msra.mxu0 0
        %1232 = vmatprep.subr.bf16.mxu0 0
        %1233 = vmatpush2.bf16.msra.mxu0 0
        %1234 = vmatprep.subr.bf16.mxu0 0
        %1235 = vmatpush2.bf16.msra.mxu0 0
        %1236 = vmatprep.subr.bf16.mxu0 0
        %1237 = vmatpush2.bf16.msra.mxu0 0
        %1238 = vmatprep.subr.bf16.mxu0 0
        %1239 = vmatpush2.bf16.msra.mxu0 0
        %1240 = vmatprep.subr.bf16.mxu0 0
        %1241 = vmatpush2.bf16.msra.mxu0 0
        %1242 = vmatprep.mubr.bf16.mxu0 0
        %1243 = vmatmul.mubr.bf16.gmra.mxu0 %v1144
        %v1244 = vpop.f32.mrf.mxu0
        %v1245 = vadd.f32 0.0, %v1244
        %v1246 = vpop.f32.mrf.mxu0
        %v1247 = vpop.f32.mrf.mxu0
        %v1248 = vadd.f32 0.0, %v1247
        %v1249 = vpop.f32.mrf.mxu0
        %1250 = vmatprep.mubr.bf16.mxu0 0
        %1251 = vmatmul.mubr.bf16.gmra.mxu0 %v1145
        %v1252 = vpop.f32.mrf.mxu0
        %v1253 = vadd.f32 0.0, %v1252
        %v1254 = vpop.f32.mrf.mxu0
        %v1255 = vpop.f32.mrf.mxu0
        %v1256 = vadd.f32 0.0, %v1255
        %v1257 = vpop.f32.mrf.mxu0
        %1258 = vdwg.mxu0
        %v1259 = vadd.f32 %v1122, %v1245
        %v1260 = vadd.f32 %v1125, %v1248
        %v1261 = vadd.f32 %v1130, %v1253
        %v1262 = vadd.f32 %v1133, %v1256
        %s1263 = scalar_lea.vmem [#allocation2], 8
        %v1264 = vld [vmem:[%s1263] ss:$4 sm:$0xff]
        %s1265 = scalar_lea.vmem [#allocation2], 40
        %v1266 = vld [vmem:[%s1265] ss:$4 sm:$0xff]
        %s1267 = scalar_lea.vmem [#allocation2], 72
        %v1268 = vld [vmem:[%s1267] ss:$4 sm:$0xff]
        %s1269 = scalar_lea.vmem [#allocation2], 104
        %v1270 = vld [vmem:[%s1269] ss:$4 sm:$0xff]
        %v1271 = vpack.c.bf16 %v1266, %v1264
        %v1272 = vpack.c.bf16 %v1270, %v1268
        %v1273 = vld [vmem:[#allocation4 + $0xc0] sm:$0xf]
        %v1274 = vld [vmem:[#allocation4 + $0xc4] sm:$0xf]
        %v1275 = vld [vmem:[#allocation4 + $0xc8] sm:$0xf]
        %v1276 = vld [vmem:[#allocation4 + $0xcc] sm:$0xf]
        %v1277 = vld [vmem:[#allocation4 + $0xd0] sm:$0xf]
        %v1278 = vld [vmem:[#allocation4 + $0xd4] sm:$0xf]
        %v1279 = vld [vmem:[#allocation4 + $0xd8] sm:$0xf]
        %v1280 = vld [vmem:[#allocation4 + $0xdc] sm:$0xf]
        %v1281 = vld [vmem:[#allocation4 + $0xe0] sm:$0xf]
        %v1282 = vld [vmem:[#allocation4 + $0xe4] sm:$0xf]
        %v1283 = vld [vmem:[#allocation4 + $0xe8] sm:$0xf]
        %v1284 = vld [vmem:[#allocation4 + $0xec] sm:$0xf]
        %v1285 = vld [vmem:[#allocation4 + $0xf0] sm:$0xf]
        %v1286 = vld [vmem:[#allocation4 + $0xf4] sm:$0xf]
        %v1287 = vld [vmem:[#allocation4 + $0xf8] sm:$0xf]
        %v1288 = vld [vmem:[#allocation4 + $0xfc] sm:$0xf]
        %v1305 = vunpack.c.l.b16 %v1273
        %v1306 = vunpack.c.l.b16 %v1274
        %v1307 = vunpack.c.l.b16 %v1275
        %v1308 = vunpack.c.l.b16 %v1276
        %v1309 = vunpack.c.l.b16 %v1277
        %v1310 = vunpack.c.l.b16 %v1278
        %v1311 = vunpack.c.l.b16 %v1279
        %v1312 = vunpack.c.l.b16 %v1280
        %v1313 = vunpack.c.l.b16 %v1281
        %v1314 = vunpack.c.l.b16 %v1282
        %v1315 = vunpack.c.l.b16 %v1283
        %v1316 = vunpack.c.l.b16 %v1284
        %v1317 = vunpack.c.l.b16 %v1285
        %v1318 = vunpack.c.l.b16 %v1286
        %v1319 = vunpack.c.l.b16 %v1287
        %v1320 = vunpack.c.l.b16 %v1288
        %v1321 = vpack.c.b16 %v1306, %v1305
        %v1322 = vpack.c.b16 %v1308, %v1307
        %v1323 = vpack.c.b16 %v1310, %v1309
        %v1324 = vpack.c.b16 %v1312, %v1311
        %v1325 = vpack.c.b16 %v1314, %v1313
        %v1326 = vpack.c.b16 %v1316, %v1315
        %v1327 = vpack.c.b16 %v1318, %v1317
        %v1328 = vpack.c.b16 %v1320, %v1319
        %1337 = vmatprep.subr.bf16.mxu0 0
        %1338 = vmatpush1.bf16.msra.mxu0 %v1328
        %1339 = vmatprep.subr.bf16.mxu0 0
        %1340 = vmatpush1.bf16.msra.mxu0 %v1327
        %1341 = vmatprep.subr.bf16.mxu0 0
        %1342 = vmatpush1.bf16.msra.mxu0 %v1326
        %1343 = vmatprep.subr.bf16.mxu0 0
        %1344 = vmatpush1.bf16.msra.mxu0 %v1325
        %1345 = vmatprep.subr.bf16.mxu0 0
        %1346 = vmatpush1.bf16.msra.mxu0 %v1324
        %1347 = vmatprep.subr.bf16.mxu0 0
        %1348 = vmatpush1.bf16.msra.mxu0 %v1323
        %1349 = vmatprep.subr.bf16.mxu0 0
        %1350 = vmatpush1.bf16.msra.mxu0 %v1322
        %1351 = vmatprep.subr.bf16.mxu0 0
        %1352 = vmatpush1.bf16.msra.mxu0 %v1321
        %1353 = vmatprep.subr.bf16.mxu0 0
        %1354 = vmatpush2.bf16.msra.mxu0 0
        %1355 = vmatprep.subr.bf16.mxu0 0
        %1356 = vmatpush2.bf16.msra.mxu0 0
        %1357 = vmatprep.subr.bf16.mxu0 0
        %1358 = vmatpush2.bf16.msra.mxu0 0
        %1359 = vmatprep.subr.bf16.mxu0 0
        %1360 = vmatpush2.bf16.msra.mxu0 0
        %1361 = vmatprep.subr.bf16.mxu0 0
        %1362 = vmatpush2.bf16.msra.mxu0 0
        %1363 = vmatprep.subr.bf16.mxu0 0
        %1364 = vmatpush2.bf16.msra.mxu0 0
        %1365 = vmatprep.subr.bf16.mxu0 0
        %1366 = vmatpush2.bf16.msra.mxu0 0
        %1367 = vmatprep.subr.bf16.mxu0 0
        %1368 = vmatpush2.bf16.msra.mxu0 0
        %1369 = vmatprep.mubr.bf16.mxu0 0
        %1370 = vmatmul.mubr.bf16.gmra.mxu0 %v1271
        %v1371 = vpop.f32.mrf.mxu0
        %v1372 = vadd.f32 0.0, %v1371
        %v1373 = vpop.f32.mrf.mxu0
        %v1374 = vpop.f32.mrf.mxu0
        %v1375 = vadd.f32 0.0, %v1374
        %v1376 = vpop.f32.mrf.mxu0
        %1377 = vmatprep.mubr.bf16.mxu0 0
        %1378 = vmatmul.mubr.bf16.gmra.mxu0 %v1272
        %v1379 = vpop.f32.mrf.mxu0
        %v1380 = vadd.f32 0.0, %v1379
        %v1381 = vpop.f32.mrf.mxu0
        %v1382 = vpop.f32.mrf.mxu0
        %v1383 = vadd.f32 0.0, %v1382
        %v1384 = vpop.f32.mrf.mxu0
        %1385 = vdwg.mxu0
        %v1386 = vadd.f32 %v1259, %v1372
        %v1387 = vadd.f32 %v1260, %v1375
        %v1388 = vadd.f32 %v1261, %v1380
        %v1389 = vadd.f32 %v1262, %v1383
        %s1390 = scalar_lea.vmem [#allocation2], 9
        %v1391 = vld [vmem:[%s1390] ss:$4 sm:$0xff]
        %s1392 = scalar_lea.vmem [#allocation2], 41
        %v1393 = vld [vmem:[%s1392] ss:$4 sm:$0xff]
        %s1394 = scalar_lea.vmem [#allocation2], 73
        %v1395 = vld [vmem:[%s1394] ss:$4 sm:$0xff]
        %s1396 = scalar_lea.vmem [#allocation2], 105
        %v1397 = vld [vmem:[%s1396] ss:$4 sm:$0xff]
        %v1398 = vpack.c.bf16 %v1393, %v1391
        %v1399 = vpack.c.bf16 %v1397, %v1395
        %v1400 = vld [vmem:[#allocation4 + $0x100] sm:$0xf]
        %v1401 = vld [vmem:[#allocation4 + $0x104] sm:$0xf]
        %v1402 = vld [vmem:[#allocation4 + $0x108] sm:$0xf]
        %v1403 = vld [vmem:[#allocation4 + $0x10c] sm:$0xf]
        %v1404 = vld [vmem:[#allocation4 + $0x110] sm:$0xf]
        %v1405 = vld [vmem:[#allocation4 + $0x114] sm:$0xf]
        %v1406 = vld [vmem:[#allocation4 + $0x118] sm:$0xf]
        %v1407 = vld [vmem:[#allocation4 + $0x11c] sm:$0xf]
        %v1408 = vld [vmem:[#allocation4 + $0x120] sm:$0xf]
        %v1409 = vld [vmem:[#allocation4 + $0x124] sm:$0xf]
        %v1410 = vld [vmem:[#allocation4 + $0x128] sm:$0xf]
        %v1411 = vld [vmem:[#allocation4 + $0x12c] sm:$0xf]
        %v1412 = vld [vmem:[#allocation4 + $0x130] sm:$0xf]
        %v1413 = vld [vmem:[#allocation4 + $0x134] sm:$0xf]
        %v1414 = vld [vmem:[#allocation4 + $0x138] sm:$0xf]
        %v1415 = vld [vmem:[#allocation4 + $0x13c] sm:$0xf]
        %v1432 = vunpack.c.l.b16 %v1400
        %v1433 = vunpack.c.l.b16 %v1401
        %v1434 = vunpack.c.l.b16 %v1402
        %v1435 = vunpack.c.l.b16 %v1403
        %v1436 = vunpack.c.l.b16 %v1404
        %v1437 = vunpack.c.l.b16 %v1405
        %v1438 = vunpack.c.l.b16 %v1406
        %v1439 = vunpack.c.l.b16 %v1407
        %v1440 = vunpack.c.l.b16 %v1408
        %v1441 = vunpack.c.l.b16 %v1409
        %v1442 = vunpack.c.l.b16 %v1410
        %v1443 = vunpack.c.l.b16 %v1411
        %v1444 = vunpack.c.l.b16 %v1412
        %v1445 = vunpack.c.l.b16 %v1413
        %v1446 = vunpack.c.l.b16 %v1414
        %v1447 = vunpack.c.l.b16 %v1415
        %v1448 = vpack.c.b16 %v1433, %v1432
        %v1449 = vpack.c.b16 %v1435, %v1434
        %v1450 = vpack.c.b16 %v1437, %v1436
        %v1451 = vpack.c.b16 %v1439, %v1438
        %v1452 = vpack.c.b16 %v1441, %v1440
        %v1453 = vpack.c.b16 %v1443, %v1442
        %v1454 = vpack.c.b16 %v1445, %v1444
        %v1455 = vpack.c.b16 %v1447, %v1446
        %1464 = vmatprep.subr.bf16.mxu0 0
        %1465 = vmatpush1.bf16.msra.mxu0 %v1455
        %1466 = vmatprep.subr.bf16.mxu0 0
        %1467 = vmatpush1.bf16.msra.mxu0 %v1454
        %1468 = vmatprep.subr.bf16.mxu0 0
        %1469 = vmatpush1.bf16.msra.mxu0 %v1453
        %1470 = vmatprep.subr.bf16.mxu0 0
        %1471 = vmatpush1.bf16.msra.mxu0 %v1452
        %1472 = vmatprep.subr.bf16.mxu0 0
        %1473 = vmatpush1.bf16.msra.mxu0 %v1451
        %1474 = vmatprep.subr.bf16.mxu0 0
        %1475 = vmatpush1.bf16.msra.mxu0 %v1450
        %1476 = vmatprep.subr.bf16.mxu0 0
        %1477 = vmatpush1.bf16.msra.mxu0 %v1449
        %1478 = vmatprep.subr.bf16.mxu0 0
        %1479 = vmatpush1.bf16.msra.mxu0 %v1448
        %1480 = vmatprep.subr.bf16.mxu0 0
        %1481 = vmatpush2.bf16.msra.mxu0 0
        %1482 = vmatprep.subr.bf16.mxu0 0
        %1483 = vmatpush2.bf16.msra.mxu0 0
        %1484 = vmatprep.subr.bf16.mxu0 0
        %1485 = vmatpush2.bf16.msra.mxu0 0
        %1486 = vmatprep.subr.bf16.mxu0 0
        %1487 = vmatpush2.bf16.msra.mxu0 0
        %1488 = vmatprep.subr.bf16.mxu0 0
        %1489 = vmatpush2.bf16.msra.mxu0 0
        %1490 = vmatprep.subr.bf16.mxu0 0
        %1491 = vmatpush2.bf16.msra.mxu0 0
        %1492 = vmatprep.subr.bf16.mxu0 0
        %1493 = vmatpush2.bf16.msra.mxu0 0
        %1494 = vmatprep.subr.bf16.mxu0 0
        %1495 = vmatpush2.bf16.msra.mxu0 0
        %1496 = vmatprep.mubr.bf16.mxu0 0
        %1497 = vmatmul.mubr.bf16.gmra.mxu0 %v1398
        %v1498 = vpop.f32.mrf.mxu0
        %v1499 = vadd.f32 0.0, %v1498
        %v1500 = vpop.f32.mrf.mxu0
        %v1501 = vpop.f32.mrf.mxu0
        %v1502 = vadd.f32 0.0, %v1501
        %v1503 = vpop.f32.mrf.mxu0
        %1504 = vmatprep.mubr.bf16.mxu0 0
        %1505 = vmatmul.mubr.bf16.gmra.mxu0 %v1399
        %v1506 = vpop.f32.mrf.mxu0
        %v1507 = vadd.f32 0.0, %v1506
        %v1508 = vpop.f32.mrf.mxu0
        %v1509 = vpop.f32.mrf.mxu0
        %v1510 = vadd.f32 0.0, %v1509
        %v1511 = vpop.f32.mrf.mxu0
        %1512 = vdwg.mxu0
        %v1513 = vadd.f32 %v1386, %v1499
        %v1514 = vadd.f32 %v1387, %v1502
        %v1515 = vadd.f32 %v1388, %v1507
        %v1516 = vadd.f32 %v1389, %v1510
        %s1517 = scalar_lea.vmem [#allocation2], 10
        %v1518 = vld [vmem:[%s1517] ss:$4 sm:$0xff]
        %s1519 = scalar_lea.vmem [#allocation2], 42
        %v1520 = vld [vmem:[%s1519] ss:$4 sm:$0xff]
        %s1521 = scalar_lea.vmem [#allocation2], 74
        %v1522 = vld [vmem:[%s1521] ss:$4 sm:$0xff]
        %s1523 = scalar_lea.vmem [#allocation2], 106
        %v1524 = vld [vmem:[%s1523] ss:$4 sm:$0xff]
        %v1525 = vpack.c.bf16 %v1520, %v1518
        %v1526 = vpack.c.bf16 %v1524, %v1522
        %v1527 = vld [vmem:[#allocation4 + $0x140] sm:$0xf]
        %v1528 = vld [vmem:[#allocation4 + $0x144] sm:$0xf]
        %v1529 = vld [vmem:[#allocation4 + $0x148] sm:$0xf]
        %v1530 = vld [vmem:[#allocation4 + $0x14c] sm:$0xf]
        %v1531 = vld [vmem:[#allocation4 + $0x150] sm:$0xf]
        %v1532 = vld [vmem:[#allocation4 + $0x154] sm:$0xf]
        %v1533 = vld [vmem:[#allocation4 + $0x158] sm:$0xf]
        %v1534 = vld [vmem:[#allocation4 + $0x15c] sm:$0xf]
        %v1535 = vld [vmem:[#allocation4 + $0x160] sm:$0xf]
        %v1536 = vld [vmem:[#allocation4 + $0x164] sm:$0xf]
        %v1537 = vld [vmem:[#allocation4 + $0x168] sm:$0xf]
        %v1538 = vld [vmem:[#allocation4 + $0x16c] sm:$0xf]
        %v1539 = vld [vmem:[#allocation4 + $0x170] sm:$0xf]
        %v1540 = vld [vmem:[#allocation4 + $0x174] sm:$0xf]
        %v1541 = vld [vmem:[#allocation4 + $0x178] sm:$0xf]
        %v1542 = vld [vmem:[#allocation4 + $0x17c] sm:$0xf]
        %v1559 = vunpack.c.l.b16 %v1527
        %v1560 = vunpack.c.l.b16 %v1528
        %v1561 = vunpack.c.l.b16 %v1529
        %v1562 = vunpack.c.l.b16 %v1530
        %v1563 = vunpack.c.l.b16 %v1531
        %v1564 = vunpack.c.l.b16 %v1532
        %v1565 = vunpack.c.l.b16 %v1533
        %v1566 = vunpack.c.l.b16 %v1534
        %v1567 = vunpack.c.l.b16 %v1535
        %v1568 = vunpack.c.l.b16 %v1536
        %v1569 = vunpack.c.l.b16 %v1537
        %v1570 = vunpack.c.l.b16 %v1538
        %v1571 = vunpack.c.l.b16 %v1539
        %v1572 = vunpack.c.l.b16 %v1540
        %v1573 = vunpack.c.l.b16 %v1541
        %v1574 = vunpack.c.l.b16 %v1542
        %v1575 = vpack.c.b16 %v1560, %v1559
        %v1576 = vpack.c.b16 %v1562, %v1561
        %v1577 = vpack.c.b16 %v1564, %v1563
        %v1578 = vpack.c.b16 %v1566, %v1565
        %v1579 = vpack.c.b16 %v1568, %v1567
        %v1580 = vpack.c.b16 %v1570, %v1569
        %v1581 = vpack.c.b16 %v1572, %v1571
        %v1582 = vpack.c.b16 %v1574, %v1573
        %1591 = vmatprep.subr.bf16.mxu0 0
        %1592 = vmatpush1.bf16.msra.mxu0 %v1582
        %1593 = vmatprep.subr.bf16.mxu0 0
        %1594 = vmatpush1.bf16.msra.mxu0 %v1581
        %1595 = vmatprep.subr.bf16.mxu0 0
        %1596 = vmatpush1.bf16.msra.mxu0 %v1580
        %1597 = vmatprep.subr.bf16.mxu0 0
        %1598 = vmatpush1.bf16.msra.mxu0 %v1579
        %1599 = vmatprep.subr.bf16.mxu0 0
        %1600 = vmatpush1.bf16.msra.mxu0 %v1578
        %1601 = vmatprep.subr.bf16.mxu0 0
        %1602 = vmatpush1.bf16.msra.mxu0 %v1577
        %1603 = vmatprep.subr.bf16.mxu0 0
        %1604 = vmatpush1.bf16.msra.mxu0 %v1576
        %1605 = vmatprep.subr.bf16.mxu0 0
        %1606 = vmatpush1.bf16.msra.mxu0 %v1575
        %1607 = vmatprep.subr.bf16.mxu0 0
        %1608 = vmatpush2.bf16.msra.mxu0 0
        %1609 = vmatprep.subr.bf16.mxu0 0
        %1610 = vmatpush2.bf16.msra.mxu0 0
        %1611 = vmatprep.subr.bf16.mxu0 0
        %1612 = vmatpush2.bf16.msra.mxu0 0
        %1613 = vmatprep.subr.bf16.mxu0 0
        %1614 = vmatpush2.bf16.msra.mxu0 0
        %1615 = vmatprep.subr.bf16.mxu0 0
        %1616 = vmatpush2.bf16.msra.mxu0 0
        %1617 = vmatprep.subr.bf16.mxu0 0
        %1618 = vmatpush2.bf16.msra.mxu0 0
        %1619 = vmatprep.subr.bf16.mxu0 0
        %1620 = vmatpush2.bf16.msra.mxu0 0
        %1621 = vmatprep.subr.bf16.mxu0 0
        %1622 = vmatpush2.bf16.msra.mxu0 0
        %1623 = vmatprep.mubr.bf16.mxu0 0
        %1624 = vmatmul.mubr.bf16.gmra.mxu0 %v1525
        %v1625 = vpop.f32.mrf.mxu0
        %v1626 = vadd.f32 0.0, %v1625
        %v1627 = vpop.f32.mrf.mxu0
        %v1628 = vpop.f32.mrf.mxu0
        %v1629 = vadd.f32 0.0, %v1628
        %v1630 = vpop.f32.mrf.mxu0
        %1631 = vmatprep.mubr.bf16.mxu0 0
        %1632 = vmatmul.mubr.bf16.gmra.mxu0 %v1526
        %v1633 = vpop.f32.mrf.mxu0
        %v1634 = vadd.f32 0.0, %v1633
        %v1635 = vpop.f32.mrf.mxu0
        %v1636 = vpop.f32.mrf.mxu0
        %v1637 = vadd.f32 0.0, %v1636
        %v1638 = vpop.f32.mrf.mxu0
        %1639 = vdwg.mxu0
        %v1640 = vadd.f32 %v1513, %v1626
        %v1641 = vadd.f32 %v1514, %v1629
        %v1642 = vadd.f32 %v1515, %v1634
        %v1643 = vadd.f32 %v1516, %v1637
        %s1644 = scalar_lea.vmem [#allocation2], 11
        %v1645 = vld [vmem:[%s1644] ss:$4 sm:$0xff]
        %s1646 = scalar_lea.vmem [#allocation2], 43
        %v1647 = vld [vmem:[%s1646] ss:$4 sm:$0xff]
        %s1648 = scalar_lea.vmem [#allocation2], 75
        %v1649 = vld [vmem:[%s1648] ss:$4 sm:$0xff]
        %s1650 = scalar_lea.vmem [#allocation2], 107
        %v1651 = vld [vmem:[%s1650] ss:$4 sm:$0xff]
        %v1652 = vpack.c.bf16 %v1647, %v1645
        %v1653 = vpack.c.bf16 %v1651, %v1649
        %v1654 = vld [vmem:[#allocation4 + $0x180] sm:$0xf]
        %v1655 = vld [vmem:[#allocation4 + $0x184] sm:$0xf]
        %v1656 = vld [vmem:[#allocation4 + $0x188] sm:$0xf]
        %v1657 = vld [vmem:[#allocation4 + $0x18c] sm:$0xf]
        %v1658 = vld [vmem:[#allocation4 + $0x190] sm:$0xf]
        %v1659 = vld [vmem:[#allocation4 + $0x194] sm:$0xf]
        %v1660 = vld [vmem:[#allocation4 + $0x198] sm:$0xf]
        %v1661 = vld [vmem:[#allocation4 + $0x19c] sm:$0xf]
        %v1662 = vld [vmem:[#allocation4 + $0x1a0] sm:$0xf]
        %v1663 = vld [vmem:[#allocation4 + $0x1a4] sm:$0xf]
        %v1664 = vld [vmem:[#allocation4 + $0x1a8] sm:$0xf]
        %v1665 = vld [vmem:[#allocation4 + $0x1ac] sm:$0xf]
        %v1666 = vld [vmem:[#allocation4 + $0x1b0] sm:$0xf]
        %v1667 = vld [vmem:[#allocation4 + $0x1b4] sm:$0xf]
        %v1668 = vld [vmem:[#allocation4 + $0x1b8] sm:$0xf]
        %v1669 = vld [vmem:[#allocation4 + $0x1bc] sm:$0xf]
        %v1686 = vunpack.c.l.b16 %v1654
        %v1687 = vunpack.c.l.b16 %v1655
        %v1688 = vunpack.c.l.b16 %v1656
        %v1689 = vunpack.c.l.b16 %v1657
        %v1690 = vunpack.c.l.b16 %v1658
        %v1691 = vunpack.c.l.b16 %v1659
        %v1692 = vunpack.c.l.b16 %v1660
        %v1693 = vunpack.c.l.b16 %v1661
        %v1694 = vunpack.c.l.b16 %v1662
        %v1695 = vunpack.c.l.b16 %v1663
        %v1696 = vunpack.c.l.b16 %v1664
        %v1697 = vunpack.c.l.b16 %v1665
        %v1698 = vunpack.c.l.b16 %v1666
        %v1699 = vunpack.c.l.b16 %v1667
        %v1700 = vunpack.c.l.b16 %v1668
        %v1701 = vunpack.c.l.b16 %v1669
        %v1702 = vpack.c.b16 %v1687, %v1686
        %v1703 = vpack.c.b16 %v1689, %v1688
        %v1704 = vpack.c.b16 %v1691, %v1690
        %v1705 = vpack.c.b16 %v1693, %v1692
        %v1706 = vpack.c.b16 %v1695, %v1694
        %v1707 = vpack.c.b16 %v1697, %v1696
        %v1708 = vpack.c.b16 %v1699, %v1698
        %v1709 = vpack.c.b16 %v1701, %v1700
        %1718 = vmatprep.subr.bf16.mxu0 0
        %1719 = vmatpush1.bf16.msra.mxu0 %v1709
        %1720 = vmatprep.subr.bf16.mxu0 0
        %1721 = vmatpush1.bf16.msra.mxu0 %v1708
        %1722 = vmatprep.subr.bf16.mxu0 0
        %1723 = vmatpush1.bf16.msra.mxu0 %v1707
        %1724 = vmatprep.subr.bf16.mxu0 0
        %1725 = vmatpush1.bf16.msra.mxu0 %v1706
        %1726 = vmatprep.subr.bf16.mxu0 0
        %1727 = vmatpush1.bf16.msra.mxu0 %v1705
        %1728 = vmatprep.subr.bf16.mxu0 0
        %1729 = vmatpush1.bf16.msra.mxu0 %v1704
        %1730 = vmatprep.subr.bf16.mxu0 0
        %1731 = vmatpush1.bf16.msra.mxu0 %v1703
        %1732 = vmatprep.subr.bf16.mxu0 0
        %1733 = vmatpush1.bf16.msra.mxu0 %v1702
        %1734 = vmatprep.subr.bf16.mxu0 0
        %1735 = vmatpush2.bf16.msra.mxu0 0
        %1736 = vmatprep.subr.bf16.mxu0 0
        %1737 = vmatpush2.bf16.msra.mxu0 0
        %1738 = vmatprep.subr.bf16.mxu0 0
        %1739 = vmatpush2.bf16.msra.mxu0 0
        %1740 = vmatprep.subr.bf16.mxu0 0
        %1741 = vmatpush2.bf16.msra.mxu0 0
        %1742 = vmatprep.subr.bf16.mxu0 0
        %1743 = vmatpush2.bf16.msra.mxu0 0
        %1744 = vmatprep.subr.bf16.mxu0 0
        %1745 = vmatpush2.bf16.msra.mxu0 0
        %1746 = vmatprep.subr.bf16.mxu0 0
        %1747 = vmatpush2.bf16.msra.mxu0 0
        %1748 = vmatprep.subr.bf16.mxu0 0
        %1749 = vmatpush2.bf16.msra.mxu0 0
        %1750 = vmatprep.mubr.bf16.mxu0 0
        %1751 = vmatmul.mubr.bf16.gmra.mxu0 %v1652
        %v1752 = vpop.f32.mrf.mxu0
        %v1753 = vadd.f32 0.0, %v1752
        %v1754 = vpop.f32.mrf.mxu0
        %v1755 = vpop.f32.mrf.mxu0
        %v1756 = vadd.f32 0.0, %v1755
        %v1757 = vpop.f32.mrf.mxu0
        %1758 = vmatprep.mubr.bf16.mxu0 0
        %1759 = vmatmul.mubr.bf16.gmra.mxu0 %v1653
        %v1760 = vpop.f32.mrf.mxu0
        %v1761 = vadd.f32 0.0, %v1760
        %v1762 = vpop.f32.mrf.mxu0
        %v1763 = vpop.f32.mrf.mxu0
        %v1764 = vadd.f32 0.0, %v1763
        %v1765 = vpop.f32.mrf.mxu0
        %1766 = vdwg.mxu0
        %v1767 = vadd.f32 %v1640, %v1753
        %v1768 = vadd.f32 %v1641, %v1756
        %v1769 = vadd.f32 %v1642, %v1761
        %v1770 = vadd.f32 %v1643, %v1764
        %v1771 = vld [vmem:[%s5] sm:$0x1]
        %v1773 = vlaneseq
        %v1774 = vshrl.u32 %v1773, 7
        %v1775 = vsub.s32 0, %v1774
        %v1776 = vrot.slane %v1771, %v1775
        %v1778 = vadd.f32 %v1767, %v1776
        %v1779 = vadd.f32 %v1768, %v1776
        %v1780 = vadd.f32 %v1769, %v1776
        %v1781 = vadd.f32 %v1770, %v1776
        %v1782 = vmax.f32 %v1778, 0.0
        %v1783 = vmax.f32 %v1779, 0.0
        %v1784 = vmax.f32 %v1780, 0.0
        %v1785 = vmax.f32 %v1781, 0.0
        %v1786 = vsel %vm889, 1, 0
        %vm1787 = vcmp.eq.s32.totalorder %v1786, 1
        %v1788 = vsel %vm1787, %v1782, %v1778
        %v1789 = vsel %vm1787, %v1783, %v1779
        %v1790 = vsel %vm1787, %v1784, %v1780
        %v1791 = vsel %vm1787, %v1785, %v1781
        %v1792 = vadd.f32 %v1788, %v1789
        %v1793 = vadd.f32 %v1792, %v1790
        %v1794 = vadd.f32 %v1793, %v1791
        %v1795 = vrot.slane %v1794, 4
        %v1796 = vadd.f32 %v1794, %v1795
        %v1797 = vrot.slane %v1796, 2
        %v1798 = vadd.f32 %v1796, %v1797
        %v1799 = vrot.slane %v1798, 1
        %v1800 = vadd.f32 %v1798, %v1799
        %v1801 = vmul.f32 %v1800, 0.03125
        %v1802 = vmax.f32 %v1788, %v1789
        %v1803 = vmax.f32 %v1790, %v1791
        %v1804 = vmax.f32 %v1802, %v1803
        %v1805 = vrot.slane %v1804, 4
        %v1806 = vmax.f32 %v1804, %v1805
        %v1807 = vrot.slane %v1806, 2
        %v1808 = vmax.f32 %v1806, %v1807
        %v1809 = vrot.slane %v1808, 1
        %v1810 = vmax.f32 %v1808, %v1809
        %v1811 = vld [vmem:[%s6] sm:$0xff]
        %v1812 = vld [vmem:[%s6 + $0x8] sm:$0xff]
        %v1813 = vld [vmem:[%s6 + $0x10] sm:$0xff]
        %v1814 = vld [vmem:[%s6 + $0x18] sm:$0xff]
        %v1815 = vld [vmem:[%s6 + $0x20] sm:$0xff]
        %v1816 = vld [vmem:[%s6 + $0x28] sm:$0xff]
        %v1817 = vld [vmem:[%s6 + $0x30] sm:$0xff]
        %v1818 = vld [vmem:[%s6 + $0x38] sm:$0xff]
        %v1819 = vld [vmem:[%s6 + $0x40] sm:$0xff]
        %v1820 = vld [vmem:[%s6 + $0x48] sm:$0xff]
        %v1821 = vld [vmem:[%s6 + $0x50] sm:$0xff]
        %v1822 = vld [vmem:[%s6 + $0x58] sm:$0xff]
        %v1823 = vld [vmem:[%s6 + $0x60] sm:$0xff]
        %v1824 = vld [vmem:[%s6 + $0x68] sm:$0xff]
        %v1825 = vld [vmem:[%s6 + $0x70] sm:$0xff]
        %v1826 = vld [vmem:[%s6 + $0x78] sm:$0xff]
        %v1827 = vld [vmem:[%s7] sm:$0x1]
        %1828 = vmatprep.subr.mxu0 0.0
        %1829 = vmatpush1.msra.mxu0 %v1826
        %1830 = vmatprep.subr.mxu0 0.0
        %1831 = vmatpush1.msra.mxu0 %v1825
        %1832 = vmatprep.subr.mxu0 0.0
        %1833 = vmatpush1.msra.mxu0 %v1824
        %1834 = vmatprep.subr.mxu0 0.0
        %1835 = vmatpush1.msra.mxu0 %v1823
        %1836 = vmatprep.subr.mxu0 0.0
        %1837 = vmatpush1.msra.mxu0 %v1822
        %1838 = vmatprep.subr.mxu0 0.0
        %1839 = vmatpush1.msra.mxu0 %v1821
        %1840 = vmatprep.subr.mxu0 0.0
        %1841 = vmatpush1.msra.mxu0 %v1820
        %1842 = vmatprep.subr.mxu0 0.0
        %1843 = vmatpush1.msra.mxu0 %v1819
        %1844 = vmatprep.subr.mxu0 0.0
        %1845 = vmatpush1.msra.mxu0 %v1818
        %1846 = vmatprep.subr.mxu0 0.0
        %1847 = vmatpush1.msra.mxu0 %v1817
        %1848 = vmatprep.subr.mxu0 0.0
        %1849 = vmatpush1.msra.mxu0 %v1816
        %1850 = vmatprep.subr.mxu0 0.0
        %1851 = vmatpush1.msra.mxu0 %v1815
        %1852 = vmatprep.subr.mxu0 0.0
        %1853 = vmatpush1.msra.mxu0 %v1814
        %1854 = vmatprep.subr.mxu0 0.0
        %1855 = vmatpush1.msra.mxu0 %v1813
        %1856 = vmatprep.subr.mxu0 0.0
        %1857 = vmatpush1.msra.mxu0 %v1812
        %1858 = vmatprep.subr.mxu0 0.0
        %1859 = vmatpush1.msra.mxu0 %v1811
        %1860 = vmatprep.subr.mxu0 0.0
        %1861 = vmatpush2.msra.mxu0 0.0
        %1862 = vmatprep.subr.mxu0 0.0
        %1863 = vmatpush2.msra.mxu0 0.0
        %1864 = vmatprep.subr.mxu0 0.0
        %1865 = vmatpush2.msra.mxu0 0.0
        %1866 = vmatprep.subr.mxu0 0.0
        %1867 = vmatpush2.msra.mxu0 0.0
        %1868 = vmatprep.subr.mxu0 0.0
        %1869 = vmatpush2.msra.mxu0 0.0
        %1870 = vmatprep.subr.mxu0 0.0
        %1871 = vmatpush2.msra.mxu0 0.0
        %1872 = vmatprep.subr.mxu0 0.0
        %1873 = vmatpush2.msra.mxu0 0.0
        %1874 = vmatprep.subr.mxu0 0.0
        %1875 = vmatpush2.msra.mxu0 0.0
        %1876 = vmatprep.subr.mxu0 0.0
        %1877 = vmatpush2.msra.mxu0 0.0
        %1878 = vmatprep.subr.mxu0 0.0
        %1879 = vmatpush2.msra.mxu0 0.0
        %1880 = vmatprep.subr.mxu0 0.0
        %1881 = vmatpush2.msra.mxu0 0.0
        %1882 = vmatprep.subr.mxu0 0.0
        %1883 = vmatpush2.msra.mxu0 0.0
        %1884 = vmatprep.subr.mxu0 0.0
        %1885 = vmatpush2.msra.mxu0 0.0
        %1886 = vmatprep.subr.mxu0 0.0
        %1887 = vmatpush2.msra.mxu0 0.0
        %1888 = vmatprep.subr.mxu0 0.0
        %1889 = vmatpush2.msra.mxu0 0.0
        %1890 = vmatprep.subr.mxu0 0.0
        %1891 = vmatpush2.msra.mxu0 0.0
        %1892 = vmatprep.mubr.f32.mxu0 0.0
        %1893 = vmatmul.mubr.f32.gmra.mxu0 %v1801
        %v1894 = vpop.f32.mrf.mxu0
        %v1895 = vadd.f32 %v1827, %v1894
        %v1896 = vpop.f32.mrf.mxu0
        %1897 = vdwg.mxu0
        %v1898 = vmax.f32 %v1895, 0.0
        %v1899 = vld [vmem:[%s8] sm:$0xff]
        %v1900 = vld [vmem:[%s9] sm:$0x1]
        %v1902 = vsel %vm413, %v1898, 0
        %1904 = vmatprep.subr.mxu0 0.0
        %1905 = vmatpush1.msra.mxu0 0.0
        %1906 = vmatprep.subr.mxu0 0.0
        %1907 = vmatpush1.msra.mxu0 0.0
        %1908 = vmatprep.subr.mxu0 0.0
        %1909 = vmatpush1.msra.mxu0 0.0
        %1910 = vmatprep.subr.mxu0 0.0
        %1911 = vmatpush1.msra.mxu0 0.0
        %1912 = vmatprep.subr.mxu0 0.0
        %1913 = vmatpush1.msra.mxu0 0.0
        %1914 = vmatprep.subr.mxu0 0.0
        %1915 = vmatpush1.msra.mxu0 0.0
        %1916 = vmatprep.subr.mxu0 0.0
        %1917 = vmatpush1.msra.mxu0 0.0
        %1918 = vmatprep.subr.mxu0 0.0
        %1919 = vmatpush1.msra.mxu0 0.0
        %1920 = vmatprep.subr.mxu0 0.0
        %1921 = vmatpush1.msra.mxu0 0.0
        %1922 = vmatprep.subr.mxu0 0.0
        %1923 = vmatpush1.msra.mxu0 0.0
        %1924 = vmatprep.subr.mxu0 0.0
        %1925 = vmatpush1.msra.mxu0 0.0
        %1926 = vmatprep.subr.mxu0 0.0
        %1927 = vmatpush1.msra.mxu0 0.0
        %1928 = vmatprep.subr.mxu0 0.0
        %1929 = vmatpush1.msra.mxu0 0.0
        %1930 = vmatprep.subr.mxu0 0.0
        %1931 = vmatpush1.msra.mxu0 0.0
        %1932 = vmatprep.subr.mxu0 0.0
        %1933 = vmatpush1.msra.mxu0 0.0
        %1934 = vmatprep.subr.mxu0 0.0
        %1935 = vmatpush1.msra.mxu0 %v1899
        %1936 = vmatprep.subr.mxu0 0.0
        %1937 = vmatpush2.msra.mxu0 0.0
        %1938 = vmatprep.subr.mxu0 0.0
        %1939 = vmatpush2.msra.mxu0 0.0
        %1940 = vmatprep.subr.mxu0 0.0
        %1941 = vmatpush2.msra.mxu0 0.0
        %1942 = vmatprep.subr.mxu0 0.0
        %1943 = vmatpush2.msra.mxu0 0.0
        %1944 = vmatprep.subr.mxu0 0.0
        %1945 = vmatpush2.msra.mxu0 0.0
        %1946 = vmatprep.subr.mxu0 0.0
        %1947 = vmatpush2.msra.mxu0 0.0
        %1948 = vmatprep.subr.mxu0 0.0
        %1949 = vmatpush2.msra.mxu0 0.0
        %1950 = vmatprep.subr.mxu0 0.0
        %1951 = vmatpush2.msra.mxu0 0.0
        %1952 = vmatprep.subr.mxu0 0.0
        %1953 = vmatpush2.msra.mxu0 0.0
        %1954 = vmatprep.subr.mxu0 0.0
        %1955 = vmatpush2.msra.mxu0 0.0
        %1956 = vmatprep.subr.mxu0 0.0
        %1957 = vmatpush2.msra.mxu0 0.0
        %1958 = vmatprep.subr.mxu0 0.0
        %1959 = vmatpush2.msra.mxu0 0.0
        %1960 = vmatprep.subr.mxu0 0.0
        %1961 = vmatpush2.msra.mxu0 0.0
        %1962 = vmatprep.subr.mxu0 0.0
        %1963 = vmatpush2.msra.mxu0 0.0
        %1964 = vmatprep.subr.mxu0 0.0
        %1965 = vmatpush2.msra.mxu0 0.0
        %1966 = vmatprep.subr.mxu0 0.0
        %1967 = vmatpush2.msra.mxu0 0.0
        %1968 = vmatprep.mubr.f32.mxu0 0.0
        %1969 = vmatmul.mubr.f32.gmra.mxu0 %v1902
        %v1970 = vpop.f32.mrf.mxu0
        %v1971 = vadd.f32 %v1900, %v1970
        %v1972 = vpop.f32.mrf.mxu0
        %1973 = vdwg.mxu0
        %1974 = vmatprep.subr.mxu0 0.0
        %1975 = vmatpush1.msra.mxu0 %v1826
        %1976 = vmatprep.subr.mxu0 0.0
        %1977 = vmatpush1.msra.mxu0 %v1825
        %1978 = vmatprep.subr.mxu0 0.0
        %1979 = vmatpush1.msra.mxu0 %v1824
        %1980 = vmatprep.subr.mxu0 0.0
        %1981 = vmatpush1.msra.mxu0 %v1823
        %1982 = vmatprep.subr.mxu0 0.0
        %1983 = vmatpush1.msra.mxu0 %v1822
        %1984 = vmatprep.subr.mxu0 0.0
        %1985 = vmatpush1.msra.mxu0 %v1821
        %1986 = vmatprep.subr.mxu0 0.0
        %1987 = vmatpush1.msra.mxu0 %v1820
        %1988 = vmatprep.subr.mxu0 0.0
        %1989 = vmatpush1.msra.mxu0 %v1819
        %1990 = vmatprep.subr.mxu0 0.0
        %1991 = vmatpush1.msra.mxu0 %v1818
        %1992 = vmatprep.subr.mxu0 0.0
        %1993 = vmatpush1.msra.mxu0 %v1817
        %1994 = vmatprep.subr.mxu0 0.0
        %1995 = vmatpush1.msra.mxu0 %v1816
        %1996 = vmatprep.subr.mxu0 0.0
        %1997 = vmatpush1.msra.mxu0 %v1815
        %1998 = vmatprep.subr.mxu0 0.0
        %1999 = vmatpush1.msra.mxu0 %v1814
        %2000 = vmatprep.subr.mxu0 0.0
        %2001 = vmatpush1.msra.mxu0 %v1813
        %2002 = vmatprep.subr.mxu0 0.0
        %2003 = vmatpush1.msra.mxu0 %v1812
        %2004 = vmatprep.subr.mxu0 0.0
        %2005 = vmatpush1.msra.mxu0 %v1811
        %2006 = vmatprep.subr.mxu0 0.0
        %2007 = vmatpush2.msra.mxu0 0.0
        %2008 = vmatprep.subr.mxu0 0.0
        %2009 = vmatpush2.msra.mxu0 0.0
        %2010 = vmatprep.subr.mxu0 0.0
        %2011 = vmatpush2.msra.mxu0 0.0
        %2012 = vmatprep.subr.mxu0 0.0
        %2013 = vmatpush2.msra.mxu0 0.0
        %2014 = vmatprep.subr.mxu0 0.0
        %2015 = vmatpush2.msra.mxu0 0.0
        %2016 = vmatprep.subr.mxu0 0.0
        %2017 = vmatpush2.msra.mxu0 0.0
        %2018 = vmatprep.subr.mxu0 0.0
        %2019 = vmatpush2.msra.mxu0 0.0
        %2020 = vmatprep.subr.mxu0 0.0
        %2021 = vmatpush2.msra.mxu0 0.0
        %2022 = vmatprep.subr.mxu0 0.0
        %2023 = vmatpush2.msra.mxu0 0.0
        %2024 = vmatprep.subr.mxu0 0.0
        %2025 = vmatpush2.msra.mxu0 0.0
        %2026 = vmatprep.subr.mxu0 0.0
        %2027 = vmatpush2.msra.mxu0 0.0
        %2028 = vmatprep.subr.mxu0 0.0
        %2029 = vmatpush2.msra.mxu0 0.0
        %2030 = vmatprep.subr.mxu0 0.0
        %2031 = vmatpush2.msra.mxu0 0.0
        %2032 = vmatprep.subr.mxu0 0.0
        %2033 = vmatpush2.msra.mxu0 0.0
        %2034 = vmatprep.subr.mxu0 0.0
        %2035 = vmatpush2.msra.mxu0 0.0
        %2036 = vmatprep.subr.mxu0 0.0
        %2037 = vmatpush2.msra.mxu0 0.0
        %2038 = vmatprep.mubr.f32.mxu0 0.0
        %2039 = vmatmul.mubr.f32.gmra.mxu0 %v1810
        %v2040 = vpop.f32.mrf.mxu0
        %v2041 = vadd.f32 %v1827, %v2040
        %v2042 = vpop.f32.mrf.mxu0
        %2043 = vdwg.mxu0
        %v2044 = vmax.f32 %v2041, 0.0
        %v2046 = vsel %vm413, %v2044, 0
        %2048 = vmatprep.subr.mxu0 0.0
        %2049 = vmatpush1.msra.mxu0 0.0
        %2050 = vmatprep.subr.mxu0 0.0
        %2051 = vmatpush1.msra.mxu0 0.0
        %2052 = vmatprep.subr.mxu0 0.0
        %2053 = vmatpush1.msra.mxu0 0.0
        %2054 = vmatprep.subr.mxu0 0.0
        %2055 = vmatpush1.msra.mxu0 0.0
        %2056 = vmatprep.subr.mxu0 0.0
        %2057 = vmatpush1.msra.mxu0 0.0
        %2058 = vmatprep.subr.mxu0 0.0
        %2059 = vmatpush1.msra.mxu0 0.0
        %2060 = vmatprep.subr.mxu0 0.0
        %2061 = vmatpush1.msra.mxu0 0.0
        %2062 = vmatprep.subr.mxu0 0.0
        %2063 = vmatpush1.msra.mxu0 0.0
        %2064 = vmatprep.subr.mxu0 0.0
        %2065 = vmatpush1.msra.mxu0 0.0
        %2066 = vmatprep.subr.mxu0 0.0
        %2067 = vmatpush1.msra.mxu0 0.0
        %2068 = vmatprep.subr.mxu0 0.0
        %2069 = vmatpush1.msra.mxu0 0.0
        %2070 = vmatprep.subr.mxu0 0.0
        %2071 = vmatpush1.msra.mxu0 0.0
        %2072 = vmatprep.subr.mxu0 0.0
        %2073 = vmatpush1.msra.mxu0 0.0
        %2074 = vmatprep.subr.mxu0 0.0
        %2075 = vmatpush1.msra.mxu0 0.0
        %2076 = vmatprep.subr.mxu0 0.0
        %2077 = vmatpush1.msra.mxu0 0.0
        %2078 = vmatprep.subr.mxu0 0.0
        %2079 = vmatpush1.msra.mxu0 %v1899
        %2080 = vmatprep.subr.mxu0 0.0
        %2081 = vmatpush2.msra.mxu0 0.0
        %2082 = vmatprep.subr.mxu0 0.0
        %2083 = vmatpush2.msra.mxu0 0.0
        %2084 = vmatprep.subr.mxu0 0.0
        %2085 = vmatpush2.msra.mxu0 0.0
        %2086 = vmatprep.subr.mxu0 0.0
        %2087 = vmatpush2.msra.mxu0 0.0
        %2088 = vmatprep.subr.mxu0 0.0
        %2089 = vmatpush2.msra.mxu0 0.0
        %2090 = vmatprep.subr.mxu0 0.0
        %2091 = vmatpush2.msra.mxu0 0.0
        %2092 = vmatprep.subr.mxu0 0.0
        %2093 = vmatpush2.msra.mxu0 0.0
        %2094 = vmatprep.subr.mxu0 0.0
        %2095 = vmatpush2.msra.mxu0 0.0
        %2096 = vmatprep.subr.mxu0 0.0
        %2097 = vmatpush2.msra.mxu0 0.0
        %2098 = vmatprep.subr.mxu0 0.0
        %2099 = vmatpush2.msra.mxu0 0.0
        %2100 = vmatprep.subr.mxu0 0.0
        %2101 = vmatpush2.msra.mxu0 0.0
        %2102 = vmatprep.subr.mxu0 0.0
        %2103 = vmatpush2.msra.mxu0 0.0
        %2104 = vmatprep.subr.mxu0 0.0
        %2105 = vmatpush2.msra.mxu0 0.0
        %2106 = vmatprep.subr.mxu0 0.0
        %2107 = vmatpush2.msra.mxu0 0.0
        %2108 = vmatprep.subr.mxu0 0.0
        %2109 = vmatpush2.msra.mxu0 0.0
        %2110 = vmatprep.subr.mxu0 0.0
        %2111 = vmatpush2.msra.mxu0 0.0
        %2112 = vmatprep.mubr.f32.mxu0 0.0
        %2113 = vmatmul.mubr.f32.gmra.mxu0 %v2046
        %v2114 = vpop.f32.mrf.mxu0
        %v2115 = vadd.f32 %v1900, %v2114
        %v2116 = vpop.f32.mrf.mxu0
        %2117 = vdwg.mxu0
        %v2118 = vadd.f32 %v1971, %v2115
        %v2119 = vxor.u32 %v2118, 2147483648
        %v2120 = vmul.f32 %v2119, 1.442695
        %v2121 = vpow.pop %v2120
        %v2122 = vadd.f32 %v2121, 1.0
        %v2123 = vrcp.pop %v2122
        %v2124 = vmul.f32 1.0, %v2123
        %v2125 = vsel %vm889, %v2124, 1.0
        %v2126 = vlaneseq
        %v2127 = vshrl.u32 %v2126, 7
        %v2128 = vsub.s32 0, %v2127
        %v2129 = vrot.slane %v2125, %v2128
        %v2130 = vmul.f32 %v1788, %v2129
        %v2131 = vmul.f32 %v1789, %v2129
        %v2132 = vmul.f32 %v1790, %v2129
        %v2133 = vmul.f32 %v1791, %v2129
        %2134 = vst [vmem:[#allocation3 + $0x8] sm:$0xff] %v2130
        %2135 = vst [vmem:[#allocation3 + $0x10] sm:$0xff] %v2131
        %2136 = vst [vmem:[#allocation3 + $0x18] sm:$0xff] %v2132
        %2137 = vst [vmem:[#allocation3 + $0x20] sm:$0xff] %v2133
        %s2138 = scalar_lea.vmem [#allocation3], 5
        %v2139 = vld [vmem:[%s2138] ss:$4 sm:$0xff]
        %v2140 = vpack.c.bf16 %v2139, %v2139
        %v2141 = vld [vmem:[#allocation4 + $0x1c0] sm:$0xf]
        %v2142 = vld [vmem:[#allocation4 + $0x1c4] sm:$0xf]
        %v2143 = vld [vmem:[#allocation4 + $0x1c8] sm:$0xf]
        %v2144 = vld [vmem:[#allocation4 + $0x1cc] sm:$0xf]
        %v2145 = vld [vmem:[#allocation4 + $0x1d0] sm:$0xf]
        %v2146 = vld [vmem:[#allocation4 + $0x1d4] sm:$0xf]
        %v2147 = vld [vmem:[#allocation4 + $0x1d8] sm:$0xf]
        %v2148 = vld [vmem:[#allocation4 + $0x1dc] sm:$0xf]
        %v2149 = vld [vmem:[#allocation4 + $0x1e0] sm:$0xf]
        %v2150 = vld [vmem:[#allocation4 + $0x1e4] sm:$0xf]
        %v2151 = vld [vmem:[#allocation4 + $0x1e8] sm:$0xf]
        %v2152 = vld [vmem:[#allocation4 + $0x1ec] sm:$0xf]
        %v2153 = vld [vmem:[#allocation4 + $0x1f0] sm:$0xf]
        %v2154 = vld [vmem:[#allocation4 + $0x1f4] sm:$0xf]
        %v2155 = vld [vmem:[#allocation4 + $0x1f8] sm:$0xf]
        %v2156 = vld [vmem:[#allocation4 + $0x1fc] sm:$0xf]
        %s2157 = scalar_lea.vmem [#allocation3], 6
        %v2158 = vld [vmem:[%s2157] ss:$4 sm:$0xff]
        %v2159 = vpack.c.bf16 %v2158, %v2158
        %v2160 = vld [vmem:[#allocation4 + $0x200] sm:$0xf]
        %v2161 = vld [vmem:[#allocation4 + $0x204] sm:$0xf]
        %v2162 = vld [vmem:[#allocation4 + $0x208] sm:$0xf]
        %v2163 = vld [vmem:[#allocation4 + $0x20c] sm:$0xf]
        %v2164 = vld [vmem:[#allocation4 + $0x210] sm:$0xf]
        %v2165 = vld [vmem:[#allocation4 + $0x214] sm:$0xf]
        %v2166 = vld [vmem:[#allocation4 + $0x218] sm:$0xf]
        %v2167 = vld [vmem:[#allocation4 + $0x21c] sm:$0xf]
        %v2168 = vld [vmem:[#allocation4 + $0x220] sm:$0xf]
        %v2169 = vld [vmem:[#allocation4 + $0x224] sm:$0xf]
        %v2170 = vld [vmem:[#allocation4 + $0x228] sm:$0xf]
        %v2171 = vld [vmem:[#allocation4 + $0x22c] sm:$0xf]
        %v2172 = vld [vmem:[#allocation4 + $0x230] sm:$0xf]
        %v2173 = vld [vmem:[#allocation4 + $0x234] sm:$0xf]
        %v2174 = vld [vmem:[#allocation4 + $0x238] sm:$0xf]
        %v2175 = vld [vmem:[#allocation4 + $0x23c] sm:$0xf]
        %v2192 = vunpack.c.l.b16 %v2160
        %v2193 = vunpack.c.l.b16 %v2161
        %v2194 = vunpack.c.l.b16 %v2162
        %v2195 = vunpack.c.l.b16 %v2163
        %v2196 = vunpack.c.l.b16 %v2164
        %v2197 = vunpack.c.l.b16 %v2165
        %v2198 = vunpack.c.l.b16 %v2166
        %v2199 = vunpack.c.l.b16 %v2167
        %v2200 = vunpack.c.l.b16 %v2168
        %v2201 = vunpack.c.l.b16 %v2169
        %v2202 = vunpack.c.l.b16 %v2170
        %v2203 = vunpack.c.l.b16 %v2171
        %v2204 = vunpack.c.l.b16 %v2172
        %v2205 = vunpack.c.l.b16 %v2173
        %v2206 = vunpack.c.l.b16 %v2174
        %v2207 = vunpack.c.l.b16 %v2175
        %v2208 = vpack.c.b16 %v2193, %v2192
        %v2209 = vpack.c.b16 %v2195, %v2194
        %v2210 = vpack.c.b16 %v2197, %v2196
        %v2211 = vpack.c.b16 %v2199, %v2198
        %v2212 = vpack.c.b16 %v2201, %v2200
        %v2213 = vpack.c.b16 %v2203, %v2202
        %v2214 = vpack.c.b16 %v2205, %v2204
        %v2215 = vpack.c.b16 %v2207, %v2206
        %2224 = vmatprep.subr.bf16.mxu0 0
        %2225 = vmatpush1.bf16.msra.mxu0 %v2215
        %2226 = vmatprep.subr.bf16.mxu0 0
        %2227 = vmatpush1.bf16.msra.mxu0 %v2214
        %2228 = vmatprep.subr.bf16.mxu0 0
        %2229 = vmatpush1.bf16.msra.mxu0 %v2213
        %2230 = vmatprep.subr.bf16.mxu0 0
        %2231 = vmatpush1.bf16.msra.mxu0 %v2212
        %2232 = vmatprep.subr.bf16.mxu0 0
        %2233 = vmatpush1.bf16.msra.mxu0 %v2211
        %2234 = vmatprep.subr.bf16.mxu0 0
        %2235 = vmatpush1.bf16.msra.mxu0 %v2210
        %2236 = vmatprep.subr.bf16.mxu0 0
        %2237 = vmatpush1.bf16.msra.mxu0 %v2209
        %2238 = vmatprep.subr.bf16.mxu0 0
        %2239 = vmatpush1.bf16.msra.mxu0 %v2208
        %2240 = vmatprep.subr.bf16.mxu0 0
        %2241 = vmatpush2.bf16.msra.mxu0 0
        %2242 = vmatprep.subr.bf16.mxu0 0
        %2243 = vmatpush2.bf16.msra.mxu0 0
        %2244 = vmatprep.subr.bf16.mxu0 0
        %2245 = vmatpush2.bf16.msra.mxu0 0
        %2246 = vmatprep.subr.bf16.mxu0 0
        %2247 = vmatpush2.bf16.msra.mxu0 0
        %2248 = vmatprep.subr.bf16.mxu0 0
        %2249 = vmatpush2.bf16.msra.mxu0 0
        %2250 = vmatprep.subr.bf16.mxu0 0
        %2251 = vmatpush2.bf16.msra.mxu0 0
        %2252 = vmatprep.subr.bf16.mxu0 0
        %2253 = vmatpush2.bf16.msra.mxu0 0
        %2254 = vmatprep.subr.bf16.mxu0 0
        %2255 = vmatpush2.bf16.msra.mxu0 0
        %2256 = vmatprep.mubr.bf16.mxu0 0
        %2257 = vmatmul.mubr.bf16.gmra.mxu0 %v2159
        %v2258 = vpop.f32.mrf.mxu0
        %v2259 = vadd.f32 0.0, %v2258
        %v2260 = vpop.f32.mrf.mxu0
        %v2261 = vpop.f32.mrf.mxu0
        %v2262 = vpop.f32.mrf.mxu0
        %2263 = vdwg.mxu0
        %v2280 = vunpack.c.l.b16 %v2141
        %v2281 = vunpack.c.l.b16 %v2142
        %v2282 = vunpack.c.l.b16 %v2143
        %v2283 = vunpack.c.l.b16 %v2144
        %v2284 = vunpack.c.l.b16 %v2145
        %v2285 = vunpack.c.l.b16 %v2146
        %v2286 = vunpack.c.l.b16 %v2147
        %v2287 = vunpack.c.l.b16 %v2148
        %v2288 = vunpack.c.l.b16 %v2149
        %v2289 = vunpack.c.l.b16 %v2150
        %v2290 = vunpack.c.l.b16 %v2151
        %v2291 = vunpack.c.l.b16 %v2152
        %v2292 = vunpack.c.l.b16 %v2153
        %v2293 = vunpack.c.l.b16 %v2154
        %v2294 = vunpack.c.l.b16 %v2155
        %v2295 = vunpack.c.l.b16 %v2156
        %v2296 = vpack.c.b16 %v2281, %v2280
        %v2297 = vpack.c.b16 %v2283, %v2282
        %v2298 = vpack.c.b16 %v2285, %v2284
        %v2299 = vpack.c.b16 %v2287, %v2286
        %v2300 = vpack.c.b16 %v2289, %v2288
        %v2301 = vpack.c.b16 %v2291, %v2290
        %v2302 = vpack.c.b16 %v2293, %v2292
        %v2303 = vpack.c.b16 %v2295, %v2294
        %2312 = vmatprep.subr.bf16.mxu0 0
        %2313 = vmatpush1.bf16.msra.mxu0 %v2303
        %2314 = vmatprep.subr.bf16.mxu0 0
        %2315 = vmatpush1.bf16.msra.mxu0 %v2302
        %2316 = vmatprep.subr.bf16.mxu0 0
        %2317 = vmatpush1.bf16.msra.mxu0 %v2301
        %2318 = vmatprep.subr.bf16.mxu0 0
        %2319 = vmatpush1.bf16.msra.mxu0 %v2300
        %2320 = vmatprep.subr.bf16.mxu0 0
        %2321 = vmatpush1.bf16.msra.mxu0 %v2299
        %2322 = vmatprep.subr.bf16.mxu0 0
        %2323 = vmatpush1.bf16.msra.mxu0 %v2298
        %2324 = vmatprep.subr.bf16.mxu0 0
        %2325 = vmatpush1.bf16.msra.mxu0 %v2297
        %2326 = vmatprep.subr.bf16.mxu0 0
        %2327 = vmatpush1.bf16.msra.mxu0 %v2296
        %2328 = vmatprep.subr.bf16.mxu0 0
        %2329 = vmatpush2.bf16.msra.mxu0 0
        %2330 = vmatprep.subr.bf16.mxu0 0
        %2331 = vmatpush2.bf16.msra.mxu0 0
        %2332 = vmatprep.subr.bf16.mxu0 0
        %2333 = vmatpush2.bf16.msra.mxu0 0
        %2334 = vmatprep.subr.bf16.mxu0 0
        %2335 = vmatpush2.bf16.msra.mxu0 0
        %2336 = vmatprep.subr.bf16.mxu0 0
        %2337 = vmatpush2.bf16.msra.mxu0 0
        %2338 = vmatprep.subr.bf16.mxu0 0
        %2339 = vmatpush2.bf16.msra.mxu0 0
        %2340 = vmatprep.subr.bf16.mxu0 0
        %2341 = vmatpush2.bf16.msra.mxu0 0
        %2342 = vmatprep.subr.bf16.mxu0 0
        %2343 = vmatpush2.bf16.msra.mxu0 0
        %2344 = vmatprep.mubr.bf16.mxu0 0
        %2345 = vmatmul.mubr.bf16.gmra.mxu0 %v2140
        %v2346 = vpop.f32.mrf.mxu0
        %v2347 = vadd.f32 %v2259, %v2346
        %v2348 = vpop.f32.mrf.mxu0
        %v2349 = vpop.f32.mrf.mxu0
        %v2350 = vpop.f32.mrf.mxu0
        %2351 = vdwg.mxu0
        %s2352 = scalar_lea.vmem [#allocation3], 7
        %v2353 = vld [vmem:[%s2352] ss:$4 sm:$0xff]
        %v2354 = vpack.c.bf16 %v2353, %v2353
        %v2355 = vld [vmem:[#allocation4 + $0x240] sm:$0xf]
        %v2356 = vld [vmem:[#allocation4 + $0x244] sm:$0xf]
        %v2357 = vld [vmem:[#allocation4 + $0x248] sm:$0xf]
        %v2358 = vld [vmem:[#allocation4 + $0x24c] sm:$0xf]
        %v2359 = vld [vmem:[#allocation4 + $0x250] sm:$0xf]
        %v2360 = vld [vmem:[#allocation4 + $0x254] sm:$0xf]
        %v2361 = vld [vmem:[#allocation4 + $0x258] sm:$0xf]
        %v2362 = vld [vmem:[#allocation4 + $0x25c] sm:$0xf]
        %v2363 = vld [vmem:[#allocation4 + $0x260] sm:$0xf]
        %v2364 = vld [vmem:[#allocation4 + $0x264] sm:$0xf]
        %v2365 = vld [vmem:[#allocation4 + $0x268] sm:$0xf]
        %v2366 = vld [vmem:[#allocation4 + $0x26c] sm:$0xf]
        %v2367 = vld [vmem:[#allocation4 + $0x270] sm:$0xf]
        %v2368 = vld [vmem:[#allocation4 + $0x274] sm:$0xf]
        %v2369 = vld [vmem:[#allocation4 + $0x278] sm:$0xf]
        %v2370 = vld [vmem:[#allocation4 + $0x27c] sm:$0xf]
        %v2387 = vunpack.c.l.b16 %v2355
        %v2388 = vunpack.c.l.b16 %v2356
        %v2389 = vunpack.c.l.b16 %v2357
        %v2390 = vunpack.c.l.b16 %v2358
        %v2391 = vunpack.c.l.b16 %v2359
        %v2392 = vunpack.c.l.b16 %v2360
        %v2393 = vunpack.c.l.b16 %v2361
        %v2394 = vunpack.c.l.b16 %v2362
        %v2395 = vunpack.c.l.b16 %v2363
        %v2396 = vunpack.c.l.b16 %v2364
        %v2397 = vunpack.c.l.b16 %v2365
        %v2398 = vunpack.c.l.b16 %v2366
        %v2399 = vunpack.c.l.b16 %v2367
        %v2400 = vunpack.c.l.b16 %v2368
        %v2401 = vunpack.c.l.b16 %v2369
        %v2402 = vunpack.c.l.b16 %v2370
        %v2403 = vpack.c.b16 %v2388, %v2387
        %v2404 = vpack.c.b16 %v2390, %v2389
        %v2405 = vpack.c.b16 %v2392, %v2391
        %v2406 = vpack.c.b16 %v2394, %v2393
        %v2407 = vpack.c.b16 %v2396, %v2395
        %v2408 = vpack.c.b16 %v2398, %v2397
        %v2409 = vpack.c.b16 %v2400, %v2399
        %v2410 = vpack.c.b16 %v2402, %v2401
        %2419 = vmatprep.subr.bf16.mxu0 0
        %2420 = vmatpush1.bf16.msra.mxu0 %v2410
        %2421 = vmatprep.subr.bf16.mxu0 0
        %2422 = vmatpush1.bf16.msra.mxu0 %v2409
        %2423 = vmatprep.subr.bf16.mxu0 0
        %2424 = vmatpush1.bf16.msra.mxu0 %v2408
        %2425 = vmatprep.subr.bf16.mxu0 0
        %2426 = vmatpush1.bf16.msra.mxu0 %v2407
        %2427 = vmatprep.subr.bf16.mxu0 0
        %2428 = vmatpush1.bf16.msra.mxu0 %v2406
        %2429 = vmatprep.subr.bf16.mxu0 0
        %2430 = vmatpush1.bf16.msra.mxu0 %v2405
        %2431 = vmatprep.subr.bf16.mxu0 0
        %2432 = vmatpush1.bf16.msra.mxu0 %v2404
        %2433 = vmatprep.subr.bf16.mxu0 0
        %2434 = vmatpush1.bf16.msra.mxu0 %v2403
        %2435 = vmatprep.subr.bf16.mxu0 0
        %2436 = vmatpush2.bf16.msra.mxu0 0
        %2437 = vmatprep.subr.bf16.mxu0 0
        %2438 = vmatpush2.bf16.msra.mxu0 0
        %2439 = vmatprep.subr.bf16.mxu0 0
        %2440 = vmatpush2.bf16.msra.mxu0 0
        %2441 = vmatprep.subr.bf16.mxu0 0
        %2442 = vmatpush2.bf16.msra.mxu0 0
        %2443 = vmatprep.subr.bf16.mxu0 0
        %2444 = vmatpush2.bf16.msra.mxu0 0
        %2445 = vmatprep.subr.bf16.mxu0 0
        %2446 = vmatpush2.bf16.msra.mxu0 0
        %2447 = vmatprep.subr.bf16.mxu0 0
        %2448 = vmatpush2.bf16.msra.mxu0 0
        %2449 = vmatprep.subr.bf16.mxu0 0
        %2450 = vmatpush2.bf16.msra.mxu0 0
        %2451 = vmatprep.mubr.bf16.mxu0 0
        %2452 = vmatmul.mubr.bf16.gmra.mxu0 %v2354
        %v2453 = vpop.f32.mrf.mxu0
        %v2454 = vadd.f32 0.0, %v2453
        %v2455 = vpop.f32.mrf.mxu0
        %v2456 = vpop.f32.mrf.mxu0
        %v2457 = vpop.f32.mrf.mxu0
        %2458 = vdwg.mxu0
        %v2459 = vadd.f32 %v2347, %v2454
        %s2460 = scalar_lea.vmem [#allocation3], 8
        %v2461 = vld [vmem:[%s2460] ss:$4 sm:$0xff]
        %v2462 = vpack.c.bf16 %v2461, %v2461
        %v2463 = vld [vmem:[#allocation4 + $0x280] sm:$0xf]
        %v2464 = vld [vmem:[#allocation4 + $0x284] sm:$0xf]
        %v2465 = vld [vmem:[#allocation4 + $0x288] sm:$0xf]
        %v2466 = vld [vmem:[#allocation4 + $0x28c] sm:$0xf]
        %v2467 = vld [vmem:[#allocation4 + $0x290] sm:$0xf]
        %v2468 = vld [vmem:[#allocation4 + $0x294] sm:$0xf]
        %v2469 = vld [vmem:[#allocation4 + $0x298] sm:$0xf]
        %v2470 = vld [vmem:[#allocation4 + $0x29c] sm:$0xf]
        %v2471 = vld [vmem:[#allocation4 + $0x2a0] sm:$0xf]
        %v2472 = vld [vmem:[#allocation4 + $0x2a4] sm:$0xf]
        %v2473 = vld [vmem:[#allocation4 + $0x2a8] sm:$0xf]
        %v2474 = vld [vmem:[#allocation4 + $0x2ac] sm:$0xf]
        %v2475 = vld [vmem:[#allocation4 + $0x2b0] sm:$0xf]
        %v2476 = vld [vmem:[#allocation4 + $0x2b4] sm:$0xf]
        %v2477 = vld [vmem:[#allocation4 + $0x2b8] sm:$0xf]
        %v2478 = vld [vmem:[#allocation4 + $0x2bc] sm:$0xf]
        %v2495 = vunpack.c.l.b16 %v2463
        %v2496 = vunpack.c.l.b16 %v2464
        %v2497 = vunpack.c.l.b16 %v2465
        %v2498 = vunpack.c.l.b16 %v2466
        %v2499 = vunpack.c.l.b16 %v2467
        %v2500 = vunpack.c.l.b16 %v2468
        %v2501 = vunpack.c.l.b16 %v2469
        %v2502 = vunpack.c.l.b16 %v2470
        %v2503 = vunpack.c.l.b16 %v2471
        %v2504 = vunpack.c.l.b16 %v2472
        %v2505 = vunpack.c.l.b16 %v2473
        %v2506 = vunpack.c.l.b16 %v2474
        %v2507 = vunpack.c.l.b16 %v2475
        %v2508 = vunpack.c.l.b16 %v2476
        %v2509 = vunpack.c.l.b16 %v2477
        %v2510 = vunpack.c.l.b16 %v2478
        %v2511 = vpack.c.b16 %v2496, %v2495
        %v2512 = vpack.c.b16 %v2498, %v2497
        %v2513 = vpack.c.b16 %v2500, %v2499
        %v2514 = vpack.c.b16 %v2502, %v2501
        %v2515 = vpack.c.b16 %v2504, %v2503
        %v2516 = vpack.c.b16 %v2506, %v2505
        %v2517 = vpack.c.b16 %v2508, %v2507
        %v2518 = vpack.c.b16 %v2510, %v2509
        %2527 = vmatprep.subr.bf16.mxu0 0
        %2528 = vmatpush1.bf16.msra.mxu0 %v2518
        %2529 = vmatprep.subr.bf16.mxu0 0
        %2530 = vmatpush1.bf16.msra.mxu0 %v2517
        %2531 = vmatprep.subr.bf16.mxu0 0
        %2532 = vmatpush1.bf16.msra.mxu0 %v2516
        %2533 = vmatprep.subr.bf16.mxu0 0
        %2534 = vmatpush1.bf16.msra.mxu0 %v2515
        %2535 = vmatprep.subr.bf16.mxu0 0
        %2536 = vmatpush1.bf16.msra.mxu0 %v2514
        %2537 = vmatprep.subr.bf16.mxu0 0
        %2538 = vmatpush1.bf16.msra.mxu0 %v2513
        %2539 = vmatprep.subr.bf16.mxu0 0
        %2540 = vmatpush1.bf16.msra.mxu0 %v2512
        %2541 = vmatprep.subr.bf16.mxu0 0
        %2542 = vmatpush1.bf16.msra.mxu0 %v2511
        %2543 = vmatprep.subr.bf16.mxu0 0
        %2544 = vmatpush2.bf16.msra.mxu0 0
        %2545 = vmatprep.subr.bf16.mxu0 0
        %2546 = vmatpush2.bf16.msra.mxu0 0
        %2547 = vmatprep.subr.bf16.mxu0 0
        %2548 = vmatpush2.bf16.msra.mxu0 0
        %2549 = vmatprep.subr.bf16.mxu0 0
        %2550 = vmatpush2.bf16.msra.mxu0 0
        %2551 = vmatprep.subr.bf16.mxu0 0
        %2552 = vmatpush2.bf16.msra.mxu0 0
        %2553 = vmatprep.subr.bf16.mxu0 0
        %2554 = vmatpush2.bf16.msra.mxu0 0
        %2555 = vmatprep.subr.bf16.mxu0 0
        %2556 = vmatpush2.bf16.msra.mxu0 0
        %2557 = vmatprep.subr.bf16.mxu0 0
        %2558 = vmatpush2.bf16.msra.mxu0 0
        %2559 = vmatprep.mubr.bf16.mxu0 0
        %2560 = vmatmul.mubr.bf16.gmra.mxu0 %v2462
        %v2561 = vpop.f32.mrf.mxu0
        %v2562 = vadd.f32 0.0, %v2561
        %v2563 = vpop.f32.mrf.mxu0
        %v2564 = vpop.f32.mrf.mxu0
        %v2565 = vpop.f32.mrf.mxu0
        %2566 = vdwg.mxu0
        %v2567 = vadd.f32 %v2459, %v2562
        %s2568 = scalar_lea.vmem [#allocation3], 9
        %v2569 = vld [vmem:[%s2568] ss:$4 sm:$0xff]
        %v2570 = vpack.c.bf16 %v2569, %v2569
        %v2571 = vld [vmem:[#allocation4 + $0x2c0] sm:$0xf]
        %v2572 = vld [vmem:[#allocation4 + $0x2c4] sm:$0xf]
        %v2573 = vld [vmem:[#allocation4 + $0x2c8] sm:$0xf]
        %v2574 = vld [vmem:[#allocation4 + $0x2cc] sm:$0xf]
        %v2575 = vld [vmem:[#allocation4 + $0x2d0] sm:$0xf]
        %v2576 = vld [vmem:[#allocation4 + $0x2d4] sm:$0xf]
        %v2577 = vld [vmem:[#allocation4 + $0x2d8] sm:$0xf]
        %v2578 = vld [vmem:[#allocation4 + $0x2dc] sm:$0xf]
        %v2579 = vld [vmem:[#allocation4 + $0x2e0] sm:$0xf]
        %v2580 = vld [vmem:[#allocation4 + $0x2e4] sm:$0xf]
        %v2581 = vld [vmem:[#allocation4 + $0x2e8] sm:$0xf]
        %v2582 = vld [vmem:[#allocation4 + $0x2ec] sm:$0xf]
        %v2583 = vld [vmem:[#allocation4 + $0x2f0] sm:$0xf]
        %v2584 = vld [vmem:[#allocation4 + $0x2f4] sm:$0xf]
        %v2585 = vld [vmem:[#allocation4 + $0x2f8] sm:$0xf]
        %v2586 = vld [vmem:[#allocation4 + $0x2fc] sm:$0xf]
        %v2603 = vunpack.c.l.b16 %v2571
        %v2604 = vunpack.c.l.b16 %v2572
        %v2605 = vunpack.c.l.b16 %v2573
        %v2606 = vunpack.c.l.b16 %v2574
        %v2607 = vunpack.c.l.b16 %v2575
        %v2608 = vunpack.c.l.b16 %v2576
        %v2609 = vunpack.c.l.b16 %v2577
        %v2610 = vunpack.c.l.b16 %v2578
        %v2611 = vunpack.c.l.b16 %v2579
        %v2612 = vunpack.c.l.b16 %v2580
        %v2613 = vunpack.c.l.b16 %v2581
        %v2614 = vunpack.c.l.b16 %v2582
        %v2615 = vunpack.c.l.b16 %v2583
        %v2616 = vunpack.c.l.b16 %v2584
        %v2617 = vunpack.c.l.b16 %v2585
        %v2618 = vunpack.c.l.b16 %v2586
        %v2619 = vpack.c.b16 %v2604, %v2603
        %v2620 = vpack.c.b16 %v2606, %v2605
        %v2621 = vpack.c.b16 %v2608, %v2607
        %v2622 = vpack.c.b16 %v2610, %v2609
        %v2623 = vpack.c.b16 %v2612, %v2611
        %v2624 = vpack.c.b16 %v2614, %v2613
        %v2625 = vpack.c.b16 %v2616, %v2615
        %v2626 = vpack.c.b16 %v2618, %v2617
        %2635 = vmatprep.subr.bf16.mxu0 0
        %2636 = vmatpush1.bf16.msra.mxu0 %v2626
        %2637 = vmatprep.subr.bf16.mxu0 0
        %2638 = vmatpush1.bf16.msra.mxu0 %v2625
        %2639 = vmatprep.subr.bf16.mxu0 0
        %2640 = vmatpush1.bf16.msra.mxu0 %v2624
        %2641 = vmatprep.subr.bf16.mxu0 0
        %2642 = vmatpush1.bf16.msra.mxu0 %v2623
        %2643 = vmatprep.subr.bf16.mxu0 0
        %2644 = vmatpush1.bf16.msra.mxu0 %v2622
        %2645 = vmatprep.subr.bf16.mxu0 0
        %2646 = vmatpush1.bf16.msra.mxu0 %v2621
        %2647 = vmatprep.subr.bf16.mxu0 0
        %2648 = vmatpush1.bf16.msra.mxu0 %v2620
        %2649 = vmatprep.subr.bf16.mxu0 0
        %2650 = vmatpush1.bf16.msra.mxu0 %v2619
        %2651 = vmatprep.subr.bf16.mxu0 0
        %2652 = vmatpush2.bf16.msra.mxu0 0
        %2653 = vmatprep.subr.bf16.mxu0 0
        %2654 = vmatpush2.bf16.msra.mxu0 0
        %2655 = vmatprep.subr.bf16.mxu0 0
        %2656 = vmatpush2.bf16.msra.mxu0 0
        %2657 = vmatprep.subr.bf16.mxu0 0
        %2658 = vmatpush2.bf16.msra.mxu0 0
        %2659 = vmatprep.subr.bf16.mxu0 0
        %2660 = vmatpush2.bf16.msra.mxu0 0
        %2661 = vmatprep.subr.bf16.mxu0 0
        %2662 = vmatpush2.bf16.msra.mxu0 0
        %2663 = vmatprep.subr.bf16.mxu0 0
        %2664 = vmatpush2.bf16.msra.mxu0 0
        %2665 = vmatprep.subr.bf16.mxu0 0
        %2666 = vmatpush2.bf16.msra.mxu0 0
        %2667 = vmatprep.mubr.bf16.mxu0 0
        %2668 = vmatmul.mubr.bf16.gmra.mxu0 %v2570
        %v2669 = vpop.f32.mrf.mxu0
        %v2670 = vadd.f32 0.0, %v2669
        %v2671 = vpop.f32.mrf.mxu0
        %v2672 = vpop.f32.mrf.mxu0
        %v2673 = vpop.f32.mrf.mxu0
        %2674 = vdwg.mxu0
        %v2675 = vadd.f32 %v2567, %v2670
        %s2676 = scalar_lea.vmem [#allocation3], 10
        %v2677 = vld [vmem:[%s2676] ss:$4 sm:$0xff]
        %v2678 = vpack.c.bf16 %v2677, %v2677
        %v2679 = vld [vmem:[#allocation4 + $0x300] sm:$0xf]
        %v2680 = vld [vmem:[#allocation4 + $0x304] sm:$0xf]
        %v2681 = vld [vmem:[#allocation4 + $0x308] sm:$0xf]
        %v2682 = vld [vmem:[#allocation4 + $0x30c] sm:$0xf]
        %v2683 = vld [vmem:[#allocation4 + $0x310] sm:$0xf]
        %v2684 = vld [vmem:[#allocation4 + $0x314] sm:$0xf]
        %v2685 = vld [vmem:[#allocation4 + $0x318] sm:$0xf]
        %v2686 = vld [vmem:[#allocation4 + $0x31c] sm:$0xf]
        %v2687 = vld [vmem:[#allocation4 + $0x320] sm:$0xf]
        %v2688 = vld [vmem:[#allocation4 + $0x324] sm:$0xf]
        %v2689 = vld [vmem:[#allocation4 + $0x328] sm:$0xf]
        %v2690 = vld [vmem:[#allocation4 + $0x32c] sm:$0xf]
        %v2691 = vld [vmem:[#allocation4 + $0x330] sm:$0xf]
        %v2692 = vld [vmem:[#allocation4 + $0x334] sm:$0xf]
        %v2693 = vld [vmem:[#allocation4 + $0x338] sm:$0xf]
        %v2694 = vld [vmem:[#allocation4 + $0x33c] sm:$0xf]
        %v2711 = vunpack.c.l.b16 %v2679
        %v2712 = vunpack.c.l.b16 %v2680
        %v2713 = vunpack.c.l.b16 %v2681
        %v2714 = vunpack.c.l.b16 %v2682
        %v2715 = vunpack.c.l.b16 %v2683
        %v2716 = vunpack.c.l.b16 %v2684
        %v2717 = vunpack.c.l.b16 %v2685
        %v2718 = vunpack.c.l.b16 %v2686
        %v2719 = vunpack.c.l.b16 %v2687
        %v2720 = vunpack.c.l.b16 %v2688
        %v2721 = vunpack.c.l.b16 %v2689
        %v2722 = vunpack.c.l.b16 %v2690
        %v2723 = vunpack.c.l.b16 %v2691
        %v2724 = vunpack.c.l.b16 %v2692
        %v2725 = vunpack.c.l.b16 %v2693
        %v2726 = vunpack.c.l.b16 %v2694
        %v2727 = vpack.c.b16 %v2712, %v2711
        %v2728 = vpack.c.b16 %v2714, %v2713
        %v2729 = vpack.c.b16 %v2716, %v2715
        %v2730 = vpack.c.b16 %v2718, %v2717
        %v2731 = vpack.c.b16 %v2720, %v2719
        %v2732 = vpack.c.b16 %v2722, %v2721
        %v2733 = vpack.c.b16 %v2724, %v2723
        %v2734 = vpack.c.b16 %v2726, %v2725
        %2743 = vmatprep.subr.bf16.mxu0 0
        %2744 = vmatpush1.bf16.msra.mxu0 %v2734
        %2745 = vmatprep.subr.bf16.mxu0 0
        %2746 = vmatpush1.bf16.msra.mxu0 %v2733
        %2747 = vmatprep.subr.bf16.mxu0 0
        %2748 = vmatpush1.bf16.msra.mxu0 %v2732
        %2749 = vmatprep.subr.bf16.mxu0 0
        %2750 = vmatpush1.bf16.msra.mxu0 %v2731
        %2751 = vmatprep.subr.bf16.mxu0 0
        %2752 = vmatpush1.bf16.msra.mxu0 %v2730
        %2753 = vmatprep.subr.bf16.mxu0 0
        %2754 = vmatpush1.bf16.msra.mxu0 %v2729
        %2755 = vmatprep.subr.bf16.mxu0 0
        %2756 = vmatpush1.bf16.msra.mxu0 %v2728
        %2757 = vmatprep.subr.bf16.mxu0 0
        %2758 = vmatpush1.bf16.msra.mxu0 %v2727
        %2759 = vmatprep.subr.bf16.mxu0 0
        %2760 = vmatpush2.bf16.msra.mxu0 0
        %2761 = vmatprep.subr.bf16.mxu0 0
        %2762 = vmatpush2.bf16.msra.mxu0 0
        %2763 = vmatprep.subr.bf16.mxu0 0
        %2764 = vmatpush2.bf16.msra.mxu0 0
        %2765 = vmatprep.subr.bf16.mxu0 0
        %2766 = vmatpush2.bf16.msra.mxu0 0
        %2767 = vmatprep.subr.bf16.mxu0 0
        %2768 = vmatpush2.bf16.msra.mxu0 0
        %2769 = vmatprep.subr.bf16.mxu0 0
        %2770 = vmatpush2.bf16.msra.mxu0 0
        %2771 = vmatprep.subr.bf16.mxu0 0
        %2772 = vmatpush2.bf16.msra.mxu0 0
        %2773 = vmatprep.subr.bf16.mxu0 0
        %2774 = vmatpush2.bf16.msra.mxu0 0
        %2775 = vmatprep.mubr.bf16.mxu0 0
        %2776 = vmatmul.mubr.bf16.gmra.mxu0 %v2678
        %v2777 = vpop.f32.mrf.mxu0
        %v2778 = vadd.f32 0.0, %v2777
        %v2779 = vpop.f32.mrf.mxu0
        %v2780 = vpop.f32.mrf.mxu0
        %v2781 = vpop.f32.mrf.mxu0
        %2782 = vdwg.mxu0
        %v2783 = vadd.f32 %v2675, %v2778
        %s2784 = scalar_lea.vmem [#allocation3], 11
        %v2785 = vld [vmem:[%s2784] ss:$4 sm:$0xff]
        %v2786 = vpack.c.bf16 %v2785, %v2785
        %v2787 = vld [vmem:[#allocation4 + $0x340] sm:$0xf]
        %v2788 = vld [vmem:[#allocation4 + $0x344] sm:$0xf]
        %v2789 = vld [vmem:[#allocation4 + $0x348] sm:$0xf]
        %v2790 = vld [vmem:[#allocation4 + $0x34c] sm:$0xf]
        %v2791 = vld [vmem:[#allocation4 + $0x350] sm:$0xf]
        %v2792 = vld [vmem:[#allocation4 + $0x354] sm:$0xf]
        %v2793 = vld [vmem:[#allocation4 + $0x358] sm:$0xf]
        %v2794 = vld [vmem:[#allocation4 + $0x35c] sm:$0xf]
        %v2795 = vld [vmem:[#allocation4 + $0x360] sm:$0xf]
        %v2796 = vld [vmem:[#allocation4 + $0x364] sm:$0xf]
        %v2797 = vld [vmem:[#allocation4 + $0x368] sm:$0xf]
        %v2798 = vld [vmem:[#allocation4 + $0x36c] sm:$0xf]
        %v2799 = vld [vmem:[#allocation4 + $0x370] sm:$0xf]
        %v2800 = vld [vmem:[#allocation4 + $0x374] sm:$0xf]
        %v2801 = vld [vmem:[#allocation4 + $0x378] sm:$0xf]
        %v2802 = vld [vmem:[#allocation4 + $0x37c] sm:$0xf]
        %v2819 = vunpack.c.l.b16 %v2787
        %v2820 = vunpack.c.l.b16 %v2788
        %v2821 = vunpack.c.l.b16 %v2789
        %v2822 = vunpack.c.l.b16 %v2790
        %v2823 = vunpack.c.l.b16 %v2791
        %v2824 = vunpack.c.l.b16 %v2792
        %v2825 = vunpack.c.l.b16 %v2793
        %v2826 = vunpack.c.l.b16 %v2794
        %v2827 = vunpack.c.l.b16 %v2795
        %v2828 = vunpack.c.l.b16 %v2796
        %v2829 = vunpack.c.l.b16 %v2797
        %v2830 = vunpack.c.l.b16 %v2798
        %v2831 = vunpack.c.l.b16 %v2799
        %v2832 = vunpack.c.l.b16 %v2800
        %v2833 = vunpack.c.l.b16 %v2801
        %v2834 = vunpack.c.l.b16 %v2802
        %v2835 = vpack.c.b16 %v2820, %v2819
        %v2836 = vpack.c.b16 %v2822, %v2821
        %v2837 = vpack.c.b16 %v2824, %v2823
        %v2838 = vpack.c.b16 %v2826, %v2825
        %v2839 = vpack.c.b16 %v2828, %v2827
        %v2840 = vpack.c.b16 %v2830, %v2829
        %v2841 = vpack.c.b16 %v2832, %v2831
        %v2842 = vpack.c.b16 %v2834, %v2833
        %2851 = vmatprep.subr.bf16.mxu0 0
        %2852 = vmatpush1.bf16.msra.mxu0 %v2842
        %2853 = vmatprep.subr.bf16.mxu0 0
        %2854 = vmatpush1.bf16.msra.mxu0 %v2841
        %2855 = vmatprep.subr.bf16.mxu0 0
        %2856 = vmatpush1.bf16.msra.mxu0 %v2840
        %2857 = vmatprep.subr.bf16.mxu0 0
        %2858 = vmatpush1.bf16.msra.mxu0 %v2839
        %2859 = vmatprep.subr.bf16.mxu0 0
        %2860 = vmatpush1.bf16.msra.mxu0 %v2838
        %2861 = vmatprep.subr.bf16.mxu0 0
        %2862 = vmatpush1.bf16.msra.mxu0 %v2837
        %2863 = vmatprep.subr.bf16.mxu0 0
        %2864 = vmatpush1.bf16.msra.mxu0 %v2836
        %2865 = vmatprep.subr.bf16.mxu0 0
        %2866 = vmatpush1.bf16.msra.mxu0 %v2835
        %2867 = vmatprep.subr.bf16.mxu0 0
        %2868 = vmatpush2.bf16.msra.mxu0 0
        %2869 = vmatprep.subr.bf16.mxu0 0
        %2870 = vmatpush2.bf16.msra.mxu0 0
        %2871 = vmatprep.subr.bf16.mxu0 0
        %2872 = vmatpush2.bf16.msra.mxu0 0
        %2873 = vmatprep.subr.bf16.mxu0 0
        %2874 = vmatpush2.bf16.msra.mxu0 0
        %2875 = vmatprep.subr.bf16.mxu0 0
        %2876 = vmatpush2.bf16.msra.mxu0 0
        %2877 = vmatprep.subr.bf16.mxu0 0
        %2878 = vmatpush2.bf16.msra.mxu0 0
        %2879 = vmatprep.subr.bf16.mxu0 0
        %2880 = vmatpush2.bf16.msra.mxu0 0
        %2881 = vmatprep.subr.bf16.mxu0 0
        %2882 = vmatpush2.bf16.msra.mxu0 0
        %2883 = vmatprep.mubr.bf16.mxu0 0
        %2884 = vmatmul.mubr.bf16.gmra.mxu0 %v2786
        %v2885 = vpop.f32.mrf.mxu0
        %v2886 = vadd.f32 0.0, %v2885
        %v2887 = vpop.f32.mrf.mxu0
        %v2888 = vpop.f32.mrf.mxu0
        %v2889 = vpop.f32.mrf.mxu0
        %2890 = vdwg.mxu0
        %v2891 = vadd.f32 %v2783, %v2886
        %s2892 = scalar_lea.vmem %s5, 1
        %v2893 = vld [vmem:[%s2892] sm:$0x1]
        %v2895 = vlaneseq
        %v2896 = vshrl.u32 %v2895, 7
        %v2897 = vsub.s32 0, %v2896
        %v2898 = vrot.slane %v2893, %v2897
        %v2900 = vadd.f32 %v2891, %v2898
        %v2901 = vmax.f32 %v2900, 0.0
        %v2902 = vsel %vm1787, %v2901, %v2900
        %v2903 = vrot.slane %v2902, 4
        %v2904 = vadd.f32 %v2902, %v2903
        %v2905 = vrot.slane %v2904, 2
        %v2906 = vadd.f32 %v2904, %v2905
        %v2907 = vrot.slane %v2906, 1
        %v2908 = vadd.f32 %v2906, %v2907
        %v2909 = vmul.f32 %v2908, 0.125
        %v2910 = vrot.slane %v2902, 4
        %v2911 = vmax.f32 %v2902, %v2910
        %v2912 = vrot.slane %v2911, 2
        %v2913 = vmax.f32 %v2911, %v2912
        %v2914 = vrot.slane %v2913, 1
        %v2915 = vmax.f32 %v2913, %v2914
        %s2916 = scalar_lea.vmem %s6, 128
        %v2917 = vld [vmem:[%s2916] sm:$0xff]
        %v2918 = vld [vmem:[%s2916 + $0x8] sm:$0xff]
        %v2919 = vld [vmem:[%s2916 + $0x10] sm:$0xff]
        %v2920 = vld [vmem:[%s2916 + $0x18] sm:$0xff]
        %v2921 = vld [vmem:[%s2916 + $0x20] sm:$0xff]
        %v2922 = vld [vmem:[%s2916 + $0x28] sm:$0xff]
        %v2923 = vld [vmem:[%s2916 + $0x30] sm:$0xff]
        %v2924 = vld [vmem:[%s2916 + $0x38] sm:$0xff]
        %v2925 = vld [vmem:[%s2916 + $0x40] sm:$0xff]
        %v2926 = vld [vmem:[%s2916 + $0x48] sm:$0xff]
        %v2927 = vld [vmem:[%s2916 + $0x50] sm:$0xff]
        %v2928 = vld [vmem:[%s2916 + $0x58] sm:$0xff]
        %v2929 = vld [vmem:[%s2916 + $0x60] sm:$0xff]
        %v2930 = vld [vmem:[%s2916 + $0x68] sm:$0xff]
        %v2931 = vld [vmem:[%s2916 + $0x70] sm:$0xff]
        %v2932 = vld [vmem:[%s2916 + $0x78] sm:$0xff]
        %s2933 = scalar_lea.vmem %s7, 1
        %v2934 = vld [vmem:[%s2933] sm:$0x1]
        %2935 = vmatprep.subr.mxu0 0.0
        %2936 = vmatpush1.msra.mxu0 %v2932
        %2937 = vmatprep.subr.mxu0 0.0
        %2938 = vmatpush1.msra.mxu0 %v2931
        %2939 = vmatprep.subr.mxu0 0.0
        %2940 = vmatpush1.msra.mxu0 %v2930
        %2941 = vmatprep.subr.mxu0 0.0
        %2942 = vmatpush1.msra.mxu0 %v2929
        %2943 = vmatprep.subr.mxu0 0.0
        %2944 = vmatpush1.msra.mxu0 %v2928
        %2945 = vmatprep.subr.mxu0 0.0
        %2946 = vmatpush1.msra.mxu0 %v2927
        %2947 = vmatprep.subr.mxu0 0.0
        %2948 = vmatpush1.msra.mxu0 %v2926
        %2949 = vmatprep.subr.mxu0 0.0
        %2950 = vmatpush1.msra.mxu0 %v2925
        %2951 = vmatprep.subr.mxu0 0.0
        %2952 = vmatpush1.msra.mxu0 %v2924
        %2953 = vmatprep.subr.mxu0 0.0
        %2954 = vmatpush1.msra.mxu0 %v2923
        %2955 = vmatprep.subr.mxu0 0.0
        %2956 = vmatpush1.msra.mxu0 %v2922
        %2957 = vmatprep.subr.mxu0 0.0
        %2958 = vmatpush1.msra.mxu0 %v2921
        %2959 = vmatprep.subr.mxu0 0.0
        %2960 = vmatpush1.msra.mxu0 %v2920
        %2961 = vmatprep.subr.mxu0 0.0
        %2962 = vmatpush1.msra.mxu0 %v2919
        %2963 = vmatprep.subr.mxu0 0.0
        %2964 = vmatpush1.msra.mxu0 %v2918
        %2965 = vmatprep.subr.mxu0 0.0
        %2966 = vmatpush1.msra.mxu0 %v2917
        %2967 = vmatprep.subr.mxu0 0.0
        %2968 = vmatpush2.msra.mxu0 0.0
        %2969 = vmatprep.subr.mxu0 0.0
        %2970 = vmatpush2.msra.mxu0 0.0
        %2971 = vmatprep.subr.mxu0 0.0
        %2972 = vmatpush2.msra.mxu0 0.0
        %2973 = vmatprep.subr.mxu0 0.0
        %2974 = vmatpush2.msra.mxu0 0.0
        %2975 = vmatprep.subr.mxu0 0.0
        %2976 = vmatpush2.msra.mxu0 0.0
        %2977 = vmatprep.subr.mxu0 0.0
        %2978 = vmatpush2.msra.mxu0 0.0
        %2979 = vmatprep.subr.mxu0 0.0
        %2980 = vmatpush2.msra.mxu0 0.0
        %2981 = vmatprep.subr.mxu0 0.0
        %2982 = vmatpush2.msra.mxu0 0.0
        %2983 = vmatprep.subr.mxu0 0.0
        %2984 = vmatpush2.msra.mxu0 0.0
        %2985 = vmatprep.subr.mxu0 0.0
        %2986 = vmatpush2.msra.mxu0 0.0
        %2987 = vmatprep.subr.mxu0 0.0
        %2988 = vmatpush2.msra.mxu0 0.0
        %2989 = vmatprep.subr.mxu0 0.0
        %2990 = vmatpush2.msra.mxu0 0.0
        %2991 = vmatprep.subr.mxu0 0.0
        %2992 = vmatpush2.msra.mxu0 0.0
        %2993 = vmatprep.subr.mxu0 0.0
        %2994 = vmatpush2.msra.mxu0 0.0
        %2995 = vmatprep.subr.mxu0 0.0
        %2996 = vmatpush2.msra.mxu0 0.0
        %2997 = vmatprep.subr.mxu0 0.0
        %2998 = vmatpush2.msra.mxu0 0.0
        %2999 = vmatprep.mubr.f32.mxu0 0.0
        %3000 = vmatmul.mubr.f32.gmra.mxu0 %v2909
        %v3001 = vpop.f32.mrf.mxu0
        %v3002 = vadd.f32 %v2934, %v3001
        %v3003 = vpop.f32.mrf.mxu0
        %3004 = vdwg.mxu0
        %v3005 = vmax.f32 %v3002, 0.0
        %s3006 = scalar_lea.vmem %s8, 8
        %v3007 = vld [vmem:[%s3006] sm:$0xff]
        %s3008 = scalar_lea.vmem %s9, 1
        %v3009 = vld [vmem:[%s3008] sm:$0x1]
        %v3011 = vsel %vm413, %v3005, 0
        %3013 = vmatprep.subr.mxu0 0.0
        %3014 = vmatpush1.msra.mxu0 0.0
        %3015 = vmatprep.subr.mxu0 0.0
        %3016 = vmatpush1.msra.mxu0 0.0
        %3017 = vmatprep.subr.mxu0 0.0
        %3018 = vmatpush1.msra.mxu0 0.0
        %3019 = vmatprep.subr.mxu0 0.0
        %3020 = vmatpush1.msra.mxu0 0.0
        %3021 = vmatprep.subr.mxu0 0.0
        %3022 = vmatpush1.msra.mxu0 0.0
        %3023 = vmatprep.subr.mxu0 0.0
        %3024 = vmatpush1.msra.mxu0 0.0
        %3025 = vmatprep.subr.mxu0 0.0
        %3026 = vmatpush1.msra.mxu0 0.0
        %3027 = vmatprep.subr.mxu0 0.0
        %3028 = vmatpush1.msra.mxu0 0.0
        %3029 = vmatprep.subr.mxu0 0.0
        %3030 = vmatpush1.msra.mxu0 0.0
        %3031 = vmatprep.subr.mxu0 0.0
        %3032 = vmatpush1.msra.mxu0 0.0
        %3033 = vmatprep.subr.mxu0 0.0
        %3034 = vmatpush1.msra.mxu0 0.0
        %3035 = vmatprep.subr.mxu0 0.0
        %3036 = vmatpush1.msra.mxu0 0.0
        %3037 = vmatprep.subr.mxu0 0.0
        %3038 = vmatpush1.msra.mxu0 0.0
        %3039 = vmatprep.subr.mxu0 0.0
        %3040 = vmatpush1.msra.mxu0 0.0
        %3041 = vmatprep.subr.mxu0 0.0
        %3042 = vmatpush1.msra.mxu0 0.0
        %3043 = vmatprep.subr.mxu0 0.0
        %3044 = vmatpush1.msra.mxu0 %v3007
        %3045 = vmatprep.subr.mxu0 0.0
        %3046 = vmatpush2.msra.mxu0 0.0
        %3047 = vmatprep.subr.mxu0 0.0
        %3048 = vmatpush2.msra.mxu0 0.0
        %3049 = vmatprep.subr.mxu0 0.0
        %3050 = vmatpush2.msra.mxu0 0.0
        %3051 = vmatprep.subr.mxu0 0.0
        %3052 = vmatpush2.msra.mxu0 0.0
        %3053 = vmatprep.subr.mxu0 0.0
        %3054 = vmatpush2.msra.mxu0 0.0
        %3055 = vmatprep.subr.mxu0 0.0
        %3056 = vmatpush2.msra.mxu0 0.0
        %3057 = vmatprep.subr.mxu0 0.0
        %3058 = vmatpush2.msra.mxu0 0.0
        %3059 = vmatprep.subr.mxu0 0.0
        %3060 = vmatpush2.msra.mxu0 0.0
        %3061 = vmatprep.subr.mxu0 0.0
        %3062 = vmatpush2.msra.mxu0 0.0
        %3063 = vmatprep.subr.mxu0 0.0
        %3064 = vmatpush2.msra.mxu0 0.0
        %3065 = vmatprep.subr.mxu0 0.0
        %3066 = vmatpush2.msra.mxu0 0.0
        %3067 = vmatprep.subr.mxu0 0.0
        %3068 = vmatpush2.msra.mxu0 0.0
        %3069 = vmatprep.subr.mxu0 0.0
        %3070 = vmatpush2.msra.mxu0 0.0
        %3071 = vmatprep.subr.mxu0 0.0
        %3072 = vmatpush2.msra.mxu0 0.0
        %3073 = vmatprep.subr.mxu0 0.0
        %3074 = vmatpush2.msra.mxu0 0.0
        %3075 = vmatprep.subr.mxu0 0.0
        %3076 = vmatpush2.msra.mxu0 0.0
        %3077 = vmatprep.mubr.f32.mxu0 0.0
        %3078 = vmatmul.mubr.f32.gmra.mxu0 %v3011
        %v3079 = vpop.f32.mrf.mxu0
        %v3080 = vadd.f32 %v3009, %v3079
        %v3081 = vpop.f32.mrf.mxu0
        %3082 = vdwg.mxu0
        %3083 = vmatprep.subr.mxu0 0.0
        %3084 = vmatpush1.msra.mxu0 %v2932
        %3085 = vmatprep.subr.mxu0 0.0
        %3086 = vmatpush1.msra.mxu0 %v2931
        %3087 = vmatprep.subr.mxu0 0.0
        %3088 = vmatpush1.msra.mxu0 %v2930
        %3089 = vmatprep.subr.mxu0 0.0
        %3090 = vmatpush1.msra.mxu0 %v2929
        %3091 = vmatprep.subr.mxu0 0.0
        %3092 = vmatpush1.msra.mxu0 %v2928
        %3093 = vmatprep.subr.mxu0 0.0
        %3094 = vmatpush1.msra.mxu0 %v2927
        %3095 = vmatprep.subr.mxu0 0.0
        %3096 = vmatpush1.msra.mxu0 %v2926
        %3097 = vmatprep.subr.mxu0 0.0
        %3098 = vmatpush1.msra.mxu0 %v2925
        %3099 = vmatprep.subr.mxu0 0.0
        %3100 = vmatpush1.msra.mxu0 %v2924
        %3101 = vmatprep.subr.mxu0 0.0
        %3102 = vmatpush1.msra.mxu0 %v2923
        %3103 = vmatprep.subr.mxu0 0.0
        %3104 = vmatpush1.msra.mxu0 %v2922
        %3105 = vmatprep.subr.mxu0 0.0
        %3106 = vmatpush1.msra.mxu0 %v2921
        %3107 = vmatprep.subr.mxu0 0.0
        %3108 = vmatpush1.msra.mxu0 %v2920
        %3109 = vmatprep.subr.mxu0 0.0
        %3110 = vmatpush1.msra.mxu0 %v2919
        %3111 = vmatprep.subr.mxu0 0.0
        %3112 = vmatpush1.msra.mxu0 %v2918
        %3113 = vmatprep.subr.mxu0 0.0
        %3114 = vmatpush1.msra.mxu0 %v2917
        %3115 = vmatprep.subr.mxu0 0.0
        %3116 = vmatpush2.msra.mxu0 0.0
        %3117 = vmatprep.subr.mxu0 0.0
        %3118 = vmatpush2.msra.mxu0 0.0
        %3119 = vmatprep.subr.mxu0 0.0
        %3120 = vmatpush2.msra.mxu0 0.0
        %3121 = vmatprep.subr.mxu0 0.0
        %3122 = vmatpush2.msra.mxu0 0.0
        %3123 = vmatprep.subr.mxu0 0.0
        %3124 = vmatpush2.msra.mxu0 0.0
        %3125 = vmatprep.subr.mxu0 0.0
        %3126 = vmatpush2.msra.mxu0 0.0
        %3127 = vmatprep.subr.mxu0 0.0
        %3128 = vmatpush2.msra.mxu0 0.0
        %3129 = vmatprep.subr.mxu0 0.0
        %3130 = vmatpush2.msra.mxu0 0.0
        %3131 = vmatprep.subr.mxu0 0.0
        %3132 = vmatpush2.msra.mxu0 0.0
        %3133 = vmatprep.subr.mxu0 0.0
        %3134 = vmatpush2.msra.mxu0 0.0
        %3135 = vmatprep.subr.mxu0 0.0
        %3136 = vmatpush2.msra.mxu0 0.0
        %3137 = vmatprep.subr.mxu0 0.0
        %3138 = vmatpush2.msra.mxu0 0.0
        %3139 = vmatprep.subr.mxu0 0.0
        %3140 = vmatpush2.msra.mxu0 0.0
        %3141 = vmatprep.subr.mxu0 0.0
        %3142 = vmatpush2.msra.mxu0 0.0
        %3143 = vmatprep.subr.mxu0 0.0
        %3144 = vmatpush2.msra.mxu0 0.0
        %3145 = vmatprep.subr.mxu0 0.0
        %3146 = vmatpush2.msra.mxu0 0.0
        %3147 = vmatprep.mubr.f32.mxu0 0.0
        %3148 = vmatmul.mubr.f32.gmra.mxu0 %v2915
        %v3149 = vpop.f32.mrf.mxu0
        %v3150 = vadd.f32 %v2934, %v3149
        %v3151 = vpop.f32.mrf.mxu0
        %3152 = vdwg.mxu0
        %v3153 = vmax.f32 %v3150, 0.0
        %v3155 = vsel %vm413, %v3153, 0
        %3157 = vmatprep.subr.mxu0 0.0
        %3158 = vmatpush1.msra.mxu0 0.0
        %3159 = vmatprep.subr.mxu0 0.0
        %3160 = vmatpush1.msra.mxu0 0.0
        %3161 = vmatprep.subr.mxu0 0.0
        %3162 = vmatpush1.msra.mxu0 0.0
        %3163 = vmatprep.subr.mxu0 0.0
        %3164 = vmatpush1.msra.mxu0 0.0
        %3165 = vmatprep.subr.mxu0 0.0
        %3166 = vmatpush1.msra.mxu0 0.0
        %3167 = vmatprep.subr.mxu0 0.0
        %3168 = vmatpush1.msra.mxu0 0.0
        %3169 = vmatprep.subr.mxu0 0.0
        %3170 = vmatpush1.msra.mxu0 0.0
        %3171 = vmatprep.subr.mxu0 0.0
        %3172 = vmatpush1.msra.mxu0 0.0
        %3173 = vmatprep.subr.mxu0 0.0
        %3174 = vmatpush1.msra.mxu0 0.0
        %3175 = vmatprep.subr.mxu0 0.0
        %3176 = vmatpush1.msra.mxu0 0.0
        %3177 = vmatprep.subr.mxu0 0.0
        %3178 = vmatpush1.msra.mxu0 0.0
        %3179 = vmatprep.subr.mxu0 0.0
        %3180 = vmatpush1.msra.mxu0 0.0
        %3181 = vmatprep.subr.mxu0 0.0
        %3182 = vmatpush1.msra.mxu0 0.0
        %3183 = vmatprep.subr.mxu0 0.0
        %3184 = vmatpush1.msra.mxu0 0.0
        %3185 = vmatprep.subr.mxu0 0.0
        %3186 = vmatpush1.msra.mxu0 0.0
        %3187 = vmatprep.subr.mxu0 0.0
        %3188 = vmatpush1.msra.mxu0 %v3007
        %3189 = vmatprep.subr.mxu0 0.0
        %3190 = vmatpush2.msra.mxu0 0.0
        %3191 = vmatprep.subr.mxu0 0.0
        %3192 = vmatpush2.msra.mxu0 0.0
        %3193 = vmatprep.subr.mxu0 0.0
        %3194 = vmatpush2.msra.mxu0 0.0
        %3195 = vmatprep.subr.mxu0 0.0
        %3196 = vmatpush2.msra.mxu0 0.0
        %3197 = vmatprep.subr.mxu0 0.0
        %3198 = vmatpush2.msra.mxu0 0.0
        %3199 = vmatprep.subr.mxu0 0.0
        %3200 = vmatpush2.msra.mxu0 0.0
        %3201 = vmatprep.subr.mxu0 0.0
        %3202 = vmatpush2.msra.mxu0 0.0
        %3203 = vmatprep.subr.mxu0 0.0
        %3204 = vmatpush2.msra.mxu0 0.0
        %3205 = vmatprep.subr.mxu0 0.0
        %3206 = vmatpush2.msra.mxu0 0.0
        %3207 = vmatprep.subr.mxu0 0.0
        %3208 = vmatpush2.msra.mxu0 0.0
        %3209 = vmatprep.subr.mxu0 0.0
        %3210 = vmatpush2.msra.mxu0 0.0
        %3211 = vmatprep.subr.mxu0 0.0
        %3212 = vmatpush2.msra.mxu0 0.0
        %3213 = vmatprep.subr.mxu0 0.0
        %3214 = vmatpush2.msra.mxu0 0.0
        %3215 = vmatprep.subr.mxu0 0.0
        %3216 = vmatpush2.msra.mxu0 0.0
        %3217 = vmatprep.subr.mxu0 0.0
        %3218 = vmatpush2.msra.mxu0 0.0
        %3219 = vmatprep.subr.mxu0 0.0
        %3220 = vmatpush2.msra.mxu0 0.0
        %3221 = vmatprep.mubr.f32.mxu0 0.0
        %3222 = vmatmul.mubr.f32.gmra.mxu0 %v3155
        %v3223 = vpop.f32.mrf.mxu0
        %v3224 = vadd.f32 %v3009, %v3223
        %v3225 = vpop.f32.mrf.mxu0
        %3226 = vdwg.mxu0
        %v3227 = vadd.f32 %v3080, %v3224
        %v3228 = vxor.u32 %v3227, 2147483648
        %v3229 = vmul.f32 %v3228, 1.442695
        %v3230 = vpow.pop %v3229
        %v3231 = vadd.f32 %v3230, 1.0
        %v3232 = vrcp.pop %v3231
        %v3233 = vmul.f32 1.0, %v3232
        %v3234 = vsel %vm889, %v3233, 1.0
        %v3235 = vlaneseq
        %v3236 = vshrl.u32 %v3235, 7
        %v3237 = vsub.s32 0, %v3236
        %v3238 = vrot.slane %v3234, %v3237
        %v3239 = vmul.f32 %v2902, %v3238
        %3240 = vst [vmem:[#allocation2 + $0x8] sm:$0xff] %v3239
        %v3241 = vld [vmem:[%s890] ss:$4 sm:$0x3]
        %v3242 = vpack.c.bf16 %v3241, %v3241
        %v3243 = vld [vmem:[#allocation4 + $0x380] sm:$0xf]
        %v3244 = vld [vmem:[#allocation4 + $0x384] sm:$0xf]
        %v3245 = vld [vmem:[#allocation4 + $0x388] sm:$0xf]
        %v3246 = vld [vmem:[#allocation4 + $0x38c] sm:$0xf]
        %v3247 = vld [vmem:[#allocation4 + $0x390] sm:$0xf]
        %v3248 = vld [vmem:[#allocation4 + $0x394] sm:$0xf]
        %v3249 = vld [vmem:[#allocation4 + $0x398] sm:$0xf]
        %v3250 = vld [vmem:[#allocation4 + $0x39c] sm:$0xf]
        %v3251 = vld [vmem:[#allocation4 + $0x3a0] sm:$0xf]
        %v3252 = vld [vmem:[#allocation4 + $0x3a4] sm:$0xf]
        %v3253 = vld [vmem:[#allocation4 + $0x3a8] sm:$0xf]
        %v3254 = vld [vmem:[#allocation4 + $0x3ac] sm:$0xf]
        %v3255 = vld [vmem:[#allocation4 + $0x3b0] sm:$0xf]
        %v3256 = vld [vmem:[#allocation4 + $0x3b4] sm:$0xf]
        %v3257 = vld [vmem:[#allocation4 + $0x3b8] sm:$0xf]
        %v3258 = vld [vmem:[#allocation4 + $0x3bc] sm:$0xf]
        %v3259 = vld [vmem:[%s916] ss:$4 sm:$0x3]
        %v3260 = vpack.c.bf16 %v3259, %v3259
        %v3261 = vld [vmem:[#allocation4 + $0x3c0] sm:$0xf]
        %v3262 = vld [vmem:[#allocation4 + $0x3c4] sm:$0xf]
        %v3263 = vld [vmem:[#allocation4 + $0x3c8] sm:$0xf]
        %v3264 = vld [vmem:[#allocation4 + $0x3cc] sm:$0xf]
        %v3265 = vld [vmem:[#allocation4 + $0x3d0] sm:$0xf]
        %v3266 = vld [vmem:[#allocation4 + $0x3d4] sm:$0xf]
        %v3267 = vld [vmem:[#allocation4 + $0x3d8] sm:$0xf]
        %v3268 = vld [vmem:[#allocation4 + $0x3dc] sm:$0xf]
        %v3269 = vld [vmem:[#allocation4 + $0x3e0] sm:$0xf]
        %v3270 = vld [vmem:[#allocation4 + $0x3e4] sm:$0xf]
        %v3271 = vld [vmem:[#allocation4 + $0x3e8] sm:$0xf]
        %v3272 = vld [vmem:[#allocation4 + $0x3ec] sm:$0xf]
        %v3273 = vld [vmem:[#allocation4 + $0x3f0] sm:$0xf]
        %v3274 = vld [vmem:[#allocation4 + $0x3f4] sm:$0xf]
        %v3275 = vld [vmem:[#allocation4 + $0x3f8] sm:$0xf]
        %v3276 = vld [vmem:[#allocation4 + $0x3fc] sm:$0xf]
        %v3293 = vunpack.c.l.b16 %v3261
        %v3294 = vunpack.c.l.b16 %v3262
        %v3295 = vunpack.c.l.b16 %v3263
        %v3296 = vunpack.c.l.b16 %v3264
        %v3297 = vunpack.c.l.b16 %v3265
        %v3298 = vunpack.c.l.b16 %v3266
        %v3299 = vunpack.c.l.b16 %v3267
        %v3300 = vunpack.c.l.b16 %v3268
        %v3301 = vunpack.c.l.b16 %v3269
        %v3302 = vunpack.c.l.b16 %v3270
        %v3303 = vunpack.c.l.b16 %v3271
        %v3304 = vunpack.c.l.b16 %v3272
        %v3305 = vunpack.c.l.b16 %v3273
        %v3306 = vunpack.c.l.b16 %v3274
        %v3307 = vunpack.c.l.b16 %v3275
        %v3308 = vunpack.c.l.b16 %v3276
        %v3309 = vpack.c.b16 %v3294, %v3293
        %v3310 = vpack.c.b16 %v3296, %v3295
        %v3311 = vpack.c.b16 %v3298, %v3297
        %v3312 = vpack.c.b16 %v3300, %v3299
        %v3313 = vpack.c.b16 %v3302, %v3301
        %v3314 = vpack.c.b16 %v3304, %v3303
        %v3315 = vpack.c.b16 %v3306, %v3305
        %v3316 = vpack.c.b16 %v3308, %v3307
        %3325 = vmatprep.subr.bf16.mxu0 0
        %3326 = vmatpush1.bf16.msra.mxu0 %v3316
        %3327 = vmatprep.subr.bf16.mxu0 0
        %3328 = vmatpush1.bf16.msra.mxu0 %v3315
        %3329 = vmatprep.subr.bf16.mxu0 0
        %3330 = vmatpush1.bf16.msra.mxu0 %v3314
        %3331 = vmatprep.subr.bf16.mxu0 0
        %3332 = vmatpush1.bf16.msra.mxu0 %v3313
        %3333 = vmatprep.subr.bf16.mxu0 0
        %3334 = vmatpush1.bf16.msra.mxu0 %v3312
        %3335 = vmatprep.subr.bf16.mxu0 0
        %3336 = vmatpush1.bf16.msra.mxu0 %v3311
        %3337 = vmatprep.subr.bf16.mxu0 0
        %3338 = vmatpush1.bf16.msra.mxu0 %v3310
        %3339 = vmatprep.subr.bf16.mxu0 0
        %3340 = vmatpush1.bf16.msra.mxu0 %v3309
        %3341 = vmatprep.subr.bf16.mxu0 0
        %3342 = vmatpush2.bf16.msra.mxu0 0
        %3343 = vmatprep.subr.bf16.mxu0 0
        %3344 = vmatpush2.bf16.msra.mxu0 0
        %3345 = vmatprep.subr.bf16.mxu0 0
        %3346 = vmatpush2.bf16.msra.mxu0 0
        %3347 = vmatprep.subr.bf16.mxu0 0
        %3348 = vmatpush2.bf16.msra.mxu0 0
        %3349 = vmatprep.subr.bf16.mxu0 0
        %3350 = vmatpush2.bf16.msra.mxu0 0
        %3351 = vmatprep.subr.bf16.mxu0 0
        %3352 = vmatpush2.bf16.msra.mxu0 0
        %3353 = vmatprep.subr.bf16.mxu0 0
        %3354 = vmatpush2.bf16.msra.mxu0 0
        %3355 = vmatprep.subr.bf16.mxu0 0
        %3356 = vmatpush2.bf16.msra.mxu0 0
        %3357 = vmatprep.mubr.bf16.mxu0 0
        %3358 = vmatmul.mubr.bf16.gmra.mxu0 %v3260
        %v3359 = vpop.f32.mrf.mxu0
        %v3360 = vadd.f32 0.0, %v3359
        %v3361 = vpop.f32.mrf.mxu0
        %v3362 = vpop.f32.mrf.mxu0
        %v3363 = vpop.f32.mrf.mxu0
        %3364 = vdwg.mxu0
        %v3381 = vunpack.c.l.b16 %v3243
        %v3382 = vunpack.c.l.b16 %v3244
        %v3383 = vunpack.c.l.b16 %v3245
        %v3384 = vunpack.c.l.b16 %v3246
        %v3385 = vunpack.c.l.b16 %v3247
        %v3386 = vunpack.c.l.b16 %v3248
        %v3387 = vunpack.c.l.b16 %v3249
        %v3388 = vunpack.c.l.b16 %v3250
        %v3389 = vunpack.c.l.b16 %v3251
        %v3390 = vunpack.c.l.b16 %v3252
        %v3391 = vunpack.c.l.b16 %v3253
        %v3392 = vunpack.c.l.b16 %v3254
        %v3393 = vunpack.c.l.b16 %v3255
        %v3394 = vunpack.c.l.b16 %v3256
        %v3395 = vunpack.c.l.b16 %v3257
        %v3396 = vunpack.c.l.b16 %v3258
        %v3397 = vpack.c.b16 %v3382, %v3381
        %v3398 = vpack.c.b16 %v3384, %v3383
        %v3399 = vpack.c.b16 %v3386, %v3385
        %v3400 = vpack.c.b16 %v3388, %v3387
        %v3401 = vpack.c.b16 %v3390, %v3389
        %v3402 = vpack.c.b16 %v3392, %v3391
        %v3403 = vpack.c.b16 %v3394, %v3393
        %v3404 = vpack.c.b16 %v3396, %v3395
        %3413 = vmatprep.subr.bf16.mxu0 0
        %3414 = vmatpush1.bf16.msra.mxu0 %v3404
        %3415 = vmatprep.subr.bf16.mxu0 0
        %3416 = vmatpush1.bf16.msra.mxu0 %v3403
        %3417 = vmatprep.subr.bf16.mxu0 0
        %3418 = vmatpush1.bf16.msra.mxu0 %v3402
        %3419 = vmatprep.subr.bf16.mxu0 0
        %3420 = vmatpush1.bf16.msra.mxu0 %v3401
        %3421 = vmatprep.subr.bf16.mxu0 0
        %3422 = vmatpush1.bf16.msra.mxu0 %v3400
        %3423 = vmatprep.subr.bf16.mxu0 0
        %3424 = vmatpush1.bf16.msra.mxu0 %v3399
        %3425 = vmatprep.subr.bf16.mxu0 0
        %3426 = vmatpush1.bf16.msra.mxu0 %v3398
        %3427 = vmatprep.subr.bf16.mxu0 0
        %3428 = vmatpush1.bf16.msra.mxu0 %v3397
        %3429 = vmatprep.subr.bf16.mxu0 0
        %3430 = vmatpush2.bf16.msra.mxu0 0
        %3431 = vmatprep.subr.bf16.mxu0 0
        %3432 = vmatpush2.bf16.msra.mxu0 0
        %3433 = vmatprep.subr.bf16.mxu0 0
        %3434 = vmatpush2.bf16.msra.mxu0 0
        %3435 = vmatprep.subr.bf16.mxu0 0
        %3436 = vmatpush2.bf16.msra.mxu0 0
        %3437 = vmatprep.subr.bf16.mxu0 0
        %3438 = vmatpush2.bf16.msra.mxu0 0
        %3439 = vmatprep.subr.bf16.mxu0 0
        %3440 = vmatpush2.bf16.msra.mxu0 0
        %3441 = vmatprep.subr.bf16.mxu0 0
        %3442 = vmatpush2.bf16.msra.mxu0 0
        %3443 = vmatprep.subr.bf16.mxu0 0
        %3444 = vmatpush2.bf16.msra.mxu0 0
        %3445 = vmatprep.mubr.bf16.mxu0 0
        %3446 = vmatmul.mubr.bf16.gmra.mxu0 %v3242
        %v3447 = vpop.f32.mrf.mxu0
        %v3448 = vadd.f32 %v3360, %v3447
        %v3449 = vpop.f32.mrf.mxu0
        %v3450 = vpop.f32.mrf.mxu0
        %v3451 = vpop.f32.mrf.mxu0
        %3452 = vdwg.mxu0
        %v3453 = vld [vmem:[%s1136] ss:$4 sm:$0x3]
        %v3454 = vpack.c.bf16 %v3453, %v3453
        %v3455 = vld [vmem:[#allocation4 + $0x400] sm:$0xf]
        %v3456 = vld [vmem:[#allocation4 + $0x404] sm:$0xf]
        %v3457 = vld [vmem:[#allocation4 + $0x408] sm:$0xf]
        %v3458 = vld [vmem:[#allocation4 + $0x40c] sm:$0xf]
        %v3459 = vld [vmem:[#allocation4 + $0x410] sm:$0xf]
        %v3460 = vld [vmem:[#allocation4 + $0x414] sm:$0xf]
        %v3461 = vld [vmem:[#allocation4 + $0x418] sm:$0xf]
        %v3462 = vld [vmem:[#allocation4 + $0x41c] sm:$0xf]
        %v3463 = vld [vmem:[#allocation4 + $0x420] sm:$0xf]
        %v3464 = vld [vmem:[#allocation4 + $0x424] sm:$0xf]
        %v3465 = vld [vmem:[#allocation4 + $0x428] sm:$0xf]
        %v3466 = vld [vmem:[#allocation4 + $0x42c] sm:$0xf]
        %v3467 = vld [vmem:[#allocation4 + $0x430] sm:$0xf]
        %v3468 = vld [vmem:[#allocation4 + $0x434] sm:$0xf]
        %v3469 = vld [vmem:[#allocation4 + $0x438] sm:$0xf]
        %v3470 = vld [vmem:[#allocation4 + $0x43c] sm:$0xf]
        %v3487 = vunpack.c.l.b16 %v3455
        %v3488 = vunpack.c.l.b16 %v3456
        %v3489 = vunpack.c.l.b16 %v3457
        %v3490 = vunpack.c.l.b16 %v3458
        %v3491 = vunpack.c.l.b16 %v3459
        %v3492 = vunpack.c.l.b16 %v3460
        %v3493 = vunpack.c.l.b16 %v3461
        %v3494 = vunpack.c.l.b16 %v3462
        %v3495 = vunpack.c.l.b16 %v3463
        %v3496 = vunpack.c.l.b16 %v3464
        %v3497 = vunpack.c.l.b16 %v3465
        %v3498 = vunpack.c.l.b16 %v3466
        %v3499 = vunpack.c.l.b16 %v3467
        %v3500 = vunpack.c.l.b16 %v3468
        %v3501 = vunpack.c.l.b16 %v3469
        %v3502 = vunpack.c.l.b16 %v3470
        %v3503 = vpack.c.b16 %v3488, %v3487
        %v3504 = vpack.c.b16 %v3490, %v3489
        %v3505 = vpack.c.b16 %v3492, %v3491
        %v3506 = vpack.c.b16 %v3494, %v3493
        %v3507 = vpack.c.b16 %v3496, %v3495
        %v3508 = vpack.c.b16 %v3498, %v3497
        %v3509 = vpack.c.b16 %v3500, %v3499
        %v3510 = vpack.c.b16 %v3502, %v3501
        %3519 = vmatprep.subr.bf16.mxu0 0
        %3520 = vmatpush1.bf16.msra.mxu0 %v3510
        %3521 = vmatprep.subr.bf16.mxu0 0
        %3522 = vmatpush1.bf16.msra.mxu0 %v3509
        %3523 = vmatprep.subr.bf16.mxu0 0
        %3524 = vmatpush1.bf16.msra.mxu0 %v3508
        %3525 = vmatprep.subr.bf16.mxu0 0
        %3526 = vmatpush1.bf16.msra.mxu0 %v3507
        %3527 = vmatprep.subr.bf16.mxu0 0
        %3528 = vmatpush1.bf16.msra.mxu0 %v3506
        %3529 = vmatprep.subr.bf16.mxu0 0
        %3530 = vmatpush1.bf16.msra.mxu0 %v3505
        %3531 = vmatprep.subr.bf16.mxu0 0
        %3532 = vmatpush1.bf16.msra.mxu0 %v3504
        %3533 = vmatprep.subr.bf16.mxu0 0
        %3534 = vmatpush1.bf16.msra.mxu0 %v3503
        %3535 = vmatprep.subr.bf16.mxu0 0
        %3536 = vmatpush2.bf16.msra.mxu0 0
        %3537 = vmatprep.subr.bf16.mxu0 0
        %3538 = vmatpush2.bf16.msra.mxu0 0
        %3539 = vmatprep.subr.bf16.mxu0 0
        %3540 = vmatpush2.bf16.msra.mxu0 0
        %3541 = vmatprep.subr.bf16.mxu0 0
        %3542 = vmatpush2.bf16.msra.mxu0 0
        %3543 = vmatprep.subr.bf16.mxu0 0
        %3544 = vmatpush2.bf16.msra.mxu0 0
        %3545 = vmatprep.subr.bf16.mxu0 0
        %3546 = vmatpush2.bf16.msra.mxu0 0
        %3547 = vmatprep.subr.bf16.mxu0 0
        %3548 = vmatpush2.bf16.msra.mxu0 0
        %3549 = vmatprep.subr.bf16.mxu0 0
        %3550 = vmatpush2.bf16.msra.mxu0 0
        %3551 = vmatprep.mubr.bf16.mxu0 0
        %3552 = vmatmul.mubr.bf16.gmra.mxu0 %v3454
        %v3553 = vpop.f32.mrf.mxu0
        %v3554 = vadd.f32 0.0, %v3553
        %v3555 = vpop.f32.mrf.mxu0
        %v3556 = vpop.f32.mrf.mxu0
        %v3557 = vpop.f32.mrf.mxu0
        %3558 = vdwg.mxu0
        %v3559 = vadd.f32 %v3448, %v3554
        %s3560 = scalar_lea.vmem [#allocation2], 8
        %v3561 = vld [vmem:[%s3560] ss:$4 sm:$0x3]
        %v3562 = vpack.c.bf16 %v3561, %v3561
        %v3563 = vld [vmem:[#allocation4 + $0x440] sm:$0xf]
        %v3564 = vld [vmem:[#allocation4 + $0x444] sm:$0xf]
        %v3565 = vld [vmem:[#allocation4 + $0x448] sm:$0xf]
        %v3566 = vld [vmem:[#allocation4 + $0x44c] sm:$0xf]
        %v3567 = vld [vmem:[#allocation4 + $0x450] sm:$0xf]
        %v3568 = vld [vmem:[#allocation4 + $0x454] sm:$0xf]
        %v3569 = vld [vmem:[#allocation4 + $0x458] sm:$0xf]
        %v3570 = vld [vmem:[#allocation4 + $0x45c] sm:$0xf]
        %v3571 = vld [vmem:[#allocation4 + $0x460] sm:$0xf]
        %v3572 = vld [vmem:[#allocation4 + $0x464] sm:$0xf]
        %v3573 = vld [vmem:[#allocation4 + $0x468] sm:$0xf]
        %v3574 = vld [vmem:[#allocation4 + $0x46c] sm:$0xf]
        %v3575 = vld [vmem:[#allocation4 + $0x470] sm:$0xf]
        %v3576 = vld [vmem:[#allocation4 + $0x474] sm:$0xf]
        %v3577 = vld [vmem:[#allocation4 + $0x478] sm:$0xf]
        %v3578 = vld [vmem:[#allocation4 + $0x47c] sm:$0xf]
        %v3595 = vunpack.c.l.b16 %v3563
        %v3596 = vunpack.c.l.b16 %v3564
        %v3597 = vunpack.c.l.b16 %v3565
        %v3598 = vunpack.c.l.b16 %v3566
        %v3599 = vunpack.c.l.b16 %v3567
        %v3600 = vunpack.c.l.b16 %v3568
        %v3601 = vunpack.c.l.b16 %v3569
        %v3602 = vunpack.c.l.b16 %v3570
        %v3603 = vunpack.c.l.b16 %v3571
        %v3604 = vunpack.c.l.b16 %v3572
        %v3605 = vunpack.c.l.b16 %v3573
        %v3606 = vunpack.c.l.b16 %v3574
        %v3607 = vunpack.c.l.b16 %v3575
        %v3608 = vunpack.c.l.b16 %v3576
        %v3609 = vunpack.c.l.b16 %v3577
        %v3610 = vunpack.c.l.b16 %v3578
        %v3611 = vpack.c.b16 %v3596, %v3595
        %v3612 = vpack.c.b16 %v3598, %v3597
        %v3613 = vpack.c.b16 %v3600, %v3599
        %v3614 = vpack.c.b16 %v3602, %v3601
        %v3615 = vpack.c.b16 %v3604, %v3603
        %v3616 = vpack.c.b16 %v3606, %v3605
        %v3617 = vpack.c.b16 %v3608, %v3607
        %v3618 = vpack.c.b16 %v3610, %v3609
        %3627 = vmatprep.subr.bf16.mxu0 0
        %3628 = vmatpush1.bf16.msra.mxu0 %v3618
        %3629 = vmatprep.subr.bf16.mxu0 0
        %3630 = vmatpush1.bf16.msra.mxu0 %v3617
        %3631 = vmatprep.subr.bf16.mxu0 0
        %3632 = vmatpush1.bf16.msra.mxu0 %v3616
        %3633 = vmatprep.subr.bf16.mxu0 0
        %3634 = vmatpush1.bf16.msra.mxu0 %v3615
        %3635 = vmatprep.subr.bf16.mxu0 0
        %3636 = vmatpush1.bf16.msra.mxu0 %v3614
        %3637 = vmatprep.subr.bf16.mxu0 0
        %3638 = vmatpush1.bf16.msra.mxu0 %v3613
        %3639 = vmatprep.subr.bf16.mxu0 0
        %3640 = vmatpush1.bf16.msra.mxu0 %v3612
        %3641 = vmatprep.subr.bf16.mxu0 0
        %3642 = vmatpush1.bf16.msra.mxu0 %v3611
        %3643 = vmatprep.subr.bf16.mxu0 0
        %3644 = vmatpush2.bf16.msra.mxu0 0
        %3645 = vmatprep.subr.bf16.mxu0 0
        %3646 = vmatpush2.bf16.msra.mxu0 0
        %3647 = vmatprep.subr.bf16.mxu0 0
        %3648 = vmatpush2.bf16.msra.mxu0 0
        %3649 = vmatprep.subr.bf16.mxu0 0
        %3650 = vmatpush2.bf16.msra.mxu0 0
        %3651 = vmatprep.subr.bf16.mxu0 0
        %3652 = vmatpush2.bf16.msra.mxu0 0
        %3653 = vmatprep.subr.bf16.mxu0 0
        %3654 = vmatpush2.bf16.msra.mxu0 0
        %3655 = vmatprep.subr.bf16.mxu0 0
        %3656 = vmatpush2.bf16.msra.mxu0 0
        %3657 = vmatprep.subr.bf16.mxu0 0
        %3658 = vmatpush2.bf16.msra.mxu0 0
        %3659 = vmatprep.mubr.bf16.mxu0 0
        %3660 = vmatmul.mubr.bf16.gmra.mxu0 %v3562
        %v3661 = vpop.f32.mrf.mxu0
        %v3662 = vadd.f32 0.0, %v3661
        %v3663 = vpop.f32.mrf.mxu0
        %v3664 = vpop.f32.mrf.mxu0
        %v3665 = vpop.f32.mrf.mxu0
        %3666 = vdwg.mxu0
        %v3667 = vadd.f32 %v3559, %v3662
        %v3668 = vld [vmem:[%s1390] ss:$4 sm:$0x3]
        %v3669 = vpack.c.bf16 %v3668, %v3668
        %v3670 = vld [vmem:[#allocation4 + $0x480] sm:$0xf]
        %v3671 = vld [vmem:[#allocation4 + $0x484] sm:$0xf]
        %v3672 = vld [vmem:[#allocation4 + $0x488] sm:$0xf]
        %v3673 = vld [vmem:[#allocation4 + $0x48c] sm:$0xf]
        %v3674 = vld [vmem:[#allocation4 + $0x490] sm:$0xf]
        %v3675 = vld [vmem:[#allocation4 + $0x494] sm:$0xf]
        %v3676 = vld [vmem:[#allocation4 + $0x498] sm:$0xf]
        %v3677 = vld [vmem:[#allocation4 + $0x49c] sm:$0xf]
        %v3678 = vld [vmem:[#allocation4 + $0x4a0] sm:$0xf]
        %v3679 = vld [vmem:[#allocation4 + $0x4a4] sm:$0xf]
        %v3680 = vld [vmem:[#allocation4 + $0x4a8] sm:$0xf]
        %v3681 = vld [vmem:[#allocation4 + $0x4ac] sm:$0xf]
        %v3682 = vld [vmem:[#allocation4 + $0x4b0] sm:$0xf]
        %v3683 = vld [vmem:[#allocation4 + $0x4b4] sm:$0xf]
        %v3684 = vld [vmem:[#allocation4 + $0x4b8] sm:$0xf]
        %v3685 = vld [vmem:[#allocation4 + $0x4bc] sm:$0xf]
        %v3702 = vunpack.c.l.b16 %v3670
        %v3703 = vunpack.c.l.b16 %v3671
        %v3704 = vunpack.c.l.b16 %v3672
        %v3705 = vunpack.c.l.b16 %v3673
        %v3706 = vunpack.c.l.b16 %v3674
        %v3707 = vunpack.c.l.b16 %v3675
        %v3708 = vunpack.c.l.b16 %v3676
        %v3709 = vunpack.c.l.b16 %v3677
        %v3710 = vunpack.c.l.b16 %v3678
        %v3711 = vunpack.c.l.b16 %v3679
        %v3712 = vunpack.c.l.b16 %v3680
        %v3713 = vunpack.c.l.b16 %v3681
        %v3714 = vunpack.c.l.b16 %v3682
        %v3715 = vunpack.c.l.b16 %v3683
        %v3716 = vunpack.c.l.b16 %v3684
        %v3717 = vunpack.c.l.b16 %v3685
        %v3718 = vpack.c.b16 %v3703, %v3702
        %v3719 = vpack.c.b16 %v3705, %v3704
        %v3720 = vpack.c.b16 %v3707, %v3706
        %v3721 = vpack.c.b16 %v3709, %v3708
        %v3722 = vpack.c.b16 %v3711, %v3710
        %v3723 = vpack.c.b16 %v3713, %v3712
        %v3724 = vpack.c.b16 %v3715, %v3714
        %v3725 = vpack.c.b16 %v3717, %v3716
        %3734 = vmatprep.subr.bf16.mxu0 0
        %3735 = vmatpush1.bf16.msra.mxu0 %v3725
        %3736 = vmatprep.subr.bf16.mxu0 0
        %3737 = vmatpush1.bf16.msra.mxu0 %v3724
        %3738 = vmatprep.subr.bf16.mxu0 0
        %3739 = vmatpush1.bf16.msra.mxu0 %v3723
        %3740 = vmatprep.subr.bf16.mxu0 0
        %3741 = vmatpush1.bf16.msra.mxu0 %v3722
        %3742 = vmatprep.subr.bf16.mxu0 0
        %3743 = vmatpush1.bf16.msra.mxu0 %v3721
        %3744 = vmatprep.subr.bf16.mxu0 0
        %3745 = vmatpush1.bf16.msra.mxu0 %v3720
        %3746 = vmatprep.subr.bf16.mxu0 0
        %3747 = vmatpush1.bf16.msra.mxu0 %v3719
        %3748 = vmatprep.subr.bf16.mxu0 0
        %3749 = vmatpush1.bf16.msra.mxu0 %v3718
        %3750 = vmatprep.subr.bf16.mxu0 0
        %3751 = vmatpush2.bf16.msra.mxu0 0
        %3752 = vmatprep.subr.bf16.mxu0 0
        %3753 = vmatpush2.bf16.msra.mxu0 0
        %3754 = vmatprep.subr.bf16.mxu0 0
        %3755 = vmatpush2.bf16.msra.mxu0 0
        %3756 = vmatprep.subr.bf16.mxu0 0
        %3757 = vmatpush2.bf16.msra.mxu0 0
        %3758 = vmatprep.subr.bf16.mxu0 0
        %3759 = vmatpush2.bf16.msra.mxu0 0
        %3760 = vmatprep.subr.bf16.mxu0 0
        %3761 = vmatpush2.bf16.msra.mxu0 0
        %3762 = vmatprep.subr.bf16.mxu0 0
        %3763 = vmatpush2.bf16.msra.mxu0 0
        %3764 = vmatprep.subr.bf16.mxu0 0
        %3765 = vmatpush2.bf16.msra.mxu0 0
        %3766 = vmatprep.mubr.bf16.mxu0 0
        %3767 = vmatmul.mubr.bf16.gmra.mxu0 %v3669
        %v3768 = vpop.f32.mrf.mxu0
        %v3769 = vadd.f32 0.0, %v3768
        %v3770 = vpop.f32.mrf.mxu0
        %v3771 = vpop.f32.mrf.mxu0
        %v3772 = vpop.f32.mrf.mxu0
        %3773 = vdwg.mxu0
        %v3774 = vadd.f32 %v3667, %v3769
        %v3775 = vld [vmem:[%s1517] ss:$4 sm:$0x3]
        %v3776 = vpack.c.bf16 %v3775, %v3775
        %v3777 = vld [vmem:[#allocation4 + $0x4c0] sm:$0xf]
        %v3778 = vld [vmem:[#allocation4 + $0x4c4] sm:$0xf]
        %v3779 = vld [vmem:[#allocation4 + $0x4c8] sm:$0xf]
        %v3780 = vld [vmem:[#allocation4 + $0x4cc] sm:$0xf]
        %v3781 = vld [vmem:[#allocation4 + $0x4d0] sm:$0xf]
        %v3782 = vld [vmem:[#allocation4 + $0x4d4] sm:$0xf]
        %v3783 = vld [vmem:[#allocation4 + $0x4d8] sm:$0xf]
        %v3784 = vld [vmem:[#allocation4 + $0x4dc] sm:$0xf]
        %v3785 = vld [vmem:[#allocation4 + $0x4e0] sm:$0xf]
        %v3786 = vld [vmem:[#allocation4 + $0x4e4] sm:$0xf]
        %v3787 = vld [vmem:[#allocation4 + $0x4e8] sm:$0xf]
        %v3788 = vld [vmem:[#allocation4 + $0x4ec] sm:$0xf]
        %v3789 = vld [vmem:[#allocation4 + $0x4f0] sm:$0xf]
        %v3790 = vld [vmem:[#allocation4 + $0x4f4] sm:$0xf]
        %v3791 = vld [vmem:[#allocation4 + $0x4f8] sm:$0xf]
        %v3792 = vld [vmem:[#allocation4 + $0x4fc] sm:$0xf]
        %v3809 = vunpack.c.l.b16 %v3777
        %v3810 = vunpack.c.l.b16 %v3778
        %v3811 = vunpack.c.l.b16 %v3779
        %v3812 = vunpack.c.l.b16 %v3780
        %v3813 = vunpack.c.l.b16 %v3781
        %v3814 = vunpack.c.l.b16 %v3782
        %v3815 = vunpack.c.l.b16 %v3783
        %v3816 = vunpack.c.l.b16 %v3784
        %v3817 = vunpack.c.l.b16 %v3785
        %v3818 = vunpack.c.l.b16 %v3786
        %v3819 = vunpack.c.l.b16 %v3787
        %v3820 = vunpack.c.l.b16 %v3788
        %v3821 = vunpack.c.l.b16 %v3789
        %v3822 = vunpack.c.l.b16 %v3790
        %v3823 = vunpack.c.l.b16 %v3791
        %v3824 = vunpack.c.l.b16 %v3792
        %v3825 = vpack.c.b16 %v3810, %v3809
        %v3826 = vpack.c.b16 %v3812, %v3811
        %v3827 = vpack.c.b16 %v3814, %v3813
        %v3828 = vpack.c.b16 %v3816, %v3815
        %v3829 = vpack.c.b16 %v3818, %v3817
        %v3830 = vpack.c.b16 %v3820, %v3819
        %v3831 = vpack.c.b16 %v3822, %v3821
        %v3832 = vpack.c.b16 %v3824, %v3823
        %3841 = vmatprep.subr.bf16.mxu0 0
        %3842 = vmatpush1.bf16.msra.mxu0 %v3832
        %3843 = vmatprep.subr.bf16.mxu0 0
        %3844 = vmatpush1.bf16.msra.mxu0 %v3831
        %3845 = vmatprep.subr.bf16.mxu0 0
        %3846 = vmatpush1.bf16.msra.mxu0 %v3830
        %3847 = vmatprep.subr.bf16.mxu0 0
        %3848 = vmatpush1.bf16.msra.mxu0 %v3829
        %3849 = vmatprep.subr.bf16.mxu0 0
        %3850 = vmatpush1.bf16.msra.mxu0 %v3828
        %3851 = vmatprep.subr.bf16.mxu0 0
        %3852 = vmatpush1.bf16.msra.mxu0 %v3827
        %3853 = vmatprep.subr.bf16.mxu0 0
        %3854 = vmatpush1.bf16.msra.mxu0 %v3826
        %3855 = vmatprep.subr.bf16.mxu0 0
        %3856 = vmatpush1.bf16.msra.mxu0 %v3825
        %3857 = vmatprep.subr.bf16.mxu0 0
        %3858 = vmatpush2.bf16.msra.mxu0 0
        %3859 = vmatprep.subr.bf16.mxu0 0
        %3860 = vmatpush2.bf16.msra.mxu0 0
        %3861 = vmatprep.subr.bf16.mxu0 0
        %3862 = vmatpush2.bf16.msra.mxu0 0
        %3863 = vmatprep.subr.bf16.mxu0 0
        %3864 = vmatpush2.bf16.msra.mxu0 0
        %3865 = vmatprep.subr.bf16.mxu0 0
        %3866 = vmatpush2.bf16.msra.mxu0 0
        %3867 = vmatprep.subr.bf16.mxu0 0
        %3868 = vmatpush2.bf16.msra.mxu0 0
        %3869 = vmatprep.subr.bf16.mxu0 0
        %3870 = vmatpush2.bf16.msra.mxu0 0
        %3871 = vmatprep.subr.bf16.mxu0 0
        %3872 = vmatpush2.bf16.msra.mxu0 0
        %3873 = vmatprep.mubr.bf16.mxu0 0
        %3874 = vmatmul.mubr.bf16.gmra.mxu0 %v3776
        %v3875 = vpop.f32.mrf.mxu0
        %v3876 = vadd.f32 0.0, %v3875
        %v3877 = vpop.f32.mrf.mxu0
        %v3878 = vpop.f32.mrf.mxu0
        %v3879 = vpop.f32.mrf.mxu0
        %3880 = vdwg.mxu0
        %v3881 = vadd.f32 %v3774, %v3876
        %v3882 = vld [vmem:[%s1644] ss:$4 sm:$0x3]
        %v3883 = vpack.c.bf16 %v3882, %v3882
        %v3884 = vld [vmem:[#allocation4 + $0x500] sm:$0xf]
        %v3885 = vld [vmem:[#allocation4 + $0x504] sm:$0xf]
        %v3886 = vld [vmem:[#allocation4 + $0x508] sm:$0xf]
        %v3887 = vld [vmem:[#allocation4 + $0x50c] sm:$0xf]
        %v3888 = vld [vmem:[#allocation4 + $0x510] sm:$0xf]
        %v3889 = vld [vmem:[#allocation4 + $0x514] sm:$0xf]
        %v3890 = vld [vmem:[#allocation4 + $0x518] sm:$0xf]
        %v3891 = vld [vmem:[#allocation4 + $0x51c] sm:$0xf]
        %v3892 = vld [vmem:[#allocation4 + $0x520] sm:$0xf]
        %v3893 = vld [vmem:[#allocation4 + $0x524] sm:$0xf]
        %v3894 = vld [vmem:[#allocation4 + $0x528] sm:$0xf]
        %v3895 = vld [vmem:[#allocation4 + $0x52c] sm:$0xf]
        %v3896 = vld [vmem:[#allocation4 + $0x530] sm:$0xf]
        %v3897 = vld [vmem:[#allocation4 + $0x534] sm:$0xf]
        %v3898 = vld [vmem:[#allocation4 + $0x538] sm:$0xf]
        %v3899 = vld [vmem:[#allocation4 + $0x53c] sm:$0xf]
        %v3916 = vunpack.c.l.b16 %v3884
        %v3917 = vunpack.c.l.b16 %v3885
        %v3918 = vunpack.c.l.b16 %v3886
        %v3919 = vunpack.c.l.b16 %v3887
        %v3920 = vunpack.c.l.b16 %v3888
        %v3921 = vunpack.c.l.b16 %v3889
        %v3922 = vunpack.c.l.b16 %v3890
        %v3923 = vunpack.c.l.b16 %v3891
        %v3924 = vunpack.c.l.b16 %v3892
        %v3925 = vunpack.c.l.b16 %v3893
        %v3926 = vunpack.c.l.b16 %v3894
        %v3927 = vunpack.c.l.b16 %v3895
        %v3928 = vunpack.c.l.b16 %v3896
        %v3929 = vunpack.c.l.b16 %v3897
        %v3930 = vunpack.c.l.b16 %v3898
        %v3931 = vunpack.c.l.b16 %v3899
        %v3932 = vpack.c.b16 %v3917, %v3916
        %v3933 = vpack.c.b16 %v3919, %v3918
        %v3934 = vpack.c.b16 %v3921, %v3920
        %v3935 = vpack.c.b16 %v3923, %v3922
        %v3936 = vpack.c.b16 %v3925, %v3924
        %v3937 = vpack.c.b16 %v3927, %v3926
        %v3938 = vpack.c.b16 %v3929, %v3928
        %v3939 = vpack.c.b16 %v3931, %v3930
        %3948 = vmatprep.subr.bf16.mxu0 0
        %3949 = vmatpush1.bf16.msra.mxu0 %v3939
        %3950 = vmatprep.subr.bf16.mxu0 0
        %3951 = vmatpush1.bf16.msra.mxu0 %v3938
        %3952 = vmatprep.subr.bf16.mxu0 0
        %3953 = vmatpush1.bf16.msra.mxu0 %v3937
        %3954 = vmatprep.subr.bf16.mxu0 0
        %3955 = vmatpush1.bf16.msra.mxu0 %v3936
        %3956 = vmatprep.subr.bf16.mxu0 0
        %3957 = vmatpush1.bf16.msra.mxu0 %v3935
        %3958 = vmatprep.subr.bf16.mxu0 0
        %3959 = vmatpush1.bf16.msra.mxu0 %v3934
        %3960 = vmatprep.subr.bf16.mxu0 0
        %3961 = vmatpush1.bf16.msra.mxu0 %v3933
        %3962 = vmatprep.subr.bf16.mxu0 0
        %3963 = vmatpush1.bf16.msra.mxu0 %v3932
        %3964 = vmatprep.subr.bf16.mxu0 0
        %3965 = vmatpush2.bf16.msra.mxu0 0
        %3966 = vmatprep.subr.bf16.mxu0 0
        %3967 = vmatpush2.bf16.msra.mxu0 0
        %3968 = vmatprep.subr.bf16.mxu0 0
        %3969 = vmatpush2.bf16.msra.mxu0 0
        %3970 = vmatprep.subr.bf16.mxu0 0
        %3971 = vmatpush2.bf16.msra.mxu0 0
        %3972 = vmatprep.subr.bf16.mxu0 0
        %3973 = vmatpush2.bf16.msra.mxu0 0
        %3974 = vmatprep.subr.bf16.mxu0 0
        %3975 = vmatpush2.bf16.msra.mxu0 0
        %3976 = vmatprep.subr.bf16.mxu0 0
        %3977 = vmatpush2.bf16.msra.mxu0 0
        %3978 = vmatprep.subr.bf16.mxu0 0
        %3979 = vmatpush2.bf16.msra.mxu0 0
        %3980 = vmatprep.mubr.bf16.mxu0 0
        %3981 = vmatmul.mubr.bf16.gmra.mxu0 %v3883
        %v3982 = vpop.f32.mrf.mxu0
        %v3983 = vadd.f32 0.0, %v3982
        %v3984 = vpop.f32.mrf.mxu0
        %v3985 = vpop.f32.mrf.mxu0
        %v3986 = vpop.f32.mrf.mxu0
        %3987 = vdwg.mxu0
        %v3988 = vadd.f32 %v3881, %v3983
        %s3989 = scalar_lea.vmem %s5, 2
        %v3990 = vld [vmem:[%s3989] sm:$0x1]
        %v3992 = vlaneseq
        %v3993 = vshrl.u32 %v3992, 7
        %v3994 = vsub.s32 0, %v3993
        %v3995 = vrot.slane %v3990, %v3994
        %v3997 = vadd.f32 %v3988, %v3995
        %v3998 = vmax.f32 %v3997, 0.0
        %v3999 = vsel %vm1787, %v3998, %v3997
        %vm4000 = vcmask 1041408
        %v4001 = vsel %vm4000, %v3999, 0.0
        %v4002 = vrot.slane %v4001, 4
        %v4003 = vadd.f32 %v4001, %v4002
        %v4004 = vrot.slane %v4003, 2
        %v4005 = vadd.f32 %v4003, %v4004
        %v4006 = vrot.slane %v4005, 1
        %v4007 = vadd.f32 %v4005, %v4006
        %v4008 = vmul.f32 %v4007, 0.5
        %v4009 = vsel %vm4000, %v3999, -inf
        %v4010 = vrot.slane %v4009, 4
        %v4011 = vmax.f32 %v4009, %v4010
        %v4012 = vrot.slane %v4011, 2
        %v4013 = vmax.f32 %v4011, %v4012
        %v4014 = vrot.slane %v4013, 1
        %v4015 = vmax.f32 %v4013, %v4014
        %s4016 = scalar_lea.vmem %s6, 256
        %v4017 = vld [vmem:[%s4016] sm:$0xff]
        %v4018 = vld [vmem:[%s4016 + $0x8] sm:$0xff]
        %v4019 = vld [vmem:[%s4016 + $0x10] sm:$0xff]
        %v4020 = vld [vmem:[%s4016 + $0x18] sm:$0xff]
        %v4021 = vld [vmem:[%s4016 + $0x20] sm:$0xff]
        %v4022 = vld [vmem:[%s4016 + $0x28] sm:$0xff]
        %v4023 = vld [vmem:[%s4016 + $0x30] sm:$0xff]
        %v4024 = vld [vmem:[%s4016 + $0x38] sm:$0xff]
        %v4025 = vld [vmem:[%s4016 + $0x40] sm:$0xff]
        %v4026 = vld [vmem:[%s4016 + $0x48] sm:$0xff]
        %v4027 = vld [vmem:[%s4016 + $0x50] sm:$0xff]
        %v4028 = vld [vmem:[%s4016 + $0x58] sm:$0xff]
        %v4029 = vld [vmem:[%s4016 + $0x60] sm:$0xff]
        %v4030 = vld [vmem:[%s4016 + $0x68] sm:$0xff]
        %v4031 = vld [vmem:[%s4016 + $0x70] sm:$0xff]
        %v4032 = vld [vmem:[%s4016 + $0x78] sm:$0xff]
        %s4033 = scalar_lea.vmem %s7, 2
        %v4034 = vld [vmem:[%s4033] sm:$0x1]
        %4035 = vmatprep.subr.mxu0 0.0
        %4036 = vmatpush1.msra.mxu0 %v4032
        %4037 = vmatprep.subr.mxu0 0.0
        %4038 = vmatpush1.msra.mxu0 %v4031
        %4039 = vmatprep.subr.mxu0 0.0
        %4040 = vmatpush1.msra.mxu0 %v4030
        %4041 = vmatprep.subr.mxu0 0.0
        %4042 = vmatpush1.msra.mxu0 %v4029
        %4043 = vmatprep.subr.mxu0 0.0
        %4044 = vmatpush1.msra.mxu0 %v4028
        %4045 = vmatprep.subr.mxu0 0.0
        %4046 = vmatpush1.msra.mxu0 %v4027
        %4047 = vmatprep.subr.mxu0 0.0
        %4048 = vmatpush1.msra.mxu0 %v4026
        %4049 = vmatprep.subr.mxu0 0.0
        %4050 = vmatpush1.msra.mxu0 %v4025
        %4051 = vmatprep.subr.mxu0 0.0
        %4052 = vmatpush1.msra.mxu0 %v4024
        %4053 = vmatprep.subr.mxu0 0.0
        %4054 = vmatpush1.msra.mxu0 %v4023
        %4055 = vmatprep.subr.mxu0 0.0
        %4056 = vmatpush1.msra.mxu0 %v4022
        %4057 = vmatprep.subr.mxu0 0.0
        %4058 = vmatpush1.msra.mxu0 %v4021
        %4059 = vmatprep.subr.mxu0 0.0
        %4060 = vmatpush1.msra.mxu0 %v4020
        %4061 = vmatprep.subr.mxu0 0.0
        %4062 = vmatpush1.msra.mxu0 %v4019
        %4063 = vmatprep.subr.mxu0 0.0
        %4064 = vmatpush1.msra.mxu0 %v4018
        %4065 = vmatprep.subr.mxu0 0.0
        %4066 = vmatpush1.msra.mxu0 %v4017
        %4067 = vmatprep.subr.mxu0 0.0
        %4068 = vmatpush2.msra.mxu0 0.0
        %4069 = vmatprep.subr.mxu0 0.0
        %4070 = vmatpush2.msra.mxu0 0.0
        %4071 = vmatprep.subr.mxu0 0.0
        %4072 = vmatpush2.msra.mxu0 0.0
        %4073 = vmatprep.subr.mxu0 0.0
        %4074 = vmatpush2.msra.mxu0 0.0
        %4075 = vmatprep.subr.mxu0 0.0
        %4076 = vmatpush2.msra.mxu0 0.0
        %4077 = vmatprep.subr.mxu0 0.0
        %4078 = vmatpush2.msra.mxu0 0.0
        %4079 = vmatprep.subr.mxu0 0.0
        %4080 = vmatpush2.msra.mxu0 0.0
        %4081 = vmatprep.subr.mxu0 0.0
        %4082 = vmatpush2.msra.mxu0 0.0
        %4083 = vmatprep.subr.mxu0 0.0
        %4084 = vmatpush2.msra.mxu0 0.0
        %4085 = vmatprep.subr.mxu0 0.0
        %4086 = vmatpush2.msra.mxu0 0.0
        %4087 = vmatprep.subr.mxu0 0.0
        %4088 = vmatpush2.msra.mxu0 0.0
        %4089 = vmatprep.subr.mxu0 0.0
        %4090 = vmatpush2.msra.mxu0 0.0
        %4091 = vmatprep.subr.mxu0 0.0
        %4092 = vmatpush2.msra.mxu0 0.0
        %4093 = vmatprep.subr.mxu0 0.0
        %4094 = vmatpush2.msra.mxu0 0.0
        %4095 = vmatprep.subr.mxu0 0.0
        %4096 = vmatpush2.msra.mxu0 0.0
        %4097 = vmatprep.subr.mxu0 0.0
        %4098 = vmatpush2.msra.mxu0 0.0
        %4099 = vmatprep.mubr.f32.mxu0 0.0
        %4100 = vmatmul.mubr.f32.gmra.mxu0 %v4008
        %v4101 = vpop.f32.mrf.mxu0
        %v4102 = vadd.f32 %v4034, %v4101
        %v4103 = vpop.f32.mrf.mxu0
        %4104 = vdwg.mxu0
        %v4105 = vmax.f32 %v4102, 0.0
        %s4106 = scalar_lea.vmem %s8, 16
        %v4107 = vld [vmem:[%s4106] sm:$0xff]
        %s4108 = scalar_lea.vmem %s9, 2
        %v4109 = vld [vmem:[%s4108] sm:$0x1]
        %v4111 = vsel %vm413, %v4105, 0
        %4113 = vmatprep.subr.mxu0 0.0
        %4114 = vmatpush1.msra.mxu0 0.0
        %4115 = vmatprep.subr.mxu0 0.0
        %4116 = vmatpush1.msra.mxu0 0.0
        %4117 = vmatprep.subr.mxu0 0.0
        %4118 = vmatpush1.msra.mxu0 0.0
        %4119 = vmatprep.subr.mxu0 0.0
        %4120 = vmatpush1.msra.mxu0 0.0
        %4121 = vmatprep.subr.mxu0 0.0
        %4122 = vmatpush1.msra.mxu0 0.0
        %4123 = vmatprep.subr.mxu0 0.0
        %4124 = vmatpush1.msra.mxu0 0.0
        %4125 = vmatprep.subr.mxu0 0.0
        %4126 = vmatpush1.msra.mxu0 0.0
        %4127 = vmatprep.subr.mxu0 0.0
        %4128 = vmatpush1.msra.mxu0 0.0
        %4129 = vmatprep.subr.mxu0 0.0
        %4130 = vmatpush1.msra.mxu0 0.0
        %4131 = vmatprep.subr.mxu0 0.0
        %4132 = vmatpush1.msra.mxu0 0.0
        %4133 = vmatprep.subr.mxu0 0.0
        %4134 = vmatpush1.msra.mxu0 0.0
        %4135 = vmatprep.subr.mxu0 0.0
        %4136 = vmatpush1.msra.mxu0 0.0
        %4137 = vmatprep.subr.mxu0 0.0
        %4138 = vmatpush1.msra.mxu0 0.0
        %4139 = vmatprep.subr.mxu0 0.0
        %4140 = vmatpush1.msra.mxu0 0.0
        %4141 = vmatprep.subr.mxu0 0.0
        %4142 = vmatpush1.msra.mxu0 0.0
        %4143 = vmatprep.subr.mxu0 0.0
        %4144 = vmatpush1.msra.mxu0 %v4107
        %4145 = vmatprep.subr.mxu0 0.0
        %4146 = vmatpush2.msra.mxu0 0.0
        %4147 = vmatprep.subr.mxu0 0.0
        %4148 = vmatpush2.msra.mxu0 0.0
        %4149 = vmatprep.subr.mxu0 0.0
        %4150 = vmatpush2.msra.mxu0 0.0
        %4151 = vmatprep.subr.mxu0 0.0
        %4152 = vmatpush2.msra.mxu0 0.0
        %4153 = vmatprep.subr.mxu0 0.0
        %4154 = vmatpush2.msra.mxu0 0.0
        %4155 = vmatprep.subr.mxu0 0.0
        %4156 = vmatpush2.msra.mxu0 0.0
        %4157 = vmatprep.subr.mxu0 0.0
        %4158 = vmatpush2.msra.mxu0 0.0
        %4159 = vmatprep.subr.mxu0 0.0
        %4160 = vmatpush2.msra.mxu0 0.0
        %4161 = vmatprep.subr.mxu0 0.0
        %4162 = vmatpush2.msra.mxu0 0.0
        %4163 = vmatprep.subr.mxu0 0.0
        %4164 = vmatpush2.msra.mxu0 0.0
        %4165 = vmatprep.subr.mxu0 0.0
        %4166 = vmatpush2.msra.mxu0 0.0
        %4167 = vmatprep.subr.mxu0 0.0
        %4168 = vmatpush2.msra.mxu0 0.0
        %4169 = vmatprep.subr.mxu0 0.0
        %4170 = vmatpush2.msra.mxu0 0.0
        %4171 = vmatprep.subr.mxu0 0.0
        %4172 = vmatpush2.msra.mxu0 0.0
        %4173 = vmatprep.subr.mxu0 0.0
        %4174 = vmatpush2.msra.mxu0 0.0
        %4175 = vmatprep.subr.mxu0 0.0
        %4176 = vmatpush2.msra.mxu0 0.0
        %4177 = vmatprep.mubr.f32.mxu0 0.0
        %4178 = vmatmul.mubr.f32.gmra.mxu0 %v4111
        %v4179 = vpop.f32.mrf.mxu0
        %v4180 = vadd.f32 %v4109, %v4179
        %v4181 = vpop.f32.mrf.mxu0
        %4182 = vdwg.mxu0
        %4183 = vmatprep.subr.mxu0 0.0
        %4184 = vmatpush1.msra.mxu0 %v4032
        %4185 = vmatprep.subr.mxu0 0.0
        %4186 = vmatpush1.msra.mxu0 %v4031
        %4187 = vmatprep.subr.mxu0 0.0
        %4188 = vmatpush1.msra.mxu0 %v4030
        %4189 = vmatprep.subr.mxu0 0.0
        %4190 = vmatpush1.msra.mxu0 %v4029
        %4191 = vmatprep.subr.mxu0 0.0
        %4192 = vmatpush1.msra.mxu0 %v4028
        %4193 = vmatprep.subr.mxu0 0.0
        %4194 = vmatpush1.msra.mxu0 %v4027
        %4195 = vmatprep.subr.mxu0 0.0
        %4196 = vmatpush1.msra.mxu0 %v4026
        %4197 = vmatprep.subr.mxu0 0.0
        %4198 = vmatpush1.msra.mxu0 %v4025
        %4199 = vmatprep.subr.mxu0 0.0
        %4200 = vmatpush1.msra.mxu0 %v4024
        %4201 = vmatprep.subr.mxu0 0.0
        %4202 = vmatpush1.msra.mxu0 %v4023
        %4203 = vmatprep.subr.mxu0 0.0
        %4204 = vmatpush1.msra.mxu0 %v4022
        %4205 = vmatprep.subr.mxu0 0.0
        %4206 = vmatpush1.msra.mxu0 %v4021
        %4207 = vmatprep.subr.mxu0 0.0
        %4208 = vmatpush1.msra.mxu0 %v4020
        %4209 = vmatprep.subr.mxu0 0.0
        %4210 = vmatpush1.msra.mxu0 %v4019
        %4211 = vmatprep.subr.mxu0 0.0
        %4212 = vmatpush1.msra.mxu0 %v4018
        %4213 = vmatprep.subr.mxu0 0.0
        %4214 = vmatpush1.msra.mxu0 %v4017
        %4215 = vmatprep.subr.mxu0 0.0
        %4216 = vmatpush2.msra.mxu0 0.0
        %4217 = vmatprep.subr.mxu0 0.0
        %4218 = vmatpush2.msra.mxu0 0.0
        %4219 = vmatprep.subr.mxu0 0.0
        %4220 = vmatpush2.msra.mxu0 0.0
        %4221 = vmatprep.subr.mxu0 0.0
        %4222 = vmatpush2.msra.mxu0 0.0
        %4223 = vmatprep.subr.mxu0 0.0
        %4224 = vmatpush2.msra.mxu0 0.0
        %4225 = vmatprep.subr.mxu0 0.0
        %4226 = vmatpush2.msra.mxu0 0.0
        %4227 = vmatprep.subr.mxu0 0.0
        %4228 = vmatpush2.msra.mxu0 0.0
        %4229 = vmatprep.subr.mxu0 0.0
        %4230 = vmatpush2.msra.mxu0 0.0
        %4231 = vmatprep.subr.mxu0 0.0
        %4232 = vmatpush2.msra.mxu0 0.0
        %4233 = vmatprep.subr.mxu0 0.0
        %4234 = vmatpush2.msra.mxu0 0.0
        %4235 = vmatprep.subr.mxu0 0.0
        %4236 = vmatpush2.msra.mxu0 0.0
        %4237 = vmatprep.subr.mxu0 0.0
        %4238 = vmatpush2.msra.mxu0 0.0
        %4239 = vmatprep.subr.mxu0 0.0
        %4240 = vmatpush2.msra.mxu0 0.0
        %4241 = vmatprep.subr.mxu0 0.0
        %4242 = vmatpush2.msra.mxu0 0.0
        %4243 = vmatprep.subr.mxu0 0.0
        %4244 = vmatpush2.msra.mxu0 0.0
        %4245 = vmatprep.subr.mxu0 0.0
        %4246 = vmatpush2.msra.mxu0 0.0
        %4247 = vmatprep.mubr.f32.mxu0 0.0
        %4248 = vmatmul.mubr.f32.gmra.mxu0 %v4015
        %v4249 = vpop.f32.mrf.mxu0
        %v4250 = vadd.f32 %v4034, %v4249
        %v4251 = vpop.f32.mrf.mxu0
        %4252 = vdwg.mxu0
        %v4253 = vmax.f32 %v4250, 0.0
        %v4255 = vsel %vm413, %v4253, 0
        %4257 = vmatprep.subr.mxu0 0.0
        %4258 = vmatpush1.msra.mxu0 0.0
        %4259 = vmatprep.subr.mxu0 0.0
        %4260 = vmatpush1.msra.mxu0 0.0
        %4261 = vmatprep.subr.mxu0 0.0
        %4262 = vmatpush1.msra.mxu0 0.0
        %4263 = vmatprep.subr.mxu0 0.0
        %4264 = vmatpush1.msra.mxu0 0.0
        %4265 = vmatprep.subr.mxu0 0.0
        %4266 = vmatpush1.msra.mxu0 0.0
        %4267 = vmatprep.subr.mxu0 0.0
        %4268 = vmatpush1.msra.mxu0 0.0
        %4269 = vmatprep.subr.mxu0 0.0
        %4270 = vmatpush1.msra.mxu0 0.0
        %4271 = vmatprep.subr.mxu0 0.0
        %4272 = vmatpush1.msra.mxu0 0.0
        %4273 = vmatprep.subr.mxu0 0.0
        %4274 = vmatpush1.msra.mxu0 0.0
        %4275 = vmatprep.subr.mxu0 0.0
        %4276 = vmatpush1.msra.mxu0 0.0
        %4277 = vmatprep.subr.mxu0 0.0
        %4278 = vmatpush1.msra.mxu0 0.0
        %4279 = vmatprep.subr.mxu0 0.0
        %4280 = vmatpush1.msra.mxu0 0.0
        %4281 = vmatprep.subr.mxu0 0.0
        %4282 = vmatpush1.msra.mxu0 0.0
        %4283 = vmatprep.subr.mxu0 0.0
        %4284 = vmatpush1.msra.mxu0 0.0
        %4285 = vmatprep.subr.mxu0 0.0
        %4286 = vmatpush1.msra.mxu0 0.0
        %4287 = vmatprep.subr.mxu0 0.0
        %4288 = vmatpush1.msra.mxu0 %v4107
        %4289 = vmatprep.subr.mxu0 0.0
        %4290 = vmatpush2.msra.mxu0 0.0
        %4291 = vmatprep.subr.mxu0 0.0
        %4292 = vmatpush2.msra.mxu0 0.0
        %4293 = vmatprep.subr.mxu0 0.0
        %4294 = vmatpush2.msra.mxu0 0.0
        %4295 = vmatprep.subr.mxu0 0.0
        %4296 = vmatpush2.msra.mxu0 0.0
        %4297 = vmatprep.subr.mxu0 0.0
        %4298 = vmatpush2.msra.mxu0 0.0
        %4299 = vmatprep.subr.mxu0 0.0
        %4300 = vmatpush2.msra.mxu0 0.0
        %4301 = vmatprep.subr.mxu0 0.0
        %4302 = vmatpush2.msra.mxu0 0.0
        %4303 = vmatprep.subr.mxu0 0.0
        %4304 = vmatpush2.msra.mxu0 0.0
        %4305 = vmatprep.subr.mxu0 0.0
        %4306 = vmatpush2.msra.mxu0 0.0
        %4307 = vmatprep.subr.mxu0 0.0
        %4308 = vmatpush2.msra.mxu0 0.0
        %4309 = vmatprep.subr.mxu0 0.0
        %4310 = vmatpush2.msra.mxu0 0.0
        %4311 = vmatprep.subr.mxu0 0.0
        %4312 = vmatpush2.msra.mxu0 0.0
        %4313 = vmatprep.subr.mxu0 0.0
        %4314 = vmatpush2.msra.mxu0 0.0
        %4315 = vmatprep.subr.mxu0 0.0
        %4316 = vmatpush2.msra.mxu0 0.0
        %4317 = vmatprep.subr.mxu0 0.0
        %4318 = vmatpush2.msra.mxu0 0.0
        %4319 = vmatprep.subr.mxu0 0.0
        %4320 = vmatpush2.msra.mxu0 0.0
        %4321 = vmatprep.mubr.f32.mxu0 0.0
        %4322 = vmatmul.mubr.f32.gmra.mxu0 %v4255
        %v4323 = vpop.f32.mrf.mxu0
        %v4324 = vadd.f32 %v4109, %v4323
        %v4325 = vpop.f32.mrf.mxu0
        %4326 = vdwg.mxu0
        %v4327 = vadd.f32 %v4180, %v4324
        %v4328 = vxor.u32 %v4327, 2147483648
        %v4329 = vmul.f32 %v4328, 1.442695
        %v4330 = vpow.pop %v4329
        %v4331 = vadd.f32 %v4330, 1.0
        %v4332 = vrcp.pop %v4331
        %v4333 = vmul.f32 1.0, %v4332
        %v4334 = vsel %vm889, %v4333, 1.0
        %v4335 = vlaneseq
        %v4336 = vshrl.u32 %v4335, 7
        %v4337 = vsub.s32 0, %v4336
        %v4338 = vrot.slane %v4334, %v4337
        %v4339 = vmul.f32 %v3999, %v4338
        %4340 = vxpose.xlu0.b32.start [1/16] %v4339, 128
        %4341 = vxpose.xlu0.b32.cont [2/16] 0.0, 128
        %4342 = vxpose.xlu0.b32.cont [3/16] 0.0, 128
        %4343 = vxpose.xlu0.b32.cont [4/16] 0.0, 128
        %4344 = vxpose.xlu0.b32.cont [5/16] 0.0, 128
        %4345 = vxpose.xlu0.b32.cont [6/16] 0.0, 128
        %4346 = vxpose.xlu0.b32.cont [7/16] 0.0, 128
        %4347 = vxpose.xlu0.b32.cont [8/16] 0.0, 128
        %4348 = vxpose.xlu0.b32.cont [9/16] 0.0, 128
        %4349 = vxpose.xlu0.b32.cont [10/16] 0.0, 128
        %4350 = vxpose.xlu0.b32.cont [11/16] 0.0, 128
        %4351 = vxpose.xlu0.b32.cont [12/16] 0.0, 128
        %4352 = vxpose.xlu0.b32.cont [13/16] 0.0, 128
        %4353 = vxpose.xlu0.b32.cont [14/16] 0.0, 128
        %4354 = vxpose.xlu0.b32.cont [15/16] 0.0, 128
        %4355 = vxpose.xlu0.b32.end [16/16] 0.0, 128
        %v4356 = vpop.trf.xlu0
        %v4357 = vpop.trf.xlu0
        %v4358 = vpop.trf.xlu0
        %v4359 = vpop.trf.xlu0
        %v4360 = vpop.trf.xlu0
        %v4361 = vpop.trf.xlu0
        %v4362 = vpop.trf.xlu0
        %v4363 = vpop.trf.xlu0
        %v4364 = vpop.trf.xlu0
        %v4365 = vpop.trf.xlu0
        %v4366 = vpop.trf.xlu0
        %v4367 = vpop.trf.xlu0
        %v4368 = vpop.trf.xlu0
        %v4369 = vpop.trf.xlu0
        %v4370 = vpop.trf.xlu0
        %v4371 = vpop.trf.xlu0
        %vm4372 = vcmask 15360
        %4373 = vst.msk [vmem:[%s374] sm:$0xff] %vm4372, %v4356
        %4374 = vst.msk [vmem:[%s374 + $0x8] sm:$0xff] %vm4372, %v4357
        %4375 = vst.msk [vmem:[%s374 + $0x10] sm:$0xff] %vm4372, %v4358
        %4376 = vst.msk [vmem:[%s374 + $0x18] sm:$0xff] %vm4372, %v4359
        %4377 = vst.msk [vmem:[%s374 + $0x20] sm:$0xff] %vm4372, %v4360
        %4378 = vst.msk [vmem:[%s374 + $0x28] sm:$0xff] %vm4372, %v4361
        %4379 = vst.msk [vmem:[%s374 + $0x30] sm:$0xff] %vm4372, %v4362
        %4380 = vst.msk [vmem:[%s374 + $0x38] sm:$0xff] %vm4372, %v4363
        %4381 = vst.msk [vmem:[%s374 + $0x40] sm:$0xff] %vm4372, %v4364
        %4382 = vst.msk [vmem:[%s374 + $0x48] sm:$0xff] %vm4372, %v4365
        %4383 = vst.msk [vmem:[%s374 + $0x50] sm:$0xff] %vm4372, %v4366
        %4384 = vst.msk [vmem:[%s374 + $0x58] sm:$0xff] %vm4372, %v4367
        %4385 = vst.msk [vmem:[%s374 + $0x60] sm:$0xff] %vm4372, %v4368
        %4386 = vst.msk [vmem:[%s374 + $0x68] sm:$0xff] %vm4372, %v4369
        %4387 = vst.msk [vmem:[%s374 + $0x70] sm:$0xff] %vm4372, %v4370
        %4388 = vst.msk [vmem:[%s374 + $0x78] sm:$0xff] %vm4372, %v4371
        %p4389 = scmp.lt.s32.totalorder %s22, 1
        %s4390 = scalar_select %p4389, %s22, 1
        %s4391 = smul.addr %s4390, 16
        %s4392 = smul.addr %s4391, 8
        %s4393 = scalar_lea.vmem %s10, %s4392
        // Predicated region
        $region65: #{feature_encoder_fwd.1} parent=59 // pred_check
          %p4394 = pneg %p255
        $region66: #{feature_encoder_fwd.1} parent=59 // pred_check_branch
          %4396 = sbr.rel (%p4394) target = $region68
        $region67: #{feature_encoder_fwd.1} parent=59 // pred_region
          _
        $region68: #{feature_encoder_fwd.1} parent=59 // pred_fallthru
          _
      $region60: #{feature_encoder_fwd.1} parent=5 // pred_fallthru
        _
      %p4397 = scmp.le.s32.totalorder 2, %s17
      // Predicated region
      $region69: #{feature_encoder_fwd.1} parent=5 // pred_check
        %p4398 = pneg %p4397
      $region70: #{feature_encoder_fwd.1} parent=5 // pred_check_branch
        %4400 = sbr.rel (%p4398) target = $region72
      $region71: #{feature_encoder_fwd.1} parent=5 // pred_region
        %s4401 = ssub.s32 %s17, 2
        // Predicated region
        $region73: #{feature_encoder_fwd.1} parent=71 // pred_check
          %p4402 = pneg %p261
        $region74: #{feature_encoder_fwd.1} parent=71 // pred_check_branch
          %4404 = sbr.rel (%p4402) target = $region76
        $region75: #{feature_encoder_fwd.1} parent=71 // pred_region
          %p4405 = scmp.lt.s32.totalorder %s23, 1
          %s4406 = scalar_select %p4405, %s23, 1
          %s4407 = smul.addr %s4406, 16
          %s4408 = smul.addr %s4407, 8
          %s4409 = scalar_lea.vmem %s10, %s4408
        $region76: #{feature_encoder_fwd.1} parent=71 // pred_fallthru
          _
      $region72: #{feature_encoder_fwd.1} parent=5 // pred_fallthru
        _
    $region6: #{feature_encoder_fwd.1} parent=1 // loop_footer
      %s21 = sadd.s32 1, %s17
    $region7: #{feature_encoder_fwd.1} parent=1 // loop_footer_branch
      %16 = sbr.rel target = $region3
    $region8: #{feature_encoder_fwd.1} parent=1 // loop_exit
      _
    %4410 = vsyncpa [#allocation5], 1
    %s4411 = scalar_lea.sflag [#allocation5], 1
    %4412 = vsyncpa %s4411, 1

</llo_original>
